<compile_context>
chip_gen: v6e
topology: v6e:2x2x1
jax: 0.10.0
libtpu: 0.0.40
codegen_flags: <defaults>
</compile_context>

<pallas_src>
import math

import jax
import jax.numpy as jnp
from jax import lax
from jax.experimental import pallas as pl
from jax.experimental.pallas import tpu as pltpu


_VMEM_LIMIT = 32 * 1024 * 1024   # <= physical / scoped headroom on v5e/v6e/v7x


def _round_up(x, m):
    return (x + m - 1) // m * m


def _pick_tile(m_padded, cap):
    """Largest multiple of 8 that divides m_padded and is <= cap."""
    t = min(m_padded, cap)
    t -= t % 8
    t = max(t, 8)
    while m_padded % t:
        t -= 8
    return t


# --------------------------------------------------------------------------- #
# Tiled matmul (bf16 MXU inputs, f32 accumulate)
# --------------------------------------------------------------------------- #

def _matmul_kernel_single_k(a_ref, b_ref, o_ref):
    o_ref[...] = jnp.dot(a_ref[...], b_ref[...],
                         preferred_element_type=jnp.float32).astype(o_ref.dtype)


def _matmul_kernel_multi_k(a_ref, b_ref, o_ref, acc_ref):
    @pl.when(pl.program_id(2) == 0)
    def _():
        acc_ref[...] = jnp.zeros_like(acc_ref)

    acc_ref[...] += jnp.dot(a_ref[...], b_ref[...],
                            preferred_element_type=jnp.float32)

    @pl.when(pl.program_id(2) == pl.num_programs(2) - 1)
    def _():
        o_ref[...] = acc_ref[...].astype(o_ref.dtype)


def pallas_matmul(a, b, out_dtype=jnp.float32):
    """(M, K) @ (K, N) -> (M, N).  bf16 DMA/MXU inputs, f32 accumulator."""
    M, K = a.shape
    K2, N = b.shape
    assert K == K2
    a16 = a.astype(jnp.bfloat16)
    b16 = b.astype(jnp.bfloat16)

    Mp = _round_up(M, 8)
    if Mp != M:
        a16 = jnp.pad(a16, ((0, Mp - M), (0, 0)))
    tm = _pick_tile(Mp, 512)

    if N <= 128:                      # full-N block: no wasted MXU columns / pad copy
        Np, tn = N, N
    else:
        Np = _round_up(N, 128)
        if Np != N:
            b16 = jnp.pad(b16, ((0, 0), (0, Np - N)))
        tn = 256 if Np % 256 == 0 else 128

    if K <= 512:                      # single K block -> skip accumulator path
        out = pl.pallas_call(
            _matmul_kernel_single_k,
            out_shape=jax.ShapeDtypeStruct((Mp, Np), out_dtype),
            grid=(Mp // tm, Np // tn),
            in_specs=[pl.BlockSpec((tm, K), lambda i, j: (i, 0)),
                      pl.BlockSpec((K, tn), lambda i, j: (0, j))],
            out_specs=pl.BlockSpec((tm, tn), lambda i, j: (i, j)),
            compiler_params=pltpu.CompilerParams(
                dimension_semantics=("parallel", "parallel"),
                vmem_limit_bytes=_VMEM_LIMIT),
        )(a16, b16)
    else:
        tk = 512
        Kp = _round_up(K, tk)
        if Kp != K:
            a16 = jnp.pad(a16, ((0, 0), (0, Kp - K)))
            b16 = jnp.pad(b16, ((0, Kp - K), (0, 0)))
        out = pl.pallas_call(
            _matmul_kernel_multi_k,
            out_shape=jax.ShapeDtypeStruct((Mp, Np), out_dtype),
            grid=(Mp // tm, Np // tn, Kp // tk),
            in_specs=[pl.BlockSpec((tm, tk), lambda i, j, k: (i, k)),
                      pl.BlockSpec((tk, tn), lambda i, j, k: (k, j))],
            out_specs=pl.BlockSpec((tm, tn), lambda i, j, k: (i, j)),
            scratch_shapes=[pltpu.VMEM((tm, tn), jnp.float32)],
            compiler_params=pltpu.CompilerParams(
                dimension_semantics=("parallel", "parallel", "arbitrary"),
                vmem_limit_bytes=_VMEM_LIMIT),
        )(a16, b16)
    return out[:M, :N]


# --------------------------------------------------------------------------- #
# Depthwise 3x3x3 conv (padding=1, groups=C) + SiLU, channels-last, lane-dense
# --------------------------------------------------------------------------- #

def dwconv3d_silu(x, w27, bias):
    """x: (B, D, W, H, C); w27: (27, C) with row index kd*9 + kw*3 + kh
    (spatial kernel dims ordered like the (B, C, D, W, H) tensor this module
    feeds nn.Conv3d); bias: (1, C)."""
    Bn, Dd, Wd, Hd, C = x.shape
    HC = Hd * C
    xp = jnp.pad(x, ((0, 0), (1, 1), (1, 1), (1, 1), (0, 0)))
    xp = xp.reshape(Bn, Dd + 2, Wd + 2, (Hd + 2) * C)   # flatten (H, C) into lanes
    w_t = jnp.tile(w27, (1, Hd))                         # (27, H*C)
    b_t = jnp.tile(bias, (1, Hd))                        # (1,  H*C)

    def kernel(xp_ref, w_ref, b_ref, o_ref):
        w = w_ref[...]                                   # (27, H*C), loaded once
        # hoist the kh lane-shift: 3 pre-shifted views instead of 27 lane slices
        xh = [xp_ref[0, :, :, kh * C:kh * C + HC] for kh in range(3)]
        acc = jnp.zeros((Dd, Wd, HC), jnp.float32)
        for kd in range(3):
            for kw in range(3):
                for kh in range(3):
                    tap = kd * 9 + kw * 3 + kh
                    patch = xh[kh][kd:kd + Dd, kw:kw + Wd, :]
                    acc = acc + patch * w[tap][None, None, :]
        acc = acc + b_ref[...][None]
        o_ref[0] = acc * jax.nn.sigmoid(acc)             # fused SiLU

    out = pl.pallas_call(
        kernel,
        out_shape=jax.ShapeDtypeStruct((Bn, Dd, Wd, HC), jnp.float32),
        grid=(Bn,),
        in_specs=[pl.BlockSpec((1, Dd + 2, Wd + 2, (Hd + 2) * C),
                               lambda b: (b, 0, 0, 0)),
                  pl.BlockSpec((27, HC), lambda b: (0, 0)),
                  pl.BlockSpec((1, HC), lambda b: (0, 0))],
        out_specs=pl.BlockSpec((1, Dd, Wd, HC), lambda b: (b, 0, 0, 0)),
        compiler_params=pltpu.CompilerParams(
            dimension_semantics=("parallel",),
            vmem_limit_bytes=_VMEM_LIMIT),
    )(xp, w_t, b_t)
    # TODO(synk): for production volumes on v7x (64 MiB VMEM), tile D/W with a
    #             halo (manual make_async_copy) instead of staging the full slab.
    return out.reshape(Bn, Dd, Wd, Hd, C)


# --------------------------------------------------------------------------- #
# Sequential selective scan over the 8*L sequence (Mamba selective_scan_fn)
# --------------------------------------------------------------------------- #

def _softplus(v):
    # matches F.softplus (threshold 20)
    return jnp.where(v > 20.0, v, jnp.log1p(jnp.exp(jnp.minimum(v, 20.0))))


def selective_scan_seq(u, dt, Bmat, Cmat, A, Dvec, dt_bias, *, keep_last,
                       max_chunk=256):
    """u, dt: (B, Ltot, Cd); Bmat, Cmat: (B, Ltot, N); A: (Cd, N);
    Dvec, dt_bias: (1, Cd).  One long scan (state carried across chunks),
    returning ONLY the last `keep_last` timesteps: (B, keep_last, Cd) f32."""
    Bn, Ltot, Cd = u.shape
    N = A.shape[1]
    NC = N * Cd

    # chunk length: multiple of 8 dividing both keep_last and Ltot
    Tc = 0
    for cand in range(8, min(keep_last, max_chunk) + 1, 8):
        if keep_last % cand == 0 and Ltot % cand == 0:
            Tc = cand
    if Tc == 0:
        Tc = keep_last
    assert Ltot % Tc == 0 and keep_last % Tc == 0 and Tc % 8 == 0
    Nc = Ltot // Tc
    store_from = (Ltot - keep_last) // Tc   # first chunk whose output is kept

    # lane-dense flat state layout: flat index = n*Cd + c
    A_flat = A.T.reshape(1, NC).astype(jnp.float32)               # A[c, n] at n*Cd+c
    E_rep = jnp.tile(jnp.eye(Cd, dtype=jnp.float32), (1, N))      # (Cd, NC): replicate c
    E_bc = jnp.repeat(jnp.eye(N, dtype=jnp.float32), Cd, axis=1)  # (N, NC): replicate n
    Rmat = E_rep.T                                                # (NC, Cd): sum over n

    def kernel(u_ref, dt_ref, b_ref, c_ref, a_ref, erep_ref, ebc_ref, r_ref,
               d_ref, bias_ref, o_ref, state_ref, dA_ref, work_ref):
        t_chunk = pl.program_id(1)

        @pl.when(t_chunk == 0)
        def _():
            state_ref[...] = jnp.zeros_like(state_ref)

        u_c = u_ref[0]                                    # (Tc, Cd)
        delta = _softplus(dt_ref[0] + bias_ref[...])      # (Tc, Cd)

        # ---- bulk lane-dense precompute (one-hot MXU matmuls give exact
        #      replication into the flat (Tc, N*Cd) layout)
        delta_rep = jnp.dot(delta, erep_ref[...],
                            preferred_element_type=jnp.float32)    # (Tc, NC)
        dA_ref[...] = jnp.exp(delta_rep * a_ref[...])               # exp(delta*A)
        du_rep = jnp.dot(delta * u_c, erep_ref[...],
                         preferred_element_type=jnp.float32)        # (Tc, NC)
        b_rep = jnp.dot(b_ref[0], ebc_ref[...],
                        preferred_element_type=jnp.float32)         # (Tc, NC)
        work_ref[...] = du_rep * b_rep                               # dB*u

        # ---- serial recurrence; 8 rows per loop step with aligned block IO
        def body(i, st):
            off = pl.multiple_of(i * 8, 8)
            a_blk = dA_ref[pl.ds(off, 8), :]              # (8, NC)
            b_blk = work_ref[pl.ds(off, 8), :]            # (8, NC)
            rows = []
            for r in range(8):                            # unrolled 8-step chain
                st = a_blk[r:r + 1, :] * st + b_blk[r:r + 1, :]
                rows.append(st)
            work_ref[pl.ds(off, 8), :] = jnp.concatenate(rows, axis=0)
            return st

        st = lax.fori_loop(0, Tc // 8, body, state_ref[...])
        state_ref[...] = st                               # carry across chunks

        # ---- deferred C-reduction + single store, only for kept chunks
        @pl.when(t_chunk >= store_from)
        def _():
            c_rep = jnp.dot(c_ref[0], ebc_ref[...],
                            preferred_element_type=jnp.float32)     # (Tc, NC)
            y = jnp.dot(work_ref[...] * c_rep, r_ref[...],
                        preferred_element_type=jnp.float32)         # (Tc, Cd)
            o_ref[0] = y + d_ref[...] * u_c

    # TODO(synk): on v7x, add a leading channel-parallel grid axis (split the
    #             flat n*Cd state into >=2 blocks) so both TensorCores work the
    #             serial scan even at batch=1.
    return pl.pallas_call(
        kernel,
        out_shape=jax.ShapeDtypeStruct((Bn, keep_last, Cd), jnp.float32),
        grid=(Bn, Nc),
        in_specs=[
            pl.BlockSpec((1, Tc, Cd), lambda b, t: (b, t, 0)),   # u
            pl.BlockSpec((1, Tc, Cd), lambda b, t: (b, t, 0)),   # dt (pre-bias)
            pl.BlockSpec((1, Tc, N), lambda b, t: (b, t, 0)),    # B
            pl.BlockSpec((1, Tc, N), lambda b, t: (b, t, 0)),    # C
            pl.BlockSpec((1, NC), lambda b, t: (0, 0)),          # A (flat)
            pl.BlockSpec((Cd, NC), lambda b, t: (0, 0)),         # E_rep
            pl.BlockSpec((N, NC), lambda b, t: (0, 0)),          # E_bc
            pl.BlockSpec((NC, Cd), lambda b, t: (0, 0)),         # reduce matrix
            pl.BlockSpec((1, Cd), lambda b, t: (0, 0)),          # D
            pl.BlockSpec((1, Cd), lambda b, t: (0, 0)),          # delta bias
        ],
        # clamp: skipped chunks keep revisiting block 0 -> no HBM writeback for
        # the 7/8 of chunks whose outputs are discarded; block 0 is fully
        # rewritten at t == store_from before its index ever advances.
        out_specs=pl.BlockSpec(
            (1, Tc, Cd), lambda b, t: (b, jnp.maximum(t - store_from, 0), 0)),
        scratch_shapes=[
            pltpu.VMEM((1, NC), jnp.float32),     # carried SSM state (lane-dense)
            pltpu.VMEM((Tc, NC), jnp.float32),    # dA
            pltpu.VMEM((Tc, NC), jnp.float32),    # dB*u, then per-step states
        ],
        compiler_params=pltpu.CompilerParams(
            dimension_semantics=("parallel", "arbitrary"),
            vmem_limit_bytes=_VMEM_LIMIT),
    )(u.astype(jnp.float32), dt.astype(jnp.float32),
      Bmat.astype(jnp.float32), Cmat.astype(jnp.float32),
      A_flat, E_rep, E_bc, Rmat,
      Dvec.astype(jnp.float32), dt_bias.astype(jnp.float32))


# --------------------------------------------------------------------------- #
# Fused LayerNorm(d_inner) + SiLU(z) gate + out_proj matmul
# --------------------------------------------------------------------------- #

def ln_gate_out_proj(y, z, gamma, beta, w, eps=1e-5):
    """out = LayerNorm(y) * SiLU(z) @ w.   y, z: (M, C); w: (C, Nout)."""
    M, C = y.shape
    Nout = w.shape[1]
    Mp = _round_up(M, 8)
    if Mp != M:
        y = jnp.pad(y, ((0, Mp - M), (0, 0)))
        z = jnp.pad(z, ((0, Mp - M), (0, 0)))
    tm = _pick_tile(Mp, 256)

    def kernel(y_ref, z_ref, g_ref, b_ref, w_ref, o_ref):
        yv = y_ref[...]
        mu = jnp.mean(yv, axis=-1, keepdims=True)
        var = jnp.mean(jnp.square(yv - mu), axis=-1, keepdims=True)
        yn = (yv - mu) * lax.rsqrt(var + eps) * g_ref[...] + b_ref[...]
        zv = z_ref[...]
        a = yn * zv * jax.nn.sigmoid(zv)
        o_ref[...] = jnp.dot(a, w_ref[...],
                             preferred_element_type=jnp.float32).astype(o_ref.dtype)

    out = pl.pallas_call(
        kernel,
        out_shape=jax.ShapeDtypeStruct((Mp, Nout), jnp.float32),
        grid=(Mp // tm,),
        in_specs=[pl.BlockSpec((tm, C), lambda i: (i, 0)),
                  pl.BlockSpec((tm, C), lambda i: (i, 0)),
                  pl.BlockSpec((1, C), lambda i: (0, 0)),
                  pl.BlockSpec((1, C), lambda i: (0, 0)),
                  pl.BlockSpec((C, Nout), lambda i: (0, 0))],
        out_specs=pl.BlockSpec((tm, Nout), lambda i: (i, 0)),
        compiler_params=pltpu.CompilerParams(
            dimension_semantics=("parallel",),
            vmem_limit_bytes=_VMEM_LIMIT),
    )(y.astype(jnp.float32), z.astype(jnp.float32), gamma, beta,
      w.astype(jnp.float32))
    return out[:M]


# --------------------------------------------------------------------------- #
# Parameters & forward pass
# --------------------------------------------------------------------------- #

def init_params(key, d_model=32, d_state=16, d_conv=3, expand=1,
                dt_min=0.001, dt_max=0.1, dt_init_floor=1e-4):
    d_inner = int(expand * d_model)
    dt_rank = math.ceil(d_model / 16)
    ks = jax.random.split(key, 7)
    p = {}

    lim = 1.0 / math.sqrt(d_model)
    p["in_proj_w"] = jax.random.uniform(ks[0], (2 * d_inner, d_model),
                                        jnp.float32, -lim, lim)

    lim = 1.0 / math.sqrt(d_conv ** 3)
    p["conv_w"] = jax.random.uniform(ks[1], (d_inner, 1, d_conv, d_conv, d_conv),
                                     jnp.float32, -lim, lim)
    p["conv_b"] = jax.random.uniform(ks[2], (d_inner,), jnp.float32, -lim, lim)

    lim = 1.0 / math.sqrt(d_inner)
    p["x_proj_w"] = jax.random.uniform(ks[3], (dt_rank + 2 * d_state, d_inner),
                                       jnp.float32, -lim, lim)

    std = dt_rank ** -0.5
    p["dt_w"] = jax.random.uniform(ks[4], (d_inner, dt_rank),
                                   jnp.float32, -std, std)

    u = jax.random.uniform(ks[5], (d_inner,), jnp.float32)
    dt = jnp.exp(u * (math.log(dt_max) - math.log(dt_min)) + math.log(dt_min))
    dt = jnp.maximum(dt, dt_init_floor)
    p["dt_b"] = dt + jnp.log(-jnp.expm1(-dt))

    A_row = jnp.log(jnp.arange(1, d_state + 1, dtype=jnp.float32))
    p["A_logs"] = jnp.tile(A_row[None, :], (d_inner, 1))     # (d_inner, N)
    p["Ds"] = jnp.ones((d_inner,), jnp.float32)

    p["ln_g"] = jnp.ones((d_inner,), jnp.float32)
    p["ln_b"] = jnp.zeros((d_inner,), jnp.float32)

    lim = 1.0 / math.sqrt(d_inner)
    p["out_proj_w"] = jax.random.uniform(ks[6], (d_model, d_inner),
                                         jnp.float32, -lim, lim)

    cfg = dict(d_model=d_model, d_inner=d_inner, d_state=d_state,
               dt_rank=dt_rank)
    return p, cfg


def ss3d_forward(p, cfg, x):
    """x: (B, D, W, H, d_model) channels-last (matches the PyTorch forward)."""
    Bn, Dd, Wd, Hd, Cm = x.shape
    d_inner, d_state, dt_rank = cfg["d_inner"], cfg["d_state"], cfg["dt_rank"]
    L = Dd * Wd * Hd

    # ---- in_proj: one matmul to 2*d_inner, split x / z ----------------------
    xz = pallas_matmul(x.reshape(Bn * L, Cm), p["in_proj_w"].T)
    xz = xz.reshape(Bn, Dd, Wd, Hd, 2 * d_inner)
    x_in, z = xz[..., :d_inner], xz[..., d_inner:]

    # ---- depthwise conv3d + SiLU --------------------------------------------
    w27 = p["conv_w"].reshape(d_inner, 27).T          # (27, C)
    xc = dwconv3d_silu(x_in, w27, p["conv_b"].reshape(1, d_inner))

    # ---- project BEFORE the direction build (per-token, so it commutes) -----
    Wx = p["x_proj_w"]                              # (r + 2N, Cd)
    Wdt_fused = jnp.dot(p["dt_w"], Wx[:dt_rank])    # (Cd, Cd): dt_proj o x_proj[:r]
    W_all = jnp.concatenate([Wdt_fused, Wx[dt_rank:]], axis=0)   # (Cd + 2N, Cd)
    proj = pallas_matmul(xc.reshape(Bn * L, d_inner), W_all.T)   # L rows, not 8L
    CT = 2 * d_inner + 2 * d_state
    comb = jnp.concatenate(
        [xc, proj.reshape(Bn, Dd, Wd, Hd, d_inner + 2 * d_state)], axis=-1)

    # ---- 8-direction *sequential* layout (time-major), built once -----------
    c1 = jnp.transpose(comb, (0, 1, 3, 2, 4)).reshape(Bn, L, CT)   # (D, H, W)
    c3 = jnp.transpose(comb, (0, 3, 2, 1, 4)).reshape(Bn, L, CT)   # (H, W, D)
    c5 = jnp.transpose(comb, (0, 2, 1, 3, 4)).reshape(Bn, L, CT)   # (W, D, H)
    c7 = comb.reshape(Bn, L, CT)                                   # (D, W, H)
    seq = jnp.concatenate(
        [c1, jnp.flip(c1, 1), c3, jnp.flip(c3, 1),
         c5, jnp.flip(c5, 1), c7, jnp.flip(c7, 1)], axis=1)        # (B, 8L, CT)
    xs = seq[..., :d_inner]
    dts = seq[..., d_inner:2 * d_inner]
    Bmat = seq[..., 2 * d_inner:2 * d_inner + d_state]
    Cmat = seq[..., 2 * d_inner + d_state:]

    # ---- selective scan over the whole length-8L sequence; keep last L ------
    A = -jnp.exp(p["A_logs"])                       # (Cd, N)
    scan_out = selective_scan_seq(
        xs, dts, Bmat, Cmat, A,
        p["Ds"].reshape(1, d_inner), p["dt_b"].reshape(1, d_inner),
        keep_last=L, max_chunk=256)                 # (B, L, Cd)

    # ---- "LastDirect": reshape the kept steps straight back to the volume ---
    y = scan_out.reshape(Bn, Dd, Wd, Hd, d_inner)

    # ---- fused LayerNorm + SiLU(z) gate + out_proj ---------------------------
    out = ln_gate_out_proj(y.reshape(Bn * L, d_inner), z.reshape(Bn * L, d_inner),
                           p["ln_g"].reshape(1, d_inner),
                           p["ln_b"].reshape(1, d_inner),
                           p["out_proj_w"].T)
    # dropout=0.0 in the module -> identity
    return out.reshape(Bn, Dd, Wd, Hd, cfg["d_model"])


# ----------------------------------- main ----------------------------------- #

if __name__ == "__main__":
    key = jax.random.PRNGKey(0)
    kp, kx = jax.random.split(key)

    params, cfg = init_params(kp, d_model=32)     # d_inner=32, N=16, dt_rank=2
    B, Dd, Wd, Hd = 2, 4, 4, 4                    # L=64, scan length = 8*L = 512
    x = jax.random.normal(kx, (B, Dd, Wd, Hd, cfg["d_model"]), jnp.float32)

    fwd = jax.jit(lambda pp, xx: ss3d_forward(pp, cfg, xx))
    out = fwd(params, x)
    jax.block_until_ready(out)

    assert out.shape == (B, Dd, Wd, Hd, cfg["d_model"])
    assert out.dtype == jnp.float32
    assert bool(jnp.all(jnp.isfinite(out)))
    print("KERNEL_OK")
</pallas_src>

<mosaic_0001>
module attributes {stable_mosaic.version = 11 : i64} {
  func.func @_matmul_kernel_single_k(%arg0: i32, %arg1: i32, %arg2: memref<128x32xbf16, #tpu.memory_space<vmem>>, %arg3: memref<32x64xbf16, #tpu.memory_space<vmem>>, %arg4: memref<128x64xf32, #tpu.memory_space<vmem>>) attributes {dimension_semantics = [#tpu.dimension_semantics<parallel>, #tpu.dimension_semantics<parallel>], iteration_bounds = array<i64: 1, 1>, scalar_prefetch = 0 : i64, scratch_operands = 0 : i64, tpu.core_type = #tpu.core_type<tc>, window_params = [{transform_indices = @transform_0, window_bounds = array<i64: 128, 32>}, {transform_indices = @transform_1, window_bounds = array<i64: 32, 64>}, {transform_indices = @transform_2, window_bounds = array<i64: 128, 64>}]} {
    %c0 = arith.constant 0 : index
    %c0_0 = arith.constant 0 : index
    %0 = vector.load %arg2[%c0, %c0_0] : memref<128x32xbf16, #tpu.memory_space<vmem>>, vector<128x32xbf16>
    %c0_1 = arith.constant 0 : index
    %c0_2 = arith.constant 0 : index
    %1 = vector.load %arg3[%c0_1, %c0_2] : memref<32x64xbf16, #tpu.memory_space<vmem>>, vector<32x64xbf16>
    %cst = arith.constant dense<0.000000e+00> : vector<128x64xf32>
    %2 = tpu.matmul %0, %1, %cst {dimension_numbers = #tpu.dot_dimension_numbers<[1], [0], [0], [1], [0, 0, 1, 1], [], []>} : vector<128x32xbf16>, vector<32x64xbf16>, vector<128x64xf32> -> vector<128x64xf32>
    %c0_3 = arith.constant 0 : index
    %c0_4 = arith.constant 0 : index
    %3 = vector.load %arg4[%c0_3, %c0_4] : memref<128x64xf32, #tpu.memory_space<vmem>>, vector<128x64xf32>
    tpu.vector_store %arg4[%c0_3, %c0_4], %2 {strides = array<i32>} : memref<128x64xf32, #tpu.memory_space<vmem>>, vector<128x64xf32>,
    return
  }
  func.func @transform_0(%arg0: i32, %arg1: i32) -> (i32, i32) {
    %c0_i32 = arith.constant 0 : i32
    %c0_i32_0 = arith.constant 0 : i32
    return %arg0, %c0_i32 : i32, i32
  }
  func.func @transform_1(%arg0: i32, %arg1: i32) -> (i32, i32) {
    %c0_i32 = arith.constant 0 : i32
    %c0_i32_0 = arith.constant 0 : i32
    return %c0_i32, %arg1 : i32, i32
  }
  func.func @transform_2(%arg0: i32, %arg1: i32) -> (i32, i32) {
    %c0_i32 = arith.constant 0 : i32
    return %arg0, %arg1 : i32, i32
  }
}

module attributes {stable_mosaic.version = 11 : i64} {
  func.func @kernel(%arg0: i32, %arg1: memref<1x6x6x192xf32, #tpu.memory_space<vmem>>, %arg2: memref<27x128xf32, #tpu.memory_space<vmem>>, %arg3: memref<1x128xf32, #tpu.memory_space<vmem>>, %arg4: memref<1x4x4x128xf32, #tpu.memory_space<vmem>>) attributes {dimension_semantics = [#tpu.dimension_semantics<parallel>], iteration_bounds = array<i64: 2>, scalar_prefetch = 0 : i64, scratch_operands = 0 : i64, tpu.core_type = #tpu.core_type<tc>, window_params = [{transform_indices = @transform_0, window_bounds = array<i64: 1, 6, 6, 192>}, {pipeline_mode = #tpu.pipeline_mode<synchronous>, transform_indices = @transform_1, window_bounds = array<i64: 27, 128>}, {pipeline_mode = #tpu.pipeline_mode<synchronous>, transform_indices = @transform_2, window_bounds = array<i64: 1, 128>}, {transform_indices = @transform_3, window_bounds = array<i64: 1, 4, 4, 128>}]} {
    %c0 = arith.constant 0 : index
    %c0_0 = arith.constant 0 : index
    %0 = vector.load %arg2[%c0, %c0_0] : memref<27x128xf32, #tpu.memory_space<vmem>>, vector<27x128xf32>
    %c0_1 = arith.constant 0 : index
    %c0_2 = arith.constant 0 : index
    %c0_3 = arith.constant 0 : index
    %c0_4 = arith.constant 0 : index
    %1 = vector.load %arg1[%c0_1, %c0_2, %c0_3, %c0_4] : memref<1x6x6x192xf32, #tpu.memory_space<vmem>>, vector<1x6x6x128xf32>
    %2 = vector.shape_cast %1 : vector<1x6x6x128xf32> to vector<6x6x128xf32>
    %c0_5 = arith.constant 0 : index
    %c0_6 = arith.constant 0 : index
    %c0_7 = arith.constant 0 : index
    %c32 = arith.constant 32 : index
    %3 = vector.load %arg1[%c0_5, %c0_6, %c0_7, %c32] : memref<1x6x6x192xf32, #tpu.memory_space<vmem>>, vector<1x6x6x128xf32>
    %4 = vector.shape_cast %3 : vector<1x6x6x128xf32> to vector<6x6x128xf32>
    %c0_8 = arith.constant 0 : index
    %c0_9 = arith.constant 0 : index
    %c0_10 = arith.constant 0 : index
    %c64 = arith.constant 64 : index
    %5 = vector.load %arg1[%c0_8, %c0_9, %c0_10, %c64] : memref<1x6x6x192xf32, #tpu.memory_space<vmem>>, vector<1x6x6x128xf32>
    %6 = vector.shape_cast %5 : vector<1x6x6x128xf32> to vector<6x6x128xf32>
    %cst = arith.constant 0.000000e+00 : f32
    %7 = vector.broadcast %cst : f32 to vector<4x4x128xf32>
    %8 = vector.extract_strided_slice %2 {offsets = [0, 0, 0], sizes = [4, 4, 128], strides = [1, 1, 1]} : vector<6x6x128xf32> to vector<4x4x128xf32>
    %9 = vector.extract_strided_slice %0 {offsets = [0, 0], sizes = [1, 128], strides = [1, 1]} : vector<27x128xf32> to vector<1x128xf32>
    %10 = vector.shape_cast %9 : vector<1x128xf32> to vector<128xf32>
    %11 = vector.shape_cast %10 : vector<128xf32> to vector<1x1x128xf32>
    %12 = vector.broadcast %11 : vector<1x1x128xf32> to vector<4x4x128xf32>
    %13 = arith.mulf %8, %12 : vector<4x4x128xf32>
    %14 = arith.addf %7, %13 : vector<4x4x128xf32>
    %15 = vector.extract_strided_slice %4 {offsets = [0, 0, 0], sizes = [4, 4, 128], strides = [1, 1, 1]} : vector<6x6x128xf32> to vector<4x4x128xf32>
    %16 = vector.extract_strided_slice %0 {offsets = [1, 0], sizes = [1, 128], strides = [1, 1]} : vector<27x128xf32> to vector<1x128xf32>
    %17 = vector.shape_cast %16 : vector<1x128xf32> to vector<128xf32>
    %18 = vector.shape_cast %17 : vector<128xf32> to vector<1x1x128xf32>
    %19 = vector.broadcast %18 : vector<1x1x128xf32> to vector<4x4x128xf32>
    %20 = arith.mulf %15, %19 : vector<4x4x128xf32>
    %21 = arith.addf %14, %20 : vector<4x4x128xf32>
    %22 = vector.extract_strided_slice %6 {offsets = [0, 0, 0], sizes = [4, 4, 128], strides = [1, 1, 1]} : vector<6x6x128xf32> to vector<4x4x128xf32>
    %23 = vector.extract_strided_slice %0 {offsets = [2, 0], sizes = [1, 128], strides = [1, 1]} : vector<27x128xf32> to vector<1x128xf32>
    %24 = vector.shape_cast %23 : vector<1x128xf32> to vector<128xf32>
    %25 = vector.shape_cast %24 : vector<128xf32> to vector<1x1x128xf32>
    %26 = vector.broadcast %25 : vector<1x1x128xf32> to vector<4x4x128xf32>
    %27 = arith.mulf %22, %26 : vector<4x4x128xf32>
    %28 = arith.addf %21, %27 : vector<4x4x128xf32>
    %29 = vector.extract_strided_slice %2 {offsets = [0, 1, 0], sizes = [4, 4, 128], strides = [1, 1, 1]} : vector<6x6x128xf32> to vector<4x4x128xf32>
    %30 = vector.extract_strided_slice %0 {offsets = [3, 0], sizes = [1, 128], strides = [1, 1]} : vector<27x128xf32> to vector<1x128xf32>
    %31 = vector.shape_cast %30 : vector<1x128xf32> to vector<128xf32>
    %32 = vector.shape_cast %31 : vector<128xf32> to vector<1x1x128xf32>
    %33 = vector.broadcast %32 : vector<1x1x128xf32> to vector<4x4x128xf32>
    %34 = arith.mulf %29, %33 : vector<4x4x128xf32>
    %35 = arith.addf %28, %34 : vector<4x4x128xf32>
    %36 = vector.extract_strided_slice %4 {offsets = [0, 1, 0], sizes = [4, 4, 128], strides = [1, 1, 1]} : vector<6x6x128xf32> to vector<4x4x128xf32>
    %37 = vector.extract_strided_slice %0 {offsets = [4, 0], sizes = [1, 128], strides = [1, 1]} : vector<27x128xf32> to vector<1x128xf32>
    %38 = vector.shape_cast %37 : vector<1x128xf32> to vector<128xf32>
    %39 = vector.shape_cast %38 : vector<128xf32> to vector<1x1x128xf32>
    %40 = vector.broadcast %39 : vector<1x1x128xf32> to vector<4x4x128xf32>
    %41 = arith.mulf %36, %40 : vector<4x4x128xf32>
    %42 = arith.addf %35, %41 : vector<4x4x128xf32>
    %43 = vector.extract_strided_slice %6 {offsets = [0, 1, 0], sizes = [4, 4, 128], strides = [1, 1, 1]} : vector<6x6x128xf32> to vector<4x4x128xf32>
    %44 = vector.extract_strided_slice %0 {offsets = [5, 0], sizes = [1, 128], strides = [1, 1]} : vector<27x128xf32> to vector<1x128xf32>
    %45 = vector.shape_cast %44 : vector<1x128xf32> to vector<128xf32>
    %46 = vector.shape_cast %45 : vector<128xf32> to vector<1x1x128xf32>
    %47 = vector.broadcast %46 : vector<1x1x128xf32> to vector<4x4x128xf32>
    %48 = arith.mulf %43, %47 : vector<4x4x128xf32>
    %49 = arith.addf %42, %48 : vector<4x4x128xf32>
    %50 = vector.extract_strided_slice %2 {offsets = [0, 2, 0], sizes = [4, 4, 128], strides = [1, 1, 1]} : vector<6x6x128xf32> to vector<4x4x128xf32>
    %51 = vector.extract_strided_slice %0 {offsets = [6, 0], sizes = [1, 128], strides = [1, 1]} : vector<27x128xf32> to vector<1x128xf32>
    %52 = vector.shape_cast %51 : vector<1x128xf32> to vector<128xf32>
    %53 = vector.shape_cast %52 : vector<128xf32> to vector<1x1x128xf32>
    %54 = vector.broadcast %53 : vector<1x1x128xf32> to vector<4x4x128xf32>
    %55 = arith.mulf %50, %54 : vector<4x4x128xf32>
    %56 = arith.addf %49, %55 : vector<4x4x128xf32>
    %57 = vector.extract_strided_slice %4 {offsets = [0, 2, 0], sizes = [4, 4, 128], strides = [1, 1, 1]} : vector<6x6x128xf32> to vector<4x4x128xf32>
    %58 = vector.extract_strided_slice %0 {offsets = [7, 0], sizes = [1, 128], strides = [1, 1]} : vector<27x128xf32> to vector<1x128xf32>
    %59 = vector.shape_cast %58 : vector<1x128xf32> to vector<128xf32>
    %60 = vector.shape_cast %59 : vector<128xf32> to vector<1x1x128xf32>
    %61 = vector.broadcast %60 : vector<1x1x128xf32> to vector<4x4x128xf32>
    %62 = arith.mulf %57, %61 : vector<4x4x128xf32>
    %63 = arith.addf %56, %62 : vector<4x4x128xf32>
    %64 = vector.extract_strided_slice %6 {offsets = [0, 2, 0], sizes = [4, 4, 128], strides = [1, 1, 1]} : vector<6x6x128xf32> to vector<4x4x128xf32>
    %65 = vector.extract_strided_slice %0 {offsets = [8, 0], sizes = [1, 128], strides = [1, 1]} : vector<27x128xf32> to vector<1x128xf32>
    %66 = vector.shape_cast %65 : vector<1x128xf32> to vector<128xf32>
    %67 = vector.shape_cast %66 : vector<128xf32> to vector<1x1x128xf32>
    %68 = vector.broadcast %67 : vector<1x1x128xf32> to vector<4x4x128xf32>
    %69 = arith.mulf %64, %68 : vector<4x4x128xf32>
    %70 = arith.addf %63, %69 : vector<4x4x128xf32>
    %71 = vector.extract_strided_slice %2 {offsets = [1, 0, 0], sizes = [4, 4, 128], strides = [1, 1, 1]} : vector<6x6x128xf32> to vector<4x4x128xf32>
    %72 = vector.extract_strided_slice %0 {offsets = [9, 0], sizes = [1, 128], strides = [1, 1]} : vector<27x128xf32> to vector<1x128xf32>
    %73 = vector.shape_cast %72 : vector<1x128xf32> to vector<128xf32>
    %74 = vector.shape_cast %73 : vector<128xf32> to vector<1x1x128xf32>
    %75 = vector.broadcast %74 : vector<1x1x128xf32> to vector<4x4x128xf32>
    %76 = arith.mulf %71, %75 : vector<4x4x128xf32>
    %77 = arith.addf %70, %76 : vector<4x4x128xf32>
    %78 = vector.extract_strided_slice %4 {offsets = [1, 0, 0], sizes = [4, 4, 128], strides = [1, 1, 1]} : vector<6x6x128xf32> to vector<4x4x128xf32>
    %79 = vector.extract_strided_slice %0 {offsets = [10, 0], sizes = [1, 128], strides = [1, 1]} : vector<27x128xf32> to vector<1x128xf32>
    %80 = vector.shape_cast %79 : vector<1x128xf32> to vector<128xf32>
    %81 = vector.shape_cast %80 : vector<128xf32> to vector<1x1x128xf32>
    %82 = vector.broadcast %81 : vector<1x1x128xf32> to vector<4x4x128xf32>
    %83 = arith.mulf %78, %82 : vector<4x4x128xf32>
    %84 = arith.addf %77, %83 : vector<4x4x128xf32>
    %85 = vector.extract_strided_slice %6 {offsets = [1, 0, 0], sizes = [4, 4, 128], strides = [1, 1, 1]} : vector<6x6x128xf32> to vector<4x4x128xf32>
    %86 = vector.extract_strided_slice %0 {offsets = [11, 0], sizes = [1, 128], strides = [1, 1]} : vector<27x128xf32> to vector<1x128xf32>
    %87 = vector.shape_cast %86 : vector<1x128xf32> to vector<128xf32>
    %88 = vector.shape_cast %87 : vector<128xf32> to vector<1x1x128xf32>
    %89 = vector.broadcast %88 : vector<1x1x128xf32> to vector<4x4x128xf32>
    %90 = arith.mulf %85, %89 : vector<4x4x128xf32>
    %91 = arith.addf %84, %90 : vector<4x4x128xf32>
    %92 = vector.extract_strided_slice %2 {offsets = [1, 1, 0], sizes = [4, 4, 128], strides = [1, 1, 1]} : vector<6x6x128xf32> to vector<4x4x128xf32>
    %93 = vector.extract_strided_slice %0 {offsets = [12, 0], sizes = [1, 128], strides = [1, 1]} : vector<27x128xf32> to vector<1x128xf32>
    %94 = vector.shape_cast %93 : vector<1x128xf32> to vector<128xf32>
    %95 = vector.shape_cast %94 : vector<128xf32> to vector<1x1x128xf32>
    %96 = vector.broadcast %95 : vector<1x1x128xf32> to vector<4x4x128xf32>
    %97 = arith.mulf %92, %96 : vector<4x4x128xf32>
    %98 = arith.addf %91, %97 : vector<4x4x128xf32>
    %99 = vector.extract_strided_slice %4 {offsets = [1, 1, 0], sizes = [4, 4, 128], strides = [1, 1, 1]} : vector<6x6x128xf32> to vector<4x4x128xf32>
    %100 = vector.extract_strided_slice %0 {offsets = [13, 0], sizes = [1, 128], strides = [1, 1]} : vector<27x128xf32> to vector<1x128xf32>
    %101 = vector.shape_cast %100 : vector<1x128xf32> to vector<128xf32>
    %102 = vector.shape_cast %101 : vector<128xf32> to vector<1x1x128xf32>
    %103 = vector.broadcast %102 : vector<1x1x128xf32> to vector<4x4x128xf32>
    %104 = arith.mulf %99, %103 : vector<4x4x128xf32>
    %105 = arith.addf %98, %104 : vector<4x4x128xf32>
    %106 = vector.extract_strided_slice %6 {offsets = [1, 1, 0], sizes = [4, 4, 128], strides = [1, 1, 1]} : vector<6x6x128xf32> to vector<4x4x128xf32>
    %107 = vector.extract_strided_slice %0 {offsets = [14, 0], sizes = [1, 128], strides = [1, 1]} : vector<27x128xf32> to vector<1x128xf32>
    %108 = vector.shape_cast %107 : vector<1x128xf32> to vector<128xf32>
    %109 = vector.shape_cast %108 : vector<128xf32> to vector<1x1x128xf32>
    %110 = vector.broadcast %109 : vector<1x1x128xf32> to vector<4x4x128xf32>
    %111 = arith.mulf %106, %110 : vector<4x4x128xf32>
    %112 = arith.addf %105, %111 : vector<4x4x128xf32>
    %113 = vector.extract_strided_slice %2 {offsets = [1, 2, 0], sizes = [4, 4, 128], strides = [1, 1, 1]} : vector<6x6x128xf32> to vector<4x4x128xf32>
    %114 = vector.extract_strided_slice %0 {offsets = [15, 0], sizes = [1, 128], strides = [1, 1]} : vector<27x128xf32> to vector<1x128xf32>
    %115 = vector.shape_cast %114 : vector<1x128xf32> to vector<128xf32>
    %116 = vector.shape_cast %115 : vector<128xf32> to vector<1x1x128xf32>
    %117 = vector.broadcast %116 : vector<1x1x128xf32> to vector<4x4x128xf32>
    %118 = arith.mulf %113, %117 : vector<4x4x128xf32>
    %119 = arith.addf %112, %118 : vector<4x4x128xf32>
    %120 = vector.extract_strided_slice %4 {offsets = [1, 2, 0], sizes = [4, 4, 128], strides = [1, 1, 1]} : vector<6x6x128xf32> to vector<4x4x128xf32>
    %121 = vector.extract_strided_slice %0 {offsets = [16, 0], sizes = [1, 128], strides = [1, 1]} : vector<27x128xf32> to vector<1x128xf32>
    %122 = vector.shape_cast %121 : vector<1x128xf32> to vector<128xf32>
    %123 = vector.shape_cast %122 : vector<128xf32> to vector<1x1x128xf32>
    %124 = vector.broadcast %123 : vector<1x1x128xf32> to vector<4x4x128xf32>
    %125 = arith.mulf %120, %124 : vector<4x4x128xf32>
    %126 = arith.addf %119, %125 : vector<4x4x128xf32>
    %127 = vector.extract_strided_slice %6 {offsets = [1, 2, 0], sizes = [4, 4, 128], strides = [1, 1, 1]} : vector<6x6x128xf32> to vector<4x4x128xf32>
    %128 = vector.extract_strided_slice %0 {offsets = [17, 0], sizes = [1, 128], strides = [1, 1]} : vector<27x128xf32> to vector<1x128xf32>
    %129 = vector.shape_cast %128 : vector<1x128xf32> to vector<128xf32>
    %130 = vector.shape_cast %129 : vector<128xf32> to vector<1x1x128xf32>
    %131 = vector.broadcast %130 : vector<1x1x128xf32> to vector<4x4x128xf32>
    %132 = arith.mulf %127, %131 : vector<4x4x128xf32>
    %133 = arith.addf %126, %132 : vector<4x4x128xf32>
    %134 = vector.extract_strided_slice %2 {offsets = [2, 0, 0], sizes = [4, 4, 128], strides = [1, 1, 1]} : vector<6x6x128xf32> to vector<4x4x128xf32>
    %135 = vector.extract_strided_slice %0 {offsets = [18, 0], sizes = [1, 128], strides = [1, 1]} : vector<27x128xf32> to vector<1x128xf32>
    %136 = vector.shape_cast %135 : vector<1x128xf32> to vector<128xf32>
    %137 = vector.shape_cast %136 : vector<128xf32> to vector<1x1x128xf32>
    %138 = vector.broadcast %137 : vector<1x1x128xf32> to vector<4x4x128xf32>
    %139 = arith.mulf %134, %138 : vector<4x4x128xf32>
    %140 = arith.addf %133, %139 : vector<4x4x128xf32>
    %141 = vector.extract_strided_slice %4 {offsets = [2, 0, 0], sizes = [4, 4, 128], strides = [1, 1, 1]} : vector<6x6x128xf32> to vector<4x4x128xf32>
    %142 = vector.extract_strided_slice %0 {offsets = [19, 0], sizes = [1, 128], strides = [1, 1]} : vector<27x128xf32> to vector<1x128xf32>
    %143 = vector.shape_cast %142 : vector<1x128xf32> to vector<128xf32>
    %144 = vector.shape_cast %143 : vector<128xf32> to vector<1x1x128xf32>
    %145 = vector.broadcast %144 : vector<1x1x128xf32> to vector<4x4x128xf32>
    %146 = arith.mulf %141, %145 : vector<4x4x128xf32>
    %147 = arith.addf %140, %146 : vector<4x4x128xf32>
    %148 = vector.extract_strided_slice %6 {offsets = [2, 0, 0], sizes = [4, 4, 128], strides = [1, 1, 1]} : vector<6x6x128xf32> to vector<4x4x128xf32>
    %149 = vector.extract_strided_slice %0 {offsets = [20, 0], sizes = [1, 128], strides = [1, 1]} : vector<27x128xf32> to vector<1x128xf32>
    %150 = vector.shape_cast %149 : vector<1x128xf32> to vector<128xf32>
    %151 = vector.shape_cast %150 : vector<128xf32> to vector<1x1x128xf32>
    %152 = vector.broadcast %151 : vector<1x1x128xf32> to vector<4x4x128xf32>
    %153 = arith.mulf %148, %152 : vector<4x4x128xf32>
    %154 = arith.addf %147, %153 : vector<4x4x128xf32>
    %155 = vector.extract_strided_slice %2 {offsets = [2, 1, 0], sizes = [4, 4, 128], strides = [1, 1, 1]} : vector<6x6x128xf32> to vector<4x4x128xf32>
    %156 = vector.extract_strided_slice %0 {offsets = [21, 0], sizes = [1, 128], strides = [1, 1]} : vector<27x128xf32> to vector<1x128xf32>
    %157 = vector.shape_cast %156 : vector<1x128xf32> to vector<128xf32>
    %158 = vector.shape_cast %157 : vector<128xf32> to vector<1x1x128xf32>
    %159 = vector.broadcast %158 : vector<1x1x128xf32> to vector<4x4x128xf32>
    %160 = arith.mulf %155, %159 : vector<4x4x128xf32>
    %161 = arith.addf %154, %160 : vector<4x4x128xf32>
    %162 = vector.extract_strided_slice %4 {offsets = [2, 1, 0], sizes = [4, 4, 128], strides = [1, 1, 1]} : vector<6x6x128xf32> to vector<4x4x128xf32>
    %163 = vector.extract_strided_slice %0 {offsets = [22, 0], sizes = [1, 128], strides = [1, 1]} : vector<27x128xf32> to vector<1x128xf32>
    %164 = vector.shape_cast %163 : vector<1x128xf32> to vector<128xf32>
    %165 = vector.shape_cast %164 : vector<128xf32> to vector<1x1x128xf32>
    %166 = vector.broadcast %165 : vector<1x1x128xf32> to vector<4x4x128xf32>
    %167 = arith.mulf %162, %166 : vector<4x4x128xf32>
    %168 = arith.addf %161, %167 : vector<4x4x128xf32>
    %169 = vector.extract_strided_slice %6 {offsets = [2, 1, 0], sizes = [4, 4, 128], strides = [1, 1, 1]} : vector<6x6x128xf32> to vector<4x4x128xf32>
    %170 = vector.extract_strided_slice %0 {offsets = [23, 0], sizes = [1, 128], strides = [1, 1]} : vector<27x128xf32> to vector<1x128xf32>
    %171 = vector.shape_cast %170 : vector<1x128xf32> to vector<128xf32>
    %172 = vector.shape_cast %171 : vector<128xf32> to vector<1x1x128xf32>
    %173 = vector.broadcast %172 : vector<1x1x128xf32> to vector<4x4x128xf32>
    %174 = arith.mulf %169, %173 : vector<4x4x128xf32>
    %175 = arith.addf %168, %174 : vector<4x4x128xf32>
    %176 = vector.extract_strided_slice %2 {offsets = [2, 2, 0], sizes = [4, 4, 128], strides = [1, 1, 1]} : vector<6x6x128xf32> to vector<4x4x128xf32>
    %177 = vector.extract_strided_slice %0 {offsets = [24, 0], sizes = [1, 128], strides = [1, 1]} : vector<27x128xf32> to vector<1x128xf32>
    %178 = vector.shape_cast %177 : vector<1x128xf32> to vector<128xf32>
    %179 = vector.shape_cast %178 : vector<128xf32> to vector<1x1x128xf32>
    %180 = vector.broadcast %179 : vector<1x1x128xf32> to vector<4x4x128xf32>
    %181 = arith.mulf %176, %180 : vector<4x4x128xf32>
    %182 = arith.addf %175, %181 : vector<4x4x128xf32>
    %183 = vector.extract_strided_slice %4 {offsets = [2, 2, 0], sizes = [4, 4, 128], strides = [1, 1, 1]} : vector<6x6x128xf32> to vector<4x4x128xf32>
    %184 = vector.extract_strided_slice %0 {offsets = [25, 0], sizes = [1, 128], strides = [1, 1]} : vector<27x128xf32> to vector<1x128xf32>
    %185 = vector.shape_cast %184 : vector<1x128xf32> to vector<128xf32>
    %186 = vector.shape_cast %185 : vector<128xf32> to vector<1x1x128xf32>
    %187 = vector.broadcast %186 : vector<1x1x128xf32> to vector<4x4x128xf32>
    %188 = arith.mulf %183, %187 : vector<4x4x128xf32>
    %189 = arith.addf %182, %188 : vector<4x4x128xf32>
    %190 = vector.extract_strided_slice %6 {offsets = [2, 2, 0], sizes = [4, 4, 128], strides = [1, 1, 1]} : vector<6x6x128xf32> to vector<4x4x128xf32>
    %191 = vector.extract_strided_slice %0 {offsets = [26, 0], sizes = [1, 128], strides = [1, 1]} : vector<27x128xf32> to vector<1x128xf32>
    %192 = vector.shape_cast %191 : vector<1x128xf32> to vector<128xf32>
    %193 = vector.shape_cast %192 : vector<128xf32> to vector<1x1x128xf32>
    %194 = vector.broadcast %193 : vector<1x1x128xf32> to vector<4x4x128xf32>
    %195 = arith.mulf %190, %194 : vector<4x4x128xf32>
    %196 = arith.addf %189, %195 : vector<4x4x128xf32>
    %c0_11 = arith.constant 0 : index
    %c0_12 = arith.constant 0 : index
    %197 = vector.load %arg3[%c0_11, %c0_12] : memref<1x128xf32, #tpu.memory_space<vmem>>, vector<1x128xf32>
    %198 = vector.shape_cast %197 : vector<1x128xf32> to vector<1x1x128xf32>
    %199 = vector.broadcast %198 : vector<1x1x128xf32> to vector<4x4x128xf32>
    %200 = arith.addf %196, %199 : vector<4x4x128xf32>
    %201 = arith.negf %200 : vector<4x4x128xf32>
    %202 = math.exp %201 : vector<4x4x128xf32>
    %cst_13 = arith.constant 1.000000e+00 : f32
    %203 = vector.broadcast %cst_13 : f32 to vector<4x4x128xf32>
    %204 = arith.addf %203, %202 : vector<4x4x128xf32>
    %205 = arith.divf %203, %204 : vector<4x4x128xf32>
    %206 = arith.mulf %200, %205 : vector<4x4x128xf32>
    %c0_14 = arith.constant 0 : index
    %c0_15 = arith.constant 0 : index
    %c0_16 = arith.constant 0 : index
    %c0_17 = arith.constant 0 : index
    %207 = vector.load %arg4[%c0_14, %c0_15, %c0_16, %c0_17] : memref<1x4x4x128xf32, #tpu.memory_space<vmem>>, vector<1x4x4x128xf32>
    %208 = vector.shape_cast %207 : vector<1x4x4x128xf32> to vector<4x4x128xf32>
    %209 = vector.shape_cast %206 : vector<4x4x128xf32> to vector<1x4x4x128xf32>
    tpu.vector_store %arg4[%c0_14, %c0_15, %c0_16, %c0_17], %209 {strides = array<i32>} : memref<1x4x4x128xf32, #tpu.memory_space<vmem>>, vector<1x4x4x128xf32>,
    return
  }
  func.func @transform_0(%arg0: i32) -> (i32, i32, i32, i32) {
    %c0_i32 = arith.constant 0 : i32
    %c0_i32_0 = arith.constant 0 : i32
    %c0_i32_1 = arith.constant 0 : i32
    %c0_i32_2 = arith.constant 0 : i32
    return %arg0, %c0_i32, %c0_i32_0, %c0_i32_1 : i32, i32, i32, i32
  }
  func.func @transform_1(%arg0: i32) -> (i32, i32) {
    %c0_i32 = arith.constant 0 : i32
    %c0_i32_0 = arith.constant 0 : i32
    %c0_i32_1 = arith.constant 0 : i32
    return %c0_i32, %c0_i32_0 : i32, i32
  }
  func.func @transform_2(%arg0: i32) -> (i32, i32) {
    %c0_i32 = arith.constant 0 : i32
    %c0_i32_0 = arith.constant 0 : i32
    %c0_i32_1 = arith.constant 0 : i32
    return %c0_i32, %c0_i32_0 : i32, i32
  }
  func.func @transform_3(%arg0: i32) -> (i32, i32, i32, i32) {
    %c0_i32 = arith.constant 0 : i32
    %c0_i32_0 = arith.constant 0 : i32
    %c0_i32_1 = arith.constant 0 : i32
    %c0_i32_2 = arith.constant 0 : i32
    return %arg0, %c0_i32, %c0_i32_0, %c0_i32_1 : i32, i32, i32, i32
  }
}

module attributes {stable_mosaic.version = 11 : i64} {
  func.func @kernel(%arg0: i32, %arg1: memref<128x32xf32, #tpu.memory_space<vmem>>, %arg2: memref<128x32xf32, #tpu.memory_space<vmem>>, %arg3: memref<1x32xf32, #tpu.memory_space<vmem>>, %arg4: memref<1x32xf32, #tpu.memory_space<vmem>>, %arg5: memref<32x32xf32, #tpu.memory_space<vmem>>, %arg6: memref<128x32xf32, #tpu.memory_space<vmem>>) attributes {dimension_semantics = [#tpu.dimension_semantics<parallel>], iteration_bounds = array<i64: 1>, scalar_prefetch = 0 : i64, scratch_operands = 0 : i64, tpu.core_type = #tpu.core_type<tc>, window_params = [{transform_indices = @transform_0, window_bounds = array<i64: 128, 32>}, {transform_indices = @transform_1, window_bounds = array<i64: 128, 32>}, {pipeline_mode = #tpu.pipeline_mode<synchronous>, transform_indices = @transform_2, window_bounds = array<i64: 1, 32>}, {pipeline_mode = #tpu.pipeline_mode<synchronous>, transform_indices = @transform_3, window_bounds = array<i64: 1, 32>}, {pipeline_mode = #tpu.pipeline_mode<synchronous>, transform_indices = @transform_4, window_bounds = array<i64: 32, 32>}, {transform_indices = @transform_5, window_bounds = array<i64: 128, 32>}]} {
    %c0 = arith.constant 0 : index
    %c0_0 = arith.constant 0 : index
    %0 = vector.load %arg1[%c0, %c0_0] : memref<128x32xf32, #tpu.memory_space<vmem>>, vector<128x32xf32>
    %cst = arith.constant dense<0.000000e+00> : vector<128xf32>
    %1 = vector.multi_reduction <add>, %0, %cst [1] : vector<128x32xf32> to vector<128xf32>
    %2 = vector.shape_cast %1 : vector<128xf32> to vector<128x1xf32>
    %cst_1 = arith.constant 3.200000e+01 : f32
    %3 = vector.broadcast %cst_1 : f32 to vector<128x1xf32>
    %4 = arith.divf %2, %3 : vector<128x1xf32>
    %5 = vector.broadcast %4 : vector<128x1xf32> to vector<128x32xf32>
    %6 = arith.subf %0, %5 : vector<128x32xf32>
    %7 = arith.mulf %6, %6 : vector<128x32xf32>
    %cst_2 = arith.constant dense<0.000000e+00> : vector<128xf32>
    %8 = vector.multi_reduction <add>, %7, %cst_2 [1] : vector<128x32xf32> to vector<128xf32>
    %9 = vector.shape_cast %8 : vector<128xf32> to vector<128x1xf32>
    %cst_3 = arith.constant 3.200000e+01 : f32
    %10 = vector.broadcast %cst_3 : f32 to vector<128x1xf32>
    %11 = arith.divf %9, %10 : vector<128x1xf32>
    %12 = vector.broadcast %4 : vector<128x1xf32> to vector<128x32xf32>
    %13 = arith.subf %0, %12 : vector<128x32xf32>
    %cst_4 = arith.constant 9.99999974E-6 : f32
    %14 = vector.broadcast %cst_4 : f32 to vector<128x1xf32>
    %15 = arith.addf %11, %14 : vector<128x1xf32>
    %16 = math.rsqrt %15 : vector<128x1xf32>
    %17 = vector.broadcast %16 : vector<128x1xf32> to vector<128x32xf32>
    %18 = arith.mulf %13, %17 : vector<128x32xf32>
    %c0_5 = arith.constant 0 : index
    %c0_6 = arith.constant 0 : index
    %19 = vector.load %arg3[%c0_5, %c0_6] : memref<1x32xf32, #tpu.memory_space<vmem>>, vector<1x32xf32>
    %20 = vector.broadcast %19 : vector<1x32xf32> to vector<128x32xf32>
    %21 = arith.mulf %18, %20 : vector<128x32xf32>
    %c0_7 = arith.constant 0 : index
    %c0_8 = arith.constant 0 : index
    %22 = vector.load %arg4[%c0_7, %c0_8] : memref<1x32xf32, #tpu.memory_space<vmem>>, vector<1x32xf32>
    %23 = vector.broadcast %22 : vector<1x32xf32> to vector<128x32xf32>
    %24 = arith.addf %21, %23 : vector<128x32xf32>
    %c0_9 = arith.constant 0 : index
    %c0_10 = arith.constant 0 : index
    %25 = vector.load %arg2[%c0_9, %c0_10] : memref<128x32xf32, #tpu.memory_space<vmem>>, vector<128x32xf32>
    %26 = arith.mulf %24, %25 : vector<128x32xf32>
    %27 = arith.negf %25 : vector<128x32xf32>
    %28 = math.exp %27 : vector<128x32xf32>
    %cst_11 = arith.constant 1.000000e+00 : f32
    %29 = vector.broadcast %cst_11 : f32 to vector<128x32xf32>
    %30 = arith.addf %29, %28 : vector<128x32xf32>
    %31 = arith.divf %29, %30 : vector<128x32xf32>
    %32 = arith.mulf %26, %31 : vector<128x32xf32>
    %c0_12 = arith.constant 0 : index
    %c0_13 = arith.constant 0 : index
    %33 = vector.load %arg5[%c0_12, %c0_13] : memref<32x32xf32, #tpu.memory_space<vmem>>, vector<32x32xf32>
    %cst_14 = arith.constant dense<0.000000e+00> : vector<128x32xf32>
    %34 = tpu.matmul %32, %33, %cst_14 {dimension_numbers = #tpu.dot_dimension_numbers<[1], [0], [0], [1], [0, 0, 1, 1], [], []>} : vector<128x32xf32>, vector<32x32xf32>, vector<128x32xf32> -> vector<128x32xf32>
    %c0_15 = arith.constant 0 : index
    %c0_16 = arith.constant 0 : index
    %35 = vector.load %arg6[%c0_15, %c0_16] : memref<128x32xf32, #tpu.memory_space<vmem>>, vector<128x32xf32>
    tpu.vector_store %arg6[%c0_15, %c0_16], %34 {strides = array<i32>} : memref<128x32xf32, #tpu.memory_space<vmem>>, vector<128x32xf32>,
    return
  }
  func.func @transform_0(%arg0: i32) -> (i32, i32) {
    %c0_i32 = arith.constant 0 : i32
    %c0_i32_0 = arith.constant 0 : i32
    return %arg0, %c0_i32 : i32, i32
  }
  func.func @transform_1(%arg0: i32) -> (i32, i32) {
    %c0_i32 = arith.constant 0 : i32
    %c0_i32_0 = arith.constant 0 : i32
    return %arg0, %c0_i32 : i32, i32
  }
  func.func @transform_2(%arg0: i32) -> (i32, i32) {
    %c0_i32 = arith.constant 0 : i32
    %c0_i32_0 = arith.constant 0 : i32
    %c0_i32_1 = arith.constant 0 : i32
    return %c0_i32, %c0_i32_0 : i32, i32
  }
  func.func @transform_3(%arg0: i32) -> (i32, i32) {
    %c0_i32 = arith.constant 0 : i32
    %c0_i32_0 = arith.constant 0 : i32
    %c0_i32_1 = arith.constant 0 : i32
    return %c0_i32, %c0_i32_0 : i32, i32
  }
  func.func @transform_4(%arg0: i32) -> (i32, i32) {
    %c0_i32 = arith.constant 0 : i32
    %c0_i32_0 = arith.constant 0 : i32
    %c0_i32_1 = arith.constant 0 : i32
    return %c0_i32, %c0_i32_0 : i32, i32
  }
  func.func @transform_5(%arg0: i32) -> (i32, i32) {
    %c0_i32 = arith.constant 0 : i32
    %c0_i32_0 = arith.constant 0 : i32
    return %arg0, %c0_i32 : i32, i32
  }
}

module attributes {stable_mosaic.version = 11 : i64} {
  func.func @kernel(%arg0: i32, %arg1: i32, %arg2: memref<1x64x32xf32, #tpu.memory_space<vmem>>, %arg3: memref<1x64x32xf32, #tpu.memory_space<vmem>>, %arg4: memref<1x64x16xf32, #tpu.memory_space<vmem>>, %arg5: memref<1x64x16xf32, #tpu.memory_space<vmem>>, %arg6: memref<1x512xf32, #tpu.memory_space<vmem>>, %arg7: memref<32x512xf32, #tpu.memory_space<vmem>>, %arg8: memref<16x512xf32, #tpu.memory_space<vmem>>, %arg9: memref<512x32xf32, #tpu.memory_space<vmem>>, %arg10: memref<1x32xf32, #tpu.memory_space<vmem>>, %arg11: memref<1x32xf32, #tpu.memory_space<vmem>>, %arg12: memref<1x64x32xf32, #tpu.memory_space<vmem>>, %arg13: memref<1x512xf32, #tpu.memory_space<vmem>>, %arg14: memref<64x512xf32, #tpu.memory_space<vmem>>, %arg15: memref<64x512xf32, #tpu.memory_space<vmem>>) attributes {dimension_semantics = [#tpu.dimension_semantics<parallel>, #tpu.dimension_semantics<arbitrary>], iteration_bounds = array<i64: 2, 8>, scalar_prefetch = 0 : i64, scratch_operands = 3 : i64, tpu.core_type = #tpu.core_type<tc>, window_params = [{transform_indices = @transform_0, window_bounds = array<i64: 1, 64, 32>}, {transform_indices = @transform_1, window_bounds = array<i64: 1, 64, 32>}, {transform_indices = @transform_2, window_bounds = array<i64: 1, 64, 16>}, {transform_indices = @transform_3, window_bounds = array<i64: 1, 64, 16>}, {pipeline_mode = #tpu.pipeline_mode<synchronous>, transform_indices = @transform_4, window_bounds = array<i64: 1, 512>}, {pipeline_mode = #tpu.pipeline_mode<synchronous>, transform_indices = @transform_5, window_bounds = array<i64: 32, 512>}, {pipeline_mode = #tpu.pipeline_mode<synchronous>, transform_indices = @transform_6, window_bounds = array<i64: 16, 512>}, {pipeline_mode = #tpu.pipeline_mode<synchronous>, transform_indices = @transform_7, window_bounds = array<i64: 512, 32>}, {pipeline_mode = #tpu.pipeline_mode<synchronous>, transform_indices = @transform_8, window_bounds = array<i64: 1, 32>}, {pipeline_mode = #tpu.pipeline_mode<synchronous>, transform_indices = @transform_9, window_bounds = array<i64: 1, 32>}, {transform_indices = @transform_10, window_bounds = array<i64: 1, 64, 32>}]} {
    %c0_i32 = arith.constant 0 : i32
    %0 = arith.cmpi eq, %arg1, %c0_i32 : i32
    %1 = arith.extui %0 : i1 to i32
    %c0_i32_0 = arith.constant 0 : i32
    %2 = arith.cmpi ne, %1, %c0_i32_0 : i32
    scf.if %2 {
      %cst_34 = arith.constant 0.000000e+00 : f32
      %40 = vector.broadcast %cst_34 : f32 to vector<1x512xf32>
      %c0_35 = arith.constant 0 : index
      %c0_36 = arith.constant 0 : index
      %41 = vector.load %arg13[%c0_35, %c0_36] : memref<1x512xf32, #tpu.memory_space<vmem>>, vector<1x512xf32>
      tpu.vector_store %arg13[%c0_35, %c0_36], %40 {strides = array<i32>} : memref<1x512xf32, #tpu.memory_space<vmem>>, vector<1x512xf32>,
    } else {
    }
    %c0 = arith.constant 0 : index
    %c0_1 = arith.constant 0 : index
    %c0_2 = arith.constant 0 : index
    %3 = vector.load %arg2[%c0, %c0_1, %c0_2] : memref<1x64x32xf32, #tpu.memory_space<vmem>>, vector<1x64x32xf32>
    %4 = vector.shape_cast %3 : vector<1x64x32xf32> to vector<64x32xf32>
    %c0_3 = arith.constant 0 : index
    %c0_4 = arith.constant 0 : index
    %c0_5 = arith.constant 0 : index
    %5 = vector.load %arg3[%c0_3, %c0_4, %c0_5] : memref<1x64x32xf32, #tpu.memory_space<vmem>>, vector<1x64x32xf32>
    %6 = vector.shape_cast %5 : vector<1x64x32xf32> to vector<64x32xf32>
    %c0_6 = arith.constant 0 : index
    %c0_7 = arith.constant 0 : index
    %7 = vector.load %arg11[%c0_6, %c0_7] : memref<1x32xf32, #tpu.memory_space<vmem>>, vector<1x32xf32>
    %8 = vector.broadcast %7 : vector<1x32xf32> to vector<64x32xf32>
    %9 = arith.addf %6, %8 : vector<64x32xf32>
    %cst = arith.constant 2.000000e+01 : f32
    %10 = vector.broadcast %cst : f32 to vector<64x32xf32>
    %11 = arith.cmpf ogt, %9, %10 : vector<64x32xf32>
    %cst_8 = arith.constant 2.000000e+01 : f32
    %12 = vector.broadcast %cst_8 : f32 to vector<64x32xf32>
    %13 = arith.minimumf %9, %12 : vector<64x32xf32>
    %14 = math.exp %13 : vector<64x32xf32>
    %15 = math.log1p %14 : vector<64x32xf32>
    %16 = arith.select %11, %9, %15 : vector<64x32xi1>, vector<64x32xf32>
    %c0_9 = arith.constant 0 : index
    %c0_10 = arith.constant 0 : index
    %17 = vector.load %arg7[%c0_9, %c0_10] : memref<32x512xf32, #tpu.memory_space<vmem>>, vector<32x512xf32>
    %cst_11 = arith.constant dense<0.000000e+00> : vector<64x512xf32>
    %18 = tpu.matmul %16, %17, %cst_11 {dimension_numbers = #tpu.dot_dimension_numbers<[1], [0], [0], [1], [0, 0, 1, 1], [], []>} : vector<64x32xf32>, vector<32x512xf32>, vector<64x512xf32> -> vector<64x512xf32>
    %c0_12 = arith.constant 0 : index
    %c0_13 = arith.constant 0 : index
    %19 = vector.load %arg6[%c0_12, %c0_13] : memref<1x512xf32, #tpu.memory_space<vmem>>, vector<1x512xf32>
    %20 = vector.broadcast %19 : vector<1x512xf32> to vector<64x512xf32>
    %21 = arith.mulf %18, %20 : vector<64x512xf32>
    %22 = math.exp %21 : vector<64x512xf32>
    %c0_14 = arith.constant 0 : index
    %c0_15 = arith.constant 0 : index
    %23 = vector.load %arg14[%c0_14, %c0_15] : memref<64x512xf32, #tpu.memory_space<vmem>>, vector<64x512xf32>
    tpu.vector_store %arg14[%c0_14, %c0_15], %22 {strides = array<i32>} : memref<64x512xf32, #tpu.memory_space<vmem>>, vector<64x512xf32>,
    %24 = arith.mulf %16, %4 : vector<64x32xf32>
    %c0_16 = arith.constant 0 : index
    %c0_17 = arith.constant 0 : index
    %25 = vector.load %arg7[%c0_16, %c0_17] : memref<32x512xf32, #tpu.memory_space<vmem>>, vector<32x512xf32>
    %cst_18 = arith.constant dense<0.000000e+00> : vector<64x512xf32>
    %26 = tpu.matmul %24, %25, %cst_18 {dimension_numbers = #tpu.dot_dimension_numbers<[1], [0], [0], [1], [0, 0, 1, 1], [], []>} : vector<64x32xf32>, vector<32x512xf32>, vector<64x512xf32> -> vector<64x512xf32>
    %c0_19 = arith.constant 0 : index
    %c0_20 = arith.constant 0 : index
    %c0_21 = arith.constant 0 : index
    %27 = vector.load %arg4[%c0_19, %c0_20, %c0_21] : memref<1x64x16xf32, #tpu.memory_space<vmem>>, vector<1x64x16xf32>
    %28 = vector.shape_cast %27 : vector<1x64x16xf32> to vector<64x16xf32>
    %c0_22 = arith.constant 0 : index
    %c0_23 = arith.constant 0 : index
    %29 = vector.load %arg8[%c0_22, %c0_23] : memref<16x512xf32, #tpu.memory_space<vmem>>, vector<16x512xf32>
    %cst_24 = arith.constant dense<0.000000e+00> : vector<64x512xf32>
    %30 = tpu.matmul %28, %29, %cst_24 {dimension_numbers = #tpu.dot_dimension_numbers<[1], [0], [0], [1], [0, 0, 1, 1], [], []>} : vector<64x16xf32>, vector<16x512xf32>, vector<64x512xf32> -> vector<64x512xf32>
    %31 = arith.mulf %26, %30 : vector<64x512xf32>
    %c0_25 = arith.constant 0 : index
    %c0_26 = arith.constant 0 : index
    %32 = vector.load %arg15[%c0_25, %c0_26] : memref<64x512xf32, #tpu.memory_space<vmem>>, vector<64x512xf32>
    tpu.vector_store %arg15[%c0_25, %c0_26], %31 {strides = array<i32>} : memref<64x512xf32, #tpu.memory_space<vmem>>, vector<64x512xf32>,
    %c0_27 = arith.constant 0 : index
    %c0_28 = arith.constant 0 : index
    %33 = vector.load %arg13[%c0_27, %c0_28] : memref<1x512xf32, #tpu.memory_space<vmem>>, vector<1x512xf32>
    %c0_i32_29 = arith.constant 0 : i32
    %c8_i32 = arith.constant 8 : i32
    %34 = arith.addi %c0_i32_29, %c8_i32 : i32
    %c1_i32 = arith.constant 1 : i32
    %35 = scf.for %arg16 = %c0_i32_29 to %34 step %c1_i32 iter_args(%arg17 = %33) -> (vector<1x512xf32>)  : i32 {
      %c8_i32_34 = arith.constant 8 : i32
      %40 = arith.muli %arg16, %c8_i32_34 : i32
      %41 = tpu.assume_multiple %40, 8 : i32
      %42 = arith.index_cast %41 : i32 to index
      %c0_35 = arith.constant 0 : index
      %43 = vector.load %arg14[%42, %c0_35] : memref<64x512xf32, #tpu.memory_space<vmem>>, vector<8x512xf32>
      %44 = arith.index_cast %41 : i32 to index
      %c0_36 = arith.constant 0 : index
      %45 = vector.load %arg15[%44, %c0_36] : memref<64x512xf32, #tpu.memory_space<vmem>>, vector<8x512xf32>
      %46 = vector.extract_strided_slice %43 {offsets = [0, 0], sizes = [1, 512], strides = [1, 1]} : vector<8x512xf32> to vector<1x512xf32>
      %47 = arith.mulf %46, %arg17 : vector<1x512xf32>
      %48 = vector.extract_strided_slice %45 {offsets = [0, 0], sizes = [1, 512], strides = [1, 1]} : vector<8x512xf32> to vector<1x512xf32>
      %49 = arith.addf %47, %48 : vector<1x512xf32>
      %50 = vector.extract_strided_slice %43 {offsets = [1, 0], sizes = [1, 512], strides = [1, 1]} : vector<8x512xf32> to vector<1x512xf32>
      %51 = arith.mulf %50, %49 : vector<1x512xf32>
      %52 = vector.extract_strided_slice %45 {offsets = [1, 0], sizes = [1, 512], strides = [1, 1]} : vector<8x512xf32> to vector<1x512xf32>
      %53 = arith.addf %51, %52 : vector<1x512xf32>
      %54 = vector.extract_strided_slice %43 {offsets = [2, 0], sizes = [1, 512], strides = [1, 1]} : vector<8x512xf32> to vector<1x512xf32>
      %55 = arith.mulf %54, %53 : vector<1x512xf32>
      %56 = vector.extract_strided_slice %45 {offsets = [2, 0], sizes = [1, 512], strides = [1, 1]} : vector<8x512xf32> to vector<1x512xf32>
      %57 = arith.addf %55, %56 : vector<1x512xf32>
      %58 = vector.extract_strided_slice %43 {offsets = [3, 0], sizes = [1, 512], strides = [1, 1]} : vector<8x512xf32> to vector<1x512xf32>
      %59 = arith.mulf %58, %57 : vector<1x512xf32>
      %60 = vector.extract_strided_slice %45 {offsets = [3, 0], sizes = [1, 512], strides = [1, 1]} : vector<8x512xf32> to vector<1x512xf32>
      %61 = arith.addf %59, %60 : vector<1x512xf32>
      %62 = vector.extract_strided_slice %43 {offsets = [4, 0], sizes = [1, 512], strides = [1, 1]} : vector<8x512xf32> to vector<1x512xf32>
      %63 = arith.mulf %62, %61 : vector<1x512xf32>
      %64 = vector.extract_strided_slice %45 {offsets = [4, 0], sizes = [1, 512], strides = [1, 1]} : vector<8x512xf32> to vector<1x512xf32>
      %65 = arith.addf %63, %64 : vector<1x512xf32>
      %66 = vector.extract_strided_slice %43 {offsets = [5, 0], sizes = [1, 512], strides = [1, 1]} : vector<8x512xf32> to vector<1x512xf32>
      %67 = arith.mulf %66, %65 : vector<1x512xf32>
      %68 = vector.extract_strided_slice %45 {offsets = [5, 0], sizes = [1, 512], strides = [1, 1]} : vector<8x512xf32> to vector<1x512xf32>
      %69 = arith.addf %67, %68 : vector<1x512xf32>
      %70 = vector.extract_strided_slice %43 {offsets = [6, 0], sizes = [1, 512], strides = [1, 1]} : vector<8x512xf32> to vector<1x512xf32>
      %71 = arith.mulf %70, %69 : vector<1x512xf32>
      %72 = vector.extract_strided_slice %45 {offsets = [6, 0], sizes = [1, 512], strides = [1, 1]} : vector<8x512xf32> to vector<1x512xf32>
      %73 = arith.addf %71, %72 : vector<1x512xf32>
      %74 = vector.extract_strided_slice %43 {offsets = [7, 0], sizes = [1, 512], strides = [1, 1]} : vector<8x512xf32> to vector<1x512xf32>
      %75 = arith.mulf %74, %73 : vector<1x512xf32>
      %76 = vector.extract_strided_slice %45 {offsets = [7, 0], sizes = [1, 512], strides = [1, 1]} : vector<8x512xf32> to vector<1x512xf32>
      %77 = arith.addf %75, %76 : vector<1x512xf32>
      %78 = tpu.concatenate %49, %53, %57, %61, %65, %69, %73, %77 in 0 : vector<1x512xf32>, vector<1x512xf32>, vector<1x512xf32>, vector<1x512xf32>, vector<1x512xf32>, vector<1x512xf32>, vector<1x512xf32>, vector<1x512xf32> -> vector<8x512xf32>
      %79 = arith.index_cast %41 : i32 to index
      %c0_37 = arith.constant 0 : index
      %80 = vector.load %arg15[%79, %c0_37] : memref<64x512xf32, #tpu.memory_space<vmem>>, vector<8x512xf32>
      tpu.vector_store %arg15[%79, %c0_37], %78 {strides = array<i32>} : memref<64x512xf32, #tpu.memory_space<vmem>>, vector<8x512xf32>,
      scf.yield %77 : vector<1x512xf32>
    }
    %c8_i32_30 = arith.constant 8 : i32
    %c0_31 = arith.constant 0 : index
    %c0_32 = arith.constant 0 : index
    %36 = vector.load %arg13[%c0_31, %c0_32] : memref<1x512xf32, #tpu.memory_space<vmem>>, vector<1x512xf32>
    tpu.vector_store %arg13[%c0_31, %c0_32], %35 {strides = array<i32>} : memref<1x512xf32, #tpu.memory_space<vmem>>, vector<1x512xf32>,
    %c7_i32 = arith.constant 7 : i32
    %37 = arith.cmpi sge, %arg1, %c7_i32 : i32
    %38 = arith.extui %37 : i1 to i32
    %c0_i32_33 = arith.constant 0 : i32
    %39 = arith.cmpi ne, %38, %c0_i32_33 : i32
    scf.if %39 {
      %c0_34 = arith.constant 0 : index
      %c0_35 = arith.constant 0 : index
      %c0_36 = arith.constant 0 : index
      %40 = vector.load %arg5[%c0_34, %c0_35, %c0_36] : memref<1x64x16xf32, #tpu.memory_space<vmem>>, vector<1x64x16xf32>
      %41 = vector.shape_cast %40 : vector<1x64x16xf32> to vector<64x16xf32>
      %c0_37 = arith.constant 0 : index
      %c0_38 = arith.constant 0 : index
      %42 = vector.load %arg8[%c0_37, %c0_38] : memref<16x512xf32, #tpu.memory_space<vmem>>, vector<16x512xf32>
      %cst_39 = arith.constant dense<0.000000e+00> : vector<64x512xf32>
      %43 = tpu.matmul %41, %42, %cst_39 {dimension_numbers = #tpu.dot_dimension_numbers<[1], [0], [0], [1], [0, 0, 1, 1], [], []>} : vector<64x16xf32>, vector<16x512xf32>, vector<64x512xf32> -> vector<64x512xf32>
      %c0_40 = arith.constant 0 : index
      %c0_41 = arith.constant 0 : index
      %44 = vector.load %arg15[%c0_40, %c0_41] : memref<64x512xf32, #tpu.memory_space<vmem>>, vector<64x512xf32>
      %45 = arith.mulf %44, %43 : vector<64x512xf32>
      %c0_42 = arith.constant 0 : index
      %c0_43 = arith.constant 0 : index
      %46 = vector.load %arg9[%c0_42, %c0_43] : memref<512x32xf32, #tpu.memory_space<vmem>>, vector<512x32xf32>
      %cst_44 = arith.constant dense<0.000000e+00> : vector<64x32xf32>
      %47 = tpu.matmul %45, %46, %cst_44 {dimension_numbers = #tpu.dot_dimension_numbers<[1], [0], [0], [1], [0, 0, 1, 1], [], []>} : vector<64x512xf32>, vector<512x32xf32>, vector<64x32xf32> -> vector<64x32xf32>
      %c0_45 = arith.constant 0 : index
      %c0_46 = arith.constant 0 : index
      %48 = vector.load %arg10[%c0_45, %c0_46] : memref<1x32xf32, #tpu.memory_space<vmem>>, vector<1x32xf32>
      %49 = vector.broadcast %48 : vector<1x32xf32> to vector<64x32xf32>
      %50 = arith.mulf %49, %4 : vector<64x32xf32>
      %51 = arith.addf %47, %50 : vector<64x32xf32>
      %c0_47 = arith.constant 0 : index
      %c0_48 = arith.constant 0 : index
      %c0_49 = arith.constant 0 : index
      %52 = vector.load %arg12[%c0_47, %c0_48, %c0_49] : memref<1x64x32xf32, #tpu.memory_space<vmem>>, vector<1x64x32xf32>
      %53 = vector.shape_cast %52 : vector<1x64x32xf32> to vector<64x32xf32>
      %54 = vector.shape_cast %51 : vector<64x32xf32> to vector<1x64x32xf32>
      tpu.vector_store %arg12[%c0_47, %c0_48, %c0_49], %54 {strides = array<i32>} : memref<1x64x32xf32, #tpu.memory_space<vmem>>, vector<1x64x32xf32>,
    } else {
    }
    return
  }
  func.func @transform_0(%arg0: i32, %arg1: i32) -> (i32, i32, i32) {
    %c0_i32 = arith.constant 0 : i32
    %c0_i32_0 = arith.constant 0 : i32
    return %arg0, %arg1, %c0_i32 : i32, i32, i32
  }
  func.func @transform_1(%arg0: i32, %arg1: i32) -> (i32, i32, i32) {
    %c0_i32 = arith.constant 0 : i32
    %c0_i32_0 = arith.constant 0 : i32
    return %arg0, %arg1, %c0_i32 : i32, i32, i32
  }
  func.func @transform_2(%arg0: i32, %arg1: i32) -> (i32, i32, i32) {
    %c0_i32 = arith.constant 0 : i32
    %c0_i32_0 = arith.constant 0 : i32
    return %arg0, %arg1, %c0_i32 : i32, i32, i32
  }
  func.func @transform_3(%arg0: i32, %arg1: i32) -> (i32, i32, i32) {
    %c0_i32 = arith.constant 0 : i32
    %c0_i32_0 = arith.constant 0 : i32
    return %arg0, %arg1, %c0_i32 : i32, i32, i32
  }
  func.func @transform_4(%arg0: i32, %arg1: i32) -> (i32, i32) {
    %c0_i32 = arith.constant 0 : i32
    %c0_i32_0 = arith.constant 0 : i32
    %c0_i32_1 = arith.constant 0 : i32
    return %c0_i32, %c0_i32_0 : i32, i32
  }
  func.func @transform_5(%arg0: i32, %arg1: i32) -> (i32, i32) {
    %c0_i32 = arith.constant 0 : i32
    %c0_i32_0 = arith.constant 0 : i32
    %c0_i32_1 = arith.constant 0 : i32
    return %c0_i32, %c0_i32_0 : i32, i32
  }
  func.func @transform_6(%arg0: i32, %arg1: i32) -> (i32, i32) {
    %c0_i32 = arith.constant 0 : i32
    %c0_i32_0 = arith.constant 0 : i32
    %c0_i32_1 = arith.constant 0 : i32
    return %c0_i32, %c0_i32_0 : i32, i32
  }
  func.func @transform_7(%arg0: i32, %arg1: i32) -> (i32, i32) {
    %c0_i32 = arith.constant 0 : i32
    %c0_i32_0 = arith.constant 0 : i32
    %c0_i32_1 = arith.constant 0 : i32
    return %c0_i32, %c0_i32_0 : i32, i32
  }
  func.func @transform_8(%arg0: i32, %arg1: i32) -> (i32, i32) {
    %c0_i32 = arith.constant 0 : i32
    %c0_i32_0 = arith.constant 0 : i32
    %c0_i32_1 = arith.constant 0 : i32
    return %c0_i32, %c0_i32_0 : i32, i32
  }
  func.func @transform_9(%arg0: i32, %arg1: i32) -> (i32, i32) {
    %c0_i32 = arith.constant 0 : i32
    %c0_i32_0 = arith.constant 0 : i32
    %c0_i32_1 = arith.constant 0 : i32
    return %c0_i32, %c0_i32_0 : i32, i32
  }
  func.func @transform_10(%arg0: i32, %arg1: i32) -> (i32, i32, i32) {
    %c7_i32 = arith.constant 7 : i32
    %0 = arith.subi %arg1, %c7_i32 : i32
    %c0_i32 = arith.constant 0 : i32
    %1 = arith.maxsi %0, %c0_i32 : i32
    %c0_i32_0 = arith.constant 0 : i32
    %c0_i32_1 = arith.constant 0 : i32
    return %arg0, %1, %c0_i32_0 : i32, i32, i32
  }
}

</mosaic_0001>

<llo_original>
// kernel: tile.18
$region0: #{tile.18}
  %s0 = inlined_call_operand.vmem [shape: f32[27,4,32], index: 0, kind: input, shape index: {}]
  %s1 = inlined_call_operand.vmem [shape: f32[27,128], index: 1, kind: output, shape index: {}]
  $region1: #{tile.18} parent=0
    #allocation0 [shape = 'u8[110592]{0}', space=vmem, size = 0x1b000, scoped, tag = 'scoped mem for input reshape']
    %s3 = sshll.u32 1, 4
    %s4 = ssub.s32 %s3, 1
    %s5 = smul.addr 4, 26
    %s6 = scalar_lea.vmem %s0, %s5
    %v7 = vld [vmem:[%s6] sm:%s4]
    %s8 = scalar_lea.vmem [#allocation0], 208
    %9 = vst [vmem:[%s8] sm:%s4] %v7
    %s10 = smul.addr 4, 25
    %s11 = scalar_lea.vmem %s0, %s10
    %v12 = vld [vmem:[%s11] sm:%s4]
    %s13 = scalar_lea.vmem [#allocation0], 200
    %14 = vst [vmem:[%s13] sm:%s4] %v12
    %s15 = smul.addr 4, 24
    %s16 = scalar_lea.vmem %s0, %s15
    %v17 = vld [vmem:[%s16] sm:%s4]
    %s18 = scalar_lea.vmem [#allocation0], 192
    %19 = vst [vmem:[%s18] sm:%s4] %v17
    %s20 = smul.addr 4, 23
    %s21 = scalar_lea.vmem %s0, %s20
    %v22 = vld [vmem:[%s21] sm:%s4]
    %s23 = scalar_lea.vmem [#allocation0], 184
    %24 = vst [vmem:[%s23] sm:%s4] %v22
    %s25 = smul.addr 4, 22
    %s26 = scalar_lea.vmem %s0, %s25
    %v27 = vld [vmem:[%s26] sm:%s4]
    %s28 = scalar_lea.vmem [#allocation0], 176
    %29 = vst [vmem:[%s28] sm:%s4] %v27
    %s30 = smul.addr 4, 21
    %s31 = scalar_lea.vmem %s0, %s30
    %v32 = vld [vmem:[%s31] sm:%s4]
    %s33 = scalar_lea.vmem [#allocation0], 168
    %34 = vst [vmem:[%s33] sm:%s4] %v32
    %s35 = smul.addr 4, 20
    %s36 = scalar_lea.vmem %s0, %s35
    %v37 = vld [vmem:[%s36] sm:%s4]
    %s38 = scalar_lea.vmem [#allocation0], 160
    %39 = vst [vmem:[%s38] sm:%s4] %v37
    %s40 = smul.addr 4, 19
    %s41 = scalar_lea.vmem %s0, %s40
    %v42 = vld [vmem:[%s41] sm:%s4]
    %s43 = scalar_lea.vmem [#allocation0], 152
    %44 = vst [vmem:[%s43] sm:%s4] %v42
    %s45 = smul.addr 4, 18
    %s46 = scalar_lea.vmem %s0, %s45
    %v47 = vld [vmem:[%s46] sm:%s4]
    %s48 = scalar_lea.vmem [#allocation0], 144
    %49 = vst [vmem:[%s48] sm:%s4] %v47
    %s50 = smul.addr 4, 17
    %s51 = scalar_lea.vmem %s0, %s50
    %v52 = vld [vmem:[%s51] sm:%s4]
    %s53 = scalar_lea.vmem [#allocation0], 136
    %54 = vst [vmem:[%s53] sm:%s4] %v52
    %s55 = smul.addr 4, 16
    %s56 = scalar_lea.vmem %s0, %s55
    %v57 = vld [vmem:[%s56] sm:%s4]
    %s58 = scalar_lea.vmem [#allocation0], 128
    %59 = vst [vmem:[%s58] sm:%s4] %v57
    %s60 = smul.addr 4, 15
    %s61 = scalar_lea.vmem %s0, %s60
    %v62 = vld [vmem:[%s61] sm:%s4]
    %s63 = scalar_lea.vmem [#allocation0], 120
    %64 = vst [vmem:[%s63] sm:%s4] %v62
    %s65 = smul.addr 4, 14
    %s66 = scalar_lea.vmem %s0, %s65
    %v67 = vld [vmem:[%s66] sm:%s4]
    %s68 = scalar_lea.vmem [#allocation0], 112
    %69 = vst [vmem:[%s68] sm:%s4] %v67
    %s70 = smul.addr 4, 13
    %s71 = scalar_lea.vmem %s0, %s70
    %v72 = vld [vmem:[%s71] sm:%s4]
    %s73 = scalar_lea.vmem [#allocation0], 104
    %74 = vst [vmem:[%s73] sm:%s4] %v72
    %s75 = smul.addr 4, 12
    %s76 = scalar_lea.vmem %s0, %s75
    %v77 = vld [vmem:[%s76] sm:%s4]
    %s78 = scalar_lea.vmem [#allocation0], 96
    %79 = vst [vmem:[%s78] sm:%s4] %v77
    %s80 = smul.addr 4, 11
    %s81 = scalar_lea.vmem %s0, %s80
    %v82 = vld [vmem:[%s81] sm:%s4]
    %s83 = scalar_lea.vmem [#allocation0], 88
    %84 = vst [vmem:[%s83] sm:%s4] %v82
    %s85 = smul.addr 4, 10
    %s86 = scalar_lea.vmem %s0, %s85
    %v87 = vld [vmem:[%s86] sm:%s4]
    %s88 = scalar_lea.vmem [#allocation0], 80
    %89 = vst [vmem:[%s88] sm:%s4] %v87
    %s90 = smul.addr 4, 9
    %s91 = scalar_lea.vmem %s0, %s90
    %v92 = vld [vmem:[%s91] sm:%s4]
    %s93 = scalar_lea.vmem [#allocation0], 72
    %94 = vst [vmem:[%s93] sm:%s4] %v92
    %s95 = smul.addr 4, 8
    %s96 = scalar_lea.vmem %s0, %s95
    %v97 = vld [vmem:[%s96] sm:%s4]
    %s98 = scalar_lea.vmem [#allocation0], 64
    %99 = vst [vmem:[%s98] sm:%s4] %v97
    %s100 = smul.addr 4, 7
    %s101 = scalar_lea.vmem %s0, %s100
    %v102 = vld [vmem:[%s101] sm:%s4]
    %s103 = scalar_lea.vmem [#allocation0], 56
    %104 = vst [vmem:[%s103] sm:%s4] %v102
    %s105 = smul.addr 4, 6
    %s106 = scalar_lea.vmem %s0, %s105
    %v107 = vld [vmem:[%s106] sm:%s4]
    %s108 = scalar_lea.vmem [#allocation0], 48
    %109 = vst [vmem:[%s108] sm:%s4] %v107
    %s110 = smul.addr 4, 5
    %s111 = scalar_lea.vmem %s0, %s110
    %v112 = vld [vmem:[%s111] sm:%s4]
    %s113 = scalar_lea.vmem [#allocation0], 40
    %114 = vst [vmem:[%s113] sm:%s4] %v112
    %s115 = smul.addr 4, 4
    %s116 = scalar_lea.vmem %s0, %s115
    %v117 = vld [vmem:[%s116] sm:%s4]
    %s118 = scalar_lea.vmem [#allocation0], 32
    %119 = vst [vmem:[%s118] sm:%s4] %v117
    %s120 = smul.addr 4, 3
    %s121 = scalar_lea.vmem %s0, %s120
    %v122 = vld [vmem:[%s121] sm:%s4]
    %s123 = scalar_lea.vmem [#allocation0], 24
    %124 = vst [vmem:[%s123] sm:%s4] %v122
    %s125 = smul.addr 4, 2
    %s126 = scalar_lea.vmem %s0, %s125
    %v127 = vld [vmem:[%s126] sm:%s4]
    %s128 = scalar_lea.vmem [#allocation0], 16
    %129 = vst [vmem:[%s128] sm:%s4] %v127
    %s130 = scalar_lea.vmem %s0, 4
    %v131 = vld [vmem:[%s130] sm:%s4]
    %s132 = scalar_lea.vmem [#allocation0], 8
    %133 = vst [vmem:[%s132] sm:%s4] %v131
    %v134 = vld [vmem:[%s0] sm:%s4]
    %135 = vst [vmem:[#allocation0] sm:%s4] %v134
    %v136 = vld [vmem:[#allocation0] ss:$8 sm:$0xf]
    %v137 = vld [vmem:[#allocation0] ss:$8 sm:$0xf0]
    %vm138 = vcmask 1047556
    %v139 = vsel %vm138, %v137, %v136
    %vm140 = vcmask 261120
    %141 = vst.msk [vmem:[%s1] sm:$0xff] %vm140, %v139
    %s142 = scalar_lea.vmem [#allocation0], 64
    %v143 = vld [vmem:[%s142] ss:$8 sm:$0xf]
    %s144 = scalar_lea.vmem [#allocation0], 64
    %v145 = vld [vmem:[%s144] ss:$8 sm:$0xf0]
    %vm146 = vcmask 1047556
    %v147 = vsel %vm146, %v145, %v143
    %vm148 = vcmask 261120
    %s149 = scalar_lea.vmem %s1, 8
    %150 = vst.msk [vmem:[%s149] sm:$0xff] %vm148, %v147
    %s151 = scalar_lea.vmem [#allocation0], 128
    %v152 = vld [vmem:[%s151] ss:$8 sm:$0xf]
    %s153 = scalar_lea.vmem [#allocation0], 128
    %v154 = vld [vmem:[%s153] ss:$8 sm:$0xf0]
    %vm155 = vcmask 1047556
    %v156 = vsel %vm155, %v154, %v152
    %vm157 = vcmask 261120
    %s158 = scalar_lea.vmem %s1, 16
    %159 = vst.msk [vmem:[%s158] sm:$0xff] %vm157, %v156
    %s160 = scalar_lea.vmem [#allocation0], 192
    %v161 = vld [vmem:[%s160] ss:$8 sm:$0x7]
    %vm162 = vcmask 261120
    %s163 = scalar_lea.vmem %s1, 24
    %164 = vst.msk [vmem:[%s163] sm:$0x7] %vm162, %v161
    %s165 = scalar_lea.vmem [#allocation0], 3
    %v166 = vld [vmem:[%s165] ss:$8 sm:$0xf]
    %s167 = scalar_lea.vmem [#allocation0], 3
    %v168 = vld [vmem:[%s167] ss:$8 sm:$0xf0]
    %vm169 = vcmask 1047556
    %v170 = vsel %vm169, %v168, %v166
    %171 = vrot.lane.b32.xlu0 %v170, 96
    %v172 = vpop.permute.xlu0 %171
    %vm173 = vcmask 1048320
    %174 = vst.msk [vmem:[%s1] sm:$0xff] %vm173, %v172
    %s175 = scalar_lea.vmem [#allocation0], 67
    %v176 = vld [vmem:[%s175] ss:$8 sm:$0xf]
    %s177 = scalar_lea.vmem [#allocation0], 67
    %v178 = vld [vmem:[%s177] ss:$8 sm:$0xf0]
    %vm179 = vcmask 1047556
    %v180 = vsel %vm179, %v178, %v176
    %181 = vrot.lane.b32.xlu0 %v180, 96
    %v182 = vpop.permute.xlu0 %181
    %vm183 = vcmask 1048320
    %s184 = scalar_lea.vmem %s1, 8
    %185 = vst.msk [vmem:[%s184] sm:$0xff] %vm183, %v182
    %s186 = scalar_lea.vmem [#allocation0], 131
    %v187 = vld [vmem:[%s186] ss:$8 sm:$0xf]
    %s188 = scalar_lea.vmem [#allocation0], 131
    %v189 = vld [vmem:[%s188] ss:$8 sm:$0xf0]
    %vm190 = vcmask 1047556
    %v191 = vsel %vm190, %v189, %v187
    %192 = vrot.lane.b32.xlu0 %v191, 96
    %v193 = vpop.permute.xlu0 %192
    %vm194 = vcmask 1048320
    %s195 = scalar_lea.vmem %s1, 16
    %196 = vst.msk [vmem:[%s195] sm:$0xff] %vm194, %v193
    %s197 = scalar_lea.vmem [#allocation0], 195
    %v198 = vld [vmem:[%s197] ss:$8 sm:$0x7]
    %199 = vrot.lane.b32.xlu0 %v198, 96
    %v200 = vpop.permute.xlu0 %199
    %vm201 = vcmask 1048320
    %s202 = scalar_lea.vmem %s1, 24
    %203 = vst.msk [vmem:[%s202] sm:$0x7] %vm201, %v200
    %s204 = scalar_lea.vmem [#allocation0], 2
    %v205 = vld [vmem:[%s204] ss:$8 sm:$0xf]
    %s206 = scalar_lea.vmem [#allocation0], 2
    %v207 = vld [vmem:[%s206] ss:$8 sm:$0xf0]
    %vm208 = vcmask 1047556
    %v209 = vsel %vm208, %v207, %v205
    %210 = vrot.lane.b32.xlu0 %v209, 64
    %v211 = vpop.permute.xlu0 %210
    %vm212 = vcmask 785920
    %213 = vst.msk [vmem:[%s1] sm:$0xff] %vm212, %v211
    %s214 = scalar_lea.vmem [#allocation0], 66
    %v215 = vld [vmem:[%s214] ss:$8 sm:$0xf]
    %s216 = scalar_lea.vmem [#allocation0], 66
    %v217 = vld [vmem:[%s216] ss:$8 sm:$0xf0]
    %vm218 = vcmask 1047556
    %v219 = vsel %vm218, %v217, %v215
    %220 = vrot.lane.b32.xlu0 %v219, 64
    %v221 = vpop.permute.xlu0 %220
    %vm222 = vcmask 785920
    %s223 = scalar_lea.vmem %s1, 8
    %224 = vst.msk [vmem:[%s223] sm:$0xff] %vm222, %v221
    %s225 = scalar_lea.vmem [#allocation0], 130
    %v226 = vld [vmem:[%s225] ss:$8 sm:$0xf]
    %s227 = scalar_lea.vmem [#allocation0], 130
    %v228 = vld [vmem:[%s227] ss:$8 sm:$0xf0]
    %vm229 = vcmask 1047556
    %v230 = vsel %vm229, %v228, %v226
    %231 = vrot.lane.b32.xlu0 %v230, 64
    %v232 = vpop.permute.xlu0 %231
    %vm233 = vcmask 785920
    %s234 = scalar_lea.vmem %s1, 16
    %235 = vst.msk [vmem:[%s234] sm:$0xff] %vm233, %v232
    %s236 = scalar_lea.vmem [#allocation0], 194
    %v237 = vld [vmem:[%s236] ss:$8 sm:$0x7]
    %238 = vrot.lane.b32.xlu0 %v237, 64
    %v239 = vpop.permute.xlu0 %238
    %vm240 = vcmask 785920
    %s241 = scalar_lea.vmem %s1, 24
    %242 = vst.msk [vmem:[%s241] sm:$0x7] %vm240, %v239
    %s243 = scalar_lea.vmem [#allocation0], 1
    %v244 = vld [vmem:[%s243] ss:$8 sm:$0xf]
    %s245 = scalar_lea.vmem [#allocation0], 1
    %v246 = vld [vmem:[%s245] ss:$8 sm:$0xf0]
    %vm247 = vcmask 1047556
    %v248 = vsel %vm247, %v246, %v244
    %249 = vrot.lane.b32.xlu0 %v248, 32
    %v250 = vpop.permute.xlu0 %249
    %vm251 = vcmask 523520
    %252 = vst.msk [vmem:[%s1] sm:$0xff] %vm251, %v250
    %s253 = scalar_lea.vmem [#allocation0], 65
    %v254 = vld [vmem:[%s253] ss:$8 sm:$0xf]
    %s255 = scalar_lea.vmem [#allocation0], 65
    %v256 = vld [vmem:[%s255] ss:$8 sm:$0xf0]
    %vm257 = vcmask 1047556
    %v258 = vsel %vm257, %v256, %v254
    %259 = vrot.lane.b32.xlu0 %v258, 32
    %v260 = vpop.permute.xlu0 %259
    %vm261 = vcmask 523520
    %s262 = scalar_lea.vmem %s1, 8
    %263 = vst.msk [vmem:[%s262] sm:$0xff] %vm261, %v260
    %s264 = scalar_lea.vmem [#allocation0], 129
    %v265 = vld [vmem:[%s264] ss:$8 sm:$0xf]
    %s266 = scalar_lea.vmem [#allocation0], 129
    %v267 = vld [vmem:[%s266] ss:$8 sm:$0xf0]
    %vm268 = vcmask 1047556
    %v269 = vsel %vm268, %v267, %v265
    %270 = vrot.lane.b32.xlu0 %v269, 32
    %v271 = vpop.permute.xlu0 %270
    %vm272 = vcmask 523520
    %s273 = scalar_lea.vmem %s1, 16
    %274 = vst.msk [vmem:[%s273] sm:$0xff] %vm272, %v271
    %s275 = scalar_lea.vmem [#allocation0], 193
    %v276 = vld [vmem:[%s275] ss:$8 sm:$0x7]
    %277 = vrot.lane.b32.xlu0 %v276, 32
    %v278 = vpop.permute.xlu0 %277
    %vm279 = vcmask 523520
    %s280 = scalar_lea.vmem %s1, 24
    %281 = vst.msk [vmem:[%s280] sm:$0x7] %vm279, %v278

// kernel: _lambda_.5
$region0: #{_lambda_.5}
  #allocation0 [shape = 'u32[]', space=smem, size = 0x4, offset = 0x4, fixed_abs, tag = 'smem constant byte address 0x4 - core index']
  #allocation1 [shape = 'u32[144,128]{1,0:T(1,128)}', space=vmem, size = 0x12000, scoped, tag = 'internal scratch']
  %s0 = inlined_call_operand.vmem [shape: bf16[128,32], index: 0, kind: input, shape index: {}]
  %s1 = inlined_call_operand.vmem [shape: bf16[32,64], index: 1, kind: input, shape index: {}]
  %s2 = inlined_call_operand.vmem [shape: f32[128,64], index: 2, kind: output, shape index: {}]
  %s3 = sld [smem:[#allocation0]]
  $region18: #{_lambda_.5} parent=0
    _
  %s5 = ssub.s32 1, %s3
  %s6 = scalar_select 0, %s5, %s3
  // Predicated region
  $region2: #{_lambda_.5} parent=0 // pred_check
    _
  $region3: #{_lambda_.5} parent=0 // pred_check_branch
    %8 = sbr.rel (0) target = $region5
  $region4: #{_lambda_.5} parent=0 // pred_region
    _
  $region5: #{_lambda_.5} parent=0 // pred_fallthru
    _
  // Predicated region
  $region6: #{_lambda_.5} parent=0 // pred_check
    _
  $region7: #{_lambda_.5} parent=0 // pred_check_branch
    %10 = sbr.rel (0) target = $region9
  $region8: #{_lambda_.5} parent=0 // pred_region
    _
  $region9: #{_lambda_.5} parent=0 // pred_fallthru
    _
  %v12 = vld [vmem:[%s0] sm:$0xf]
  %v13 = vld [vmem:[%s0 + $0x4] sm:$0xf]
  %v14 = vld [vmem:[%s0 + $0x8] sm:$0xf]
  %v15 = vld [vmem:[%s0 + $0xc] sm:$0xf]
  %v16 = vld [vmem:[%s0 + $0x10] sm:$0xf]
  %v17 = vld [vmem:[%s0 + $0x14] sm:$0xf]
  %v18 = vld [vmem:[%s0 + $0x18] sm:$0xf]
  %v19 = vld [vmem:[%s0 + $0x1c] sm:$0xf]
  %v20 = vld [vmem:[%s0 + $0x20] sm:$0xf]
  %v21 = vld [vmem:[%s0 + $0x24] sm:$0xf]
  %v22 = vld [vmem:[%s0 + $0x28] sm:$0xf]
  %v23 = vld [vmem:[%s0 + $0x2c] sm:$0xf]
  %v24 = vld [vmem:[%s0 + $0x30] sm:$0xf]
  %v25 = vld [vmem:[%s0 + $0x34] sm:$0xf]
  %v26 = vld [vmem:[%s0 + $0x38] sm:$0xf]
  %v27 = vld [vmem:[%s0 + $0x3c] sm:$0xf]
  %v28 = vld [vmem:[%s1] sm:$0xf]
  %v29 = vld [vmem:[%s1 + $0x4] sm:$0xf]
  %v30 = vld [vmem:[%s1 + $0x8] sm:$0xf]
  %v31 = vld [vmem:[%s1 + $0xc] sm:$0xf]
  %v48 = vunpack.c.l.b16 %v12
  %v49 = vunpack.c.l.b16 %v13
  %v50 = vunpack.c.l.b16 %v14
  %v51 = vunpack.c.l.b16 %v15
  %v52 = vunpack.c.l.b16 %v16
  %v53 = vunpack.c.l.b16 %v17
  %v54 = vunpack.c.l.b16 %v18
  %v55 = vunpack.c.l.b16 %v19
  %v56 = vunpack.c.l.b16 %v20
  %v57 = vunpack.c.l.b16 %v21
  %v58 = vunpack.c.l.b16 %v22
  %v59 = vunpack.c.l.b16 %v23
  %v60 = vunpack.c.l.b16 %v24
  %v61 = vunpack.c.l.b16 %v25
  %v62 = vunpack.c.l.b16 %v26
  %v63 = vunpack.c.l.b16 %v27
  %v64 = vpack.c.b16 %v49, %v48
  %v65 = vpack.c.b16 %v51, %v50
  %v66 = vpack.c.b16 %v53, %v52
  %v67 = vpack.c.b16 %v55, %v54
  %v68 = vpack.c.b16 %v57, %v56
  %v69 = vpack.c.b16 %v59, %v58
  %v70 = vpack.c.b16 %v61, %v60
  %v71 = vpack.c.b16 %v63, %v62
  %v76 = vunpack.c.l.b16 %v28
  %v77 = vunpack.c.l.b16 %v29
  %v78 = vunpack.c.l.b16 %v30
  %v79 = vunpack.c.l.b16 %v31
  %v80 = vpack.c.b16 %v77, %v76
  %v81 = vpack.c.b16 %v79, %v78
  %vm84 = vcmask 261120
  %v86 = vsel %vm84, %v64, 0
  %v89 = vsel %vm84, %v65, 0
  %v92 = vsel %vm84, %v66, 0
  %v95 = vsel %vm84, %v67, 0
  %v98 = vsel %vm84, %v68, 0
  %v101 = vsel %vm84, %v69, 0
  %v104 = vsel %vm84, %v70, 0
  %v107 = vsel %vm84, %v71, 0
  %109 = vmatprep.subr.bf16.mxu0 0
  %110 = vmatpush1.bf16.msra.mxu0 0
  %111 = vmatprep.subr.bf16.mxu0 0
  %112 = vmatpush1.bf16.msra.mxu0 0
  %113 = vmatprep.subr.bf16.mxu0 0
  %114 = vmatpush1.bf16.msra.mxu0 0
  %115 = vmatprep.subr.bf16.mxu0 0
  %116 = vmatpush1.bf16.msra.mxu0 0
  %117 = vmatprep.subr.bf16.mxu0 0
  %118 = vmatpush1.bf16.msra.mxu0 0
  %119 = vmatprep.subr.bf16.mxu0 0
  %120 = vmatpush1.bf16.msra.mxu0 0
  %121 = vmatprep.subr.bf16.mxu0 0
  %122 = vmatpush1.bf16.msra.mxu0 %v81
  %123 = vmatprep.subr.bf16.mxu0 0
  %124 = vmatpush1.bf16.msra.mxu0 %v80
  %125 = vmatprep.subr.bf16.mxu0 0
  %126 = vmatpush2.bf16.msra.mxu0 0
  %127 = vmatprep.subr.bf16.mxu0 0
  %128 = vmatpush2.bf16.msra.mxu0 0
  %129 = vmatprep.subr.bf16.mxu0 0
  %130 = vmatpush2.bf16.msra.mxu0 0
  %131 = vmatprep.subr.bf16.mxu0 0
  %132 = vmatpush2.bf16.msra.mxu0 0
  %133 = vmatprep.subr.bf16.mxu0 0
  %134 = vmatpush2.bf16.msra.mxu0 0
  %135 = vmatprep.subr.bf16.mxu0 0
  %136 = vmatpush2.bf16.msra.mxu0 0
  %137 = vmatprep.subr.bf16.mxu0 0
  %138 = vmatpush2.bf16.msra.mxu0 0
  %139 = vmatprep.subr.bf16.mxu0 0
  %140 = vmatpush2.bf16.msra.mxu0 0
  %141 = vmatprep.mubr.bf16.mxu0 0
  %142 = vmatmul.mubr.bf16.gmra.mxu0 %v86
  %v143 = vpop.f32.mrf.mxu0
  %v144 = vadd.f32 0.0, %v143
  %v145 = vpop.f32.mrf.mxu0
  %v146 = vpop.f32.mrf.mxu0
  %v147 = vadd.f32 0.0, %v146
  %v148 = vpop.f32.mrf.mxu0
  %149 = vmatprep.mubr.bf16.mxu0 0
  %150 = vmatmul.mubr.bf16.gmra.mxu0 %v89
  %v151 = vpop.f32.mrf.mxu0
  %v152 = vadd.f32 0.0, %v151
  %v153 = vpop.f32.mrf.mxu0
  %v154 = vpop.f32.mrf.mxu0
  %v155 = vadd.f32 0.0, %v154
  %v156 = vpop.f32.mrf.mxu0
  %157 = vmatprep.mubr.bf16.mxu0 0
  %158 = vmatmul.mubr.bf16.gmra.mxu0 %v92
  %v159 = vpop.f32.mrf.mxu0
  %v160 = vadd.f32 0.0, %v159
  %v161 = vpop.f32.mrf.mxu0
  %v162 = vpop.f32.mrf.mxu0
  %v163 = vadd.f32 0.0, %v162
  %v164 = vpop.f32.mrf.mxu0
  %165 = vmatprep.mubr.bf16.mxu0 0
  %166 = vmatmul.mubr.bf16.gmra.mxu0 %v95
  %v167 = vpop.f32.mrf.mxu0
  %v168 = vadd.f32 0.0, %v167
  %v169 = vpop.f32.mrf.mxu0
  %v170 = vpop.f32.mrf.mxu0
  %v171 = vadd.f32 0.0, %v170
  %v172 = vpop.f32.mrf.mxu0
  %173 = vmatprep.mubr.bf16.mxu0 0
  %174 = vmatmul.mubr.bf16.gmra.mxu0 %v98
  %v175 = vpop.f32.mrf.mxu0
  %v176 = vadd.f32 0.0, %v175
  %v177 = vpop.f32.mrf.mxu0
  %v178 = vpop.f32.mrf.mxu0
  %v179 = vadd.f32 0.0, %v178
  %v180 = vpop.f32.mrf.mxu0
  %181 = vmatprep.mubr.bf16.mxu0 0
  %182 = vmatmul.mubr.bf16.gmra.mxu0 %v101
  %v183 = vpop.f32.mrf.mxu0
  %v184 = vadd.f32 0.0, %v183
  %v185 = vpop.f32.mrf.mxu0
  %v186 = vpop.f32.mrf.mxu0
  %v187 = vadd.f32 0.0, %v186
  %v188 = vpop.f32.mrf.mxu0
  %189 = vmatprep.mubr.bf16.mxu0 0
  %190 = vmatmul.mubr.bf16.gmra.mxu0 %v104
  %v191 = vpop.f32.mrf.mxu0
  %v192 = vadd.f32 0.0, %v191
  %v193 = vpop.f32.mrf.mxu0
  %v194 = vpop.f32.mrf.mxu0
  %v195 = vadd.f32 0.0, %v194
  %v196 = vpop.f32.mrf.mxu0
  %197 = vmatprep.mubr.bf16.mxu0 0
  %198 = vmatmul.mubr.bf16.gmra.mxu0 %v107
  %v199 = vpop.f32.mrf.mxu0
  %v200 = vadd.f32 0.0, %v199
  %v201 = vpop.f32.mrf.mxu0
  %v202 = vpop.f32.mrf.mxu0
  %v203 = vadd.f32 0.0, %v202
  %v204 = vpop.f32.mrf.mxu0
  %205 = vdwg.mxu0
  %vm206 = vcmask 523264
  %207 = vst.msk [vmem:[%s2] sm:$0xff] %vm206, %v144
  %208 = vst.msk [vmem:[%s2 + $0x8] sm:$0xff] %vm206, %v147
  %209 = vst.msk [vmem:[%s2 + $0x10] sm:$0xff] %vm206, %v152
  %210 = vst.msk [vmem:[%s2 + $0x18] sm:$0xff] %vm206, %v155
  %211 = vst.msk [vmem:[%s2 + $0x20] sm:$0xff] %vm206, %v160
  %212 = vst.msk [vmem:[%s2 + $0x28] sm:$0xff] %vm206, %v163
  %213 = vst.msk [vmem:[%s2 + $0x30] sm:$0xff] %vm206, %v168
  %214 = vst.msk [vmem:[%s2 + $0x38] sm:$0xff] %vm206, %v171
  %215 = vst.msk [vmem:[%s2 + $0x40] sm:$0xff] %vm206, %v176
  %216 = vst.msk [vmem:[%s2 + $0x48] sm:$0xff] %vm206, %v179
  %217 = vst.msk [vmem:[%s2 + $0x50] sm:$0xff] %vm206, %v184
  %218 = vst.msk [vmem:[%s2 + $0x58] sm:$0xff] %vm206, %v187
  %219 = vst.msk [vmem:[%s2 + $0x60] sm:$0xff] %vm206, %v192
  %220 = vst.msk [vmem:[%s2 + $0x68] sm:$0xff] %vm206, %v195
  %221 = vst.msk [vmem:[%s2 + $0x70] sm:$0xff] %vm206, %v200
  %222 = vst.msk [vmem:[%s2 + $0x78] sm:$0xff] %vm206, %v203
  // Predicated region
  $region10: #{_lambda_.5} parent=0 // pred_check
    _
  $region11: #{_lambda_.5} parent=0 // pred_check_branch
    %224 = sbr.rel (0) target = $region13
  $region12: #{_lambda_.5} parent=0 // pred_region
    _
  $region13: #{_lambda_.5} parent=0 // pred_fallthru
    _
  // Predicated region
  $region14: #{_lambda_.5} parent=0 // pred_check
    _
  $region15: #{_lambda_.5} parent=0 // pred_check_branch
    %226 = sbr.rel (0) target = $region17
  $region16: #{_lambda_.5} parent=0 // pred_region
    _
  $region17: #{_lambda_.5} parent=0 // pred_fallthru
    _

// kernel: _lambda_.6
$region0: #{_lambda_.6}
  #allocation0 [shape = 'u32[]', space=smem, size = 0x4, offset = 0x4, fixed_abs, tag = 'smem constant byte address 0x4 - core index']
  #allocation1 [shape = 'u32[144,128]{1,0:T(1,128)}', space=vmem, size = 0x12000, scoped, tag = 'internal scratch']
  %s0 = inlined_call_operand.vmem [shape: f32[2,6,6,192], index: 0, kind: input, shape index: {}]
  %s1 = inlined_call_operand.vmem [shape: f32[27,128], index: 1, kind: input, shape index: {}]
  %s2 = inlined_call_operand.vmem [shape: f32[1,128], index: 2, kind: input, shape index: {}]
  %s3 = inlined_call_operand.vmem [shape: f32[2,4,4,128], index: 3, kind: output, shape index: {}]
  %s4 = sld [smem:[#allocation0]]
  $region45: #{_lambda_.6} parent=0
    _
  %s6 = ssub.s32 1, %s4
  %s7 = scalar_select 0, %s6, %s4
  loop: start=0, step=1, limit=4
  $region2: #{_lambda_.6} parent=0 // loop_pre_header
    _
  $region3: #{_lambda_.6} parent=0 // loop_header
    %s9 = sphi 0, %s13
    %p10 = scmp.ge.s32.totalorder %s9, 4
    %s19 = sphi 0, %s21
    %s22 = sphi 0, %s19
    %s23 = sphi 0, %s22
    %s39 = sphi 0, %s23
    %s43 = sphi 0, %s43
    %s45 = sphi 0, %s43
    %s46 = sphi 0, %s45
    %s60 = sphi 0, %s46
    %s64 = sphi 0, %s64
    %s66 = sphi 0, %s64
    %s67 = sphi 0, %s66
    %s81 = sphi 0, %s67
    %s87 = sphi 0, %s89
    %s90 = sphi 0, %s87
    %s91 = sphi 0, %s90
    %s107 = sphi 0, %s91
  $region4: #{_lambda_.6} parent=0 // loop_header_branch
    %12 = sbr.rel (%p10) target = $region8
  $region5: #{_lambda_.6} parent=0 // loop_body
    %s14 = ssub.s32 %s9, 1
    %s15 = ssub.s32 %s9, 2
    %s16 = sadd.s32 %s9, 1
    %s17 = ssub.s32 %s9, %s16
    %p18 = scmp.eq.s32.totalorder %s17, 0
    %s20 = sadd.s32 %s19, 1
    %s21 = scalar_select %p18, %s19, %s20
    %p24 = pneg %p18
    %p25 = scmp.eq.s32.totalorder %s9, 1
    %p26 = por %p24, %p25
    %p27 = scmp.ne.s32.totalorder %s19, %s22
    %p28 = scmp.eq.s32.totalorder %s9, 0
    %p29 = por %p27, %p28
    %p30 = scmp.ne.s32.totalorder %s19, %s22
    %p31 = scmp.eq.s32.totalorder %s14, 1
    %p32 = por %p30, %p31
    %p33 = scmp.ne.s32.totalorder %s22, %s23
    %p34 = scmp.eq.s32.totalorder %s14, 0
    %p35 = por %p33, %p34
    %p36 = scmp.ne.s32.totalorder %s22, %s23
    %p37 = scmp.eq.s32.totalorder %s15, 1
    %p38 = por %p36, %p37
    %p40 = scmp.ne.s32.totalorder %s23, %s39
    %p41 = scmp.eq.s32.totalorder %s15, 0
    %p42 = por %p40, %p41
    %s44 = sadd.s32 %s43, 1
    %p47 = scmp.eq.s32.totalorder %s9, 1
    %p48 = scmp.ne.s32.totalorder %s43, %s45
    %p49 = scmp.eq.s32.totalorder %s9, 0
    %p50 = por %p48, %p49
    %p51 = scmp.ne.s32.totalorder %s43, %s45
    %p52 = scmp.eq.s32.totalorder %s14, 1
    %p53 = por %p51, %p52
    %p54 = scmp.ne.s32.totalorder %s45, %s46
    %p55 = scmp.eq.s32.totalorder %s14, 0
    %p56 = por %p54, %p55
    %p57 = scmp.ne.s32.totalorder %s45, %s46
    %p58 = scmp.eq.s32.totalorder %s15, 1
    %p59 = por %p57, %p58
    %p61 = scmp.ne.s32.totalorder %s46, %s60
    %p62 = scmp.eq.s32.totalorder %s15, 0
    %p63 = por %p61, %p62
    %s65 = sadd.s32 %s64, 1
    %p68 = scmp.eq.s32.totalorder %s9, 1
    %p69 = scmp.ne.s32.totalorder %s64, %s66
    %p70 = scmp.eq.s32.totalorder %s9, 0
    %p71 = por %p69, %p70
    %p72 = scmp.ne.s32.totalorder %s64, %s66
    %p73 = scmp.eq.s32.totalorder %s14, 1
    %p74 = por %p72, %p73
    %p75 = scmp.ne.s32.totalorder %s66, %s67
    %p76 = scmp.eq.s32.totalorder %s14, 0
    %p77 = por %p75, %p76
    %p78 = scmp.ne.s32.totalorder %s66, %s67
    %p79 = scmp.eq.s32.totalorder %s15, 1
    %p80 = por %p78, %p79
    %p82 = scmp.ne.s32.totalorder %s67, %s81
    %p83 = scmp.eq.s32.totalorder %s15, 0
    %p84 = por %p82, %p83
    %s85 = ssub.s32 %s9, %s16
    %p86 = scmp.eq.s32.totalorder %s85, 0
    %s88 = sadd.s32 %s87, 1
    %s89 = scalar_select %p86, %s87, %s88
    %p92 = pneg %p86
    %p93 = scmp.eq.s32.totalorder %s9, 1
    %p94 = por %p92, %p93
    %p95 = scmp.ne.s32.totalorder %s87, %s90
    %p96 = scmp.eq.s32.totalorder %s9, 0
    %p97 = por %p95, %p96
    %p98 = scmp.ne.s32.totalorder %s87, %s90
    %p99 = scmp.eq.s32.totalorder %s14, 1
    %p100 = por %p98, %p99
    %p101 = scmp.ne.s32.totalorder %s90, %s91
    %p102 = scmp.eq.s32.totalorder %s14, 0
    %p103 = por %p101, %p102
    %p104 = scmp.ne.s32.totalorder %s90, %s91
    %p105 = scmp.eq.s32.totalorder %s15, 1
    %p106 = por %p104, %p105
    %p108 = scmp.ne.s32.totalorder %s91, %s107
    %p109 = scmp.eq.s32.totalorder %s15, 0
    %p110 = por %p108, %p109
    %p111 = scmp.le.s32.totalorder 1, %s9
    %p112 = scmp.lt.s32.totalorder %s9, 3
    %p113 = pnand %p111, %p112
    %p114 = pneg %p113
    // Predicated region
    $region9: #{_lambda_.6} parent=5 // pred_check
      _
    $region10: #{_lambda_.6} parent=5 // pred_check_branch
      %116 = sbr.rel (%p113) target = $region12
    $region11: #{_lambda_.6} parent=5 // pred_region
      %s117 = ssub.s32 %s9, 1
      // Predicated region
      $region13: #{_lambda_.6} parent=11 // pred_check
        %p118 = pneg %p56
      $region14: #{_lambda_.6} parent=11 // pred_check_branch
        %120 = sbr.rel (%p118) target = $region16
      $region15: #{_lambda_.6} parent=11 // pred_region
        _
      $region16: #{_lambda_.6} parent=11 // pred_fallthru
        _
      // Predicated region
      $region17: #{_lambda_.6} parent=11 // pred_check
        %p121 = pneg %p77
      $region18: #{_lambda_.6} parent=11 // pred_check_branch
        %123 = sbr.rel (%p121) target = $region20
      $region19: #{_lambda_.6} parent=11 // pred_region
        _
      $region20: #{_lambda_.6} parent=11 // pred_fallthru
        _
    $region12: #{_lambda_.6} parent=5 // pred_fallthru
      _
    %p124 = scmp.lt.s32.totalorder %s9, 2
    // Predicated region
    $region21: #{_lambda_.6} parent=5 // pred_check
      %p125 = pneg %p124
    $region22: #{_lambda_.6} parent=5 // pred_check_branch
      %127 = sbr.rel (%p125) target = $region24
    $region23: #{_lambda_.6} parent=5 // pred_region
      // Predicated region
      $region25: #{_lambda_.6} parent=23 // pred_check
        %p128 = pneg %p29
      $region26: #{_lambda_.6} parent=23 // pred_check_branch
        %130 = sbr.rel (%p128) target = $region28
      $region27: #{_lambda_.6} parent=23 // pred_region
        %p131 = scmp.lt.s32.totalorder %s9, 1
        %s132 = scalar_select %p131, %s9, 1
        %s133 = smul.addr %s132, 12
        %s134 = smul.addr %s133, 8
        %s135 = scalar_lea.vmem %s0, %s134
      $region28: #{_lambda_.6} parent=23 // pred_fallthru
        _
    $region24: #{_lambda_.6} parent=5 // pred_fallthru
      _
    %p136 = scmp.le.s32.totalorder 1, %s9
    %p137 = scmp.lt.s32.totalorder %s9, 3
    %p138 = pnand %p136, %p137
    %p139 = pneg %p138
    // Predicated region
    $region29: #{_lambda_.6} parent=5 // pred_check
      _
    $region30: #{_lambda_.6} parent=5 // pred_check_branch
      %141 = sbr.rel (%p138) target = $region32
    $region31: #{_lambda_.6} parent=5 // pred_region
      %s142 = ssub.s32 %s9, 1
      %p143 = scmp.lt.s32.totalorder %s14, 1
      %s144 = scalar_select %p143, %s14, 1
      %s145 = smul.addr %s144, 12
      %s146 = smul.addr %s145, 8
      %s147 = scalar_lea.vmem %s0, %s146
      %p148 = pneg %p35
      %p149 = pneg %p32
      %p150 = pneg %p56
      %p151 = pneg %p53
      %p152 = pneg %p77
      %p153 = pneg %p74
      %p154 = pneg %p103
      %p155 = pneg %p100
      %p156 = scmp.lt.s32.totalorder %s14, 1
      %s157 = scalar_select %p156, %s14, 1
      %s158 = smul.addr %s157, 4
      %s159 = smul.addr %s158, 4
      %s160 = scalar_lea.vmem %s3, %s159
      %p161 = scmp.lt.s32.totalorder %s14, 1
      %s162 = scalar_select %p161, %s14, 1
      %s163 = smul.addr %s162, 12
      %s164 = smul.addr %s163, 8
      %s165 = scalar_lea.vmem %s0, %s164
      %p166 = scmp.lt.s32.totalorder %s14, 1
      %s167 = scalar_select %p166, %s14, 1
      %s168 = smul.addr %s167, 4
      %s169 = smul.addr %s168, 4
      %s170 = scalar_lea.vmem %s3, %s169
      %v171 = vld [vmem:[%s1] sm:$0xff]
      %v172 = vld [vmem:[%s1 + $0x8] sm:$0xff]
      %v173 = vld [vmem:[%s1 + $0x10] sm:$0xff]
      %v174 = vld [vmem:[%s1 + $0x18] sm:$0x7]
      %v175 = vld [vmem:[%s165] sm:$0x3f]
      %v176 = vld [vmem:[%s165 + $0x10] sm:$0x3f]
      %v177 = vld [vmem:[%s165 + $0x20] sm:$0x3f]
      %v178 = vld [vmem:[%s165 + $0x30] sm:$0x3f]
      %v179 = vld [vmem:[%s165 + $0x40] sm:$0x3f]
      %v180 = vld [vmem:[%s165 + $0x50] sm:$0x3f]
      %v181 = vld [vmem:[%s165 + $0x8] sm:$0x3f]
      %v182 = vld [vmem:[%s165 + $0x18] sm:$0x3f]
      %v183 = vld [vmem:[%s165 + $0x28] sm:$0x3f]
      %v184 = vld [vmem:[%s165 + $0x38] sm:$0x3f]
      %v185 = vld [vmem:[%s165 + $0x48] sm:$0x3f]
      %v186 = vld [vmem:[%s165 + $0x58] sm:$0x3f]
      %v187 = vlaneseq
      %v188 = vshrl.u32 %v187, 7
      %v189 = vsub.s32 0, %v188
      %v190 = vrot.slane %v171, %v189
      %v191 = vmul.f32 %v175, %v190
      %v192 = vmul.f32 %v176, %v190
      %v193 = vmul.f32 %v177, %v190
      %v194 = vmul.f32 %v178, %v190
      %v195 = vadd.f32 %v191, 0.0
      %v196 = vadd.f32 %v192, 0.0
      %v197 = vadd.f32 %v193, 0.0
      %v198 = vadd.f32 %v194, 0.0
      %v199 = vlaneseq
      %v200 = vshrl.u32 %v199, 7
      %v201 = vsub.s32 1, %v200
      %v202 = vrot.slane %v171, %v201
      %204 = vrot.lane.b32.xlu0 %v202, 32
      %v205 = vpop.permute.xlu0 %204
      %v207 = vmul.f32 %v175, %v205
      %v208 = vmul.f32 %v181, %v205
      %v209 = vmul.f32 %v176, %v205
      %v210 = vmul.f32 %v182, %v205
      %v211 = vmul.f32 %v177, %v205
      %v212 = vmul.f32 %v183, %v205
      %v213 = vmul.f32 %v178, %v205
      %v214 = vmul.f32 %v184, %v205
      %223 = vrot.lane.b32.xlu0 %v207, 96
      %v224 = vpop.permute.xlu0 %223
      %225 = vrot.lane.b32.xlu0 %v208, 96
      %v226 = vpop.permute.xlu0 %225
      %227 = vrot.lane.b32.xlu0 %v209, 96
      %v228 = vpop.permute.xlu0 %227
      %229 = vrot.lane.b32.xlu0 %v210, 96
      %v230 = vpop.permute.xlu0 %229
      %231 = vrot.lane.b32.xlu0 %v211, 96
      %v232 = vpop.permute.xlu0 %231
      %233 = vrot.lane.b32.xlu0 %v212, 96
      %v234 = vpop.permute.xlu0 %233
      %235 = vrot.lane.b32.xlu0 %v213, 96
      %v236 = vpop.permute.xlu0 %235
      %237 = vrot.lane.b32.xlu0 %v214, 96
      %v238 = vpop.permute.xlu0 %237
      %vm239 = vcmask 785408
      %v240 = vsel %vm239, %v224, %v226
      %v241 = vsel %vm239, %v228, %v230
      %v242 = vsel %vm239, %v232, %v234
      %v243 = vsel %vm239, %v236, %v238
      %v248 = vadd.f32 %v195, %v240
      %v249 = vadd.f32 %v196, %v241
      %v250 = vadd.f32 %v197, %v242
      %v251 = vadd.f32 %v198, %v243
      %v252 = vlaneseq
      %v253 = vshrl.u32 %v252, 7
      %v254 = vsub.s32 2, %v253
      %v255 = vrot.slane %v171, %v254
      %257 = vrot.lane.b32.xlu0 %v255, 64
      %v258 = vpop.permute.xlu0 %257
      %v260 = vmul.f32 %v175, %v258
      %v261 = vmul.f32 %v181, %v258
      %v262 = vmul.f32 %v176, %v258
      %v263 = vmul.f32 %v182, %v258
      %v264 = vmul.f32 %v177, %v258
      %v265 = vmul.f32 %v183, %v258
      %v266 = vmul.f32 %v178, %v258
      %v267 = vmul.f32 %v184, %v258
      %276 = vrot.lane.b32.xlu0 %v260, 64
      %v277 = vpop.permute.xlu0 %276
      %278 = vrot.lane.b32.xlu0 %v261, 64
      %v279 = vpop.permute.xlu0 %278
      %280 = vrot.lane.b32.xlu0 %v262, 64
      %v281 = vpop.permute.xlu0 %280
      %282 = vrot.lane.b32.xlu0 %v263, 64
      %v283 = vpop.permute.xlu0 %282
      %284 = vrot.lane.b32.xlu0 %v264, 64
      %v285 = vpop.permute.xlu0 %284
      %286 = vrot.lane.b32.xlu0 %v265, 64
      %v287 = vpop.permute.xlu0 %286
      %288 = vrot.lane.b32.xlu0 %v266, 64
      %v289 = vpop.permute.xlu0 %288
      %290 = vrot.lane.b32.xlu0 %v267, 64
      %v291 = vpop.permute.xlu0 %290
      %vm292 = vcmask 523264
      %v293 = vsel %vm292, %v277, %v279
      %v294 = vsel %vm292, %v281, %v283
      %v295 = vsel %vm292, %v285, %v287
      %v296 = vsel %vm292, %v289, %v291
      %v301 = vadd.f32 %v248, %v293
      %v302 = vadd.f32 %v249, %v294
      %v303 = vadd.f32 %v250, %v295
      %v304 = vadd.f32 %v251, %v296
      %v305 = vlaneseq
      %v306 = vshrl.u32 %v305, 7
      %v307 = vsub.s32 3, %v306
      %v308 = vrot.slane %v171, %v307
      %v309 = vmul.f32 %v175, %v308
      %v310 = vmul.f32 %v176, %v308
      %v311 = vmul.f32 %v177, %v308
      %v312 = vmul.f32 %v178, %v308
      %v317 = vrot.slane %v309, 1
      %v318 = vrot.slane %v310, 1
      %v319 = vrot.slane %v311, 1
      %v320 = vrot.slane %v312, 1
      %v325 = vadd.f32 %v301, %v317
      %v326 = vadd.f32 %v302, %v318
      %v327 = vadd.f32 %v303, %v319
      %v328 = vadd.f32 %v304, %v320
      %v329 = vlaneseq
      %v330 = vshrl.u32 %v329, 7
      %v331 = vsub.s32 4, %v330
      %v332 = vrot.slane %v171, %v331
      %334 = vrot.lane.b32.xlu0 %v332, 32
      %v335 = vpop.permute.xlu0 %334
      %v337 = vmul.f32 %v175, %v335
      %v338 = vmul.f32 %v181, %v335
      %v339 = vmul.f32 %v176, %v335
      %v340 = vmul.f32 %v182, %v335
      %v341 = vmul.f32 %v177, %v335
      %v342 = vmul.f32 %v183, %v335
      %v343 = vmul.f32 %v178, %v335
      %v344 = vmul.f32 %v184, %v335
      %v353 = vrot.slane %v337, 1
      %v354 = vrot.slane %v338, 1
      %v355 = vrot.slane %v339, 1
      %v356 = vrot.slane %v340, 1
      %v357 = vrot.slane %v341, 1
      %v358 = vrot.slane %v342, 1
      %v359 = vrot.slane %v343, 1
      %v360 = vrot.slane %v344, 1
      %361 = vrot.lane.b32.xlu0 %v353, 96
      %v362 = vpop.permute.xlu0 %361
      %363 = vrot.lane.b32.xlu0 %v354, 96
      %v364 = vpop.permute.xlu0 %363
      %365 = vrot.lane.b32.xlu0 %v355, 96
      %v366 = vpop.permute.xlu0 %365
      %367 = vrot.lane.b32.xlu0 %v356, 96
      %v368 = vpop.permute.xlu0 %367
      %369 = vrot.lane.b32.xlu0 %v357, 96
      %v370 = vpop.permute.xlu0 %369
      %371 = vrot.lane.b32.xlu0 %v358, 96
      %v372 = vpop.permute.xlu0 %371
      %373 = vrot.lane.b32.xlu0 %v359, 96
      %v374 = vpop.permute.xlu0 %373
      %375 = vrot.lane.b32.xlu0 %v360, 96
      %v376 = vpop.permute.xlu0 %375
      %v377 = vsel %vm239, %v362, %v364
      %v378 = vsel %vm239, %v366, %v368
      %v379 = vsel %vm239, %v370, %v372
      %v380 = vsel %vm239, %v374, %v376
      %v385 = vadd.f32 %v325, %v377
      %v386 = vadd.f32 %v326, %v378
      %v387 = vadd.f32 %v327, %v379
      %v388 = vadd.f32 %v328, %v380
      %v389 = vlaneseq
      %v390 = vshrl.u32 %v389, 7
      %v391 = vsub.s32 5, %v390
      %v392 = vrot.slane %v171, %v391
      %394 = vrot.lane.b32.xlu0 %v392, 64
      %v395 = vpop.permute.xlu0 %394
      %v397 = vmul.f32 %v175, %v395
      %v398 = vmul.f32 %v181, %v395
      %v399 = vmul.f32 %v176, %v395
      %v400 = vmul.f32 %v182, %v395
      %v401 = vmul.f32 %v177, %v395
      %v402 = vmul.f32 %v183, %v395
      %v403 = vmul.f32 %v178, %v395
      %v404 = vmul.f32 %v184, %v395
      %v413 = vrot.slane %v397, 1
      %v414 = vrot.slane %v398, 1
      %v415 = vrot.slane %v399, 1
      %v416 = vrot.slane %v400, 1
      %v417 = vrot.slane %v401, 1
      %v418 = vrot.slane %v402, 1
      %v419 = vrot.slane %v403, 1
      %v420 = vrot.slane %v404, 1
      %421 = vrot.lane.b32.xlu0 %v413, 64
      %v422 = vpop.permute.xlu0 %421
      %423 = vrot.lane.b32.xlu0 %v414, 64
      %v424 = vpop.permute.xlu0 %423
      %425 = vrot.lane.b32.xlu0 %v415, 64
      %v426 = vpop.permute.xlu0 %425
      %427 = vrot.lane.b32.xlu0 %v416, 64
      %v428 = vpop.permute.xlu0 %427
      %429 = vrot.lane.b32.xlu0 %v417, 64
      %v430 = vpop.permute.xlu0 %429
      %431 = vrot.lane.b32.xlu0 %v418, 64
      %v432 = vpop.permute.xlu0 %431
      %433 = vrot.lane.b32.xlu0 %v419, 64
      %v434 = vpop.permute.xlu0 %433
      %435 = vrot.lane.b32.xlu0 %v420, 64
      %v436 = vpop.permute.xlu0 %435
      %v437 = vsel %vm292, %v422, %v424
      %v438 = vsel %vm292, %v426, %v428
      %v439 = vsel %vm292, %v430, %v432
      %v440 = vsel %vm292, %v434, %v436
      %v445 = vadd.f32 %v385, %v437
      %v446 = vadd.f32 %v386, %v438
      %v447 = vadd.f32 %v387, %v439
      %v448 = vadd.f32 %v388, %v440
      %v449 = vlaneseq
      %v450 = vshrl.u32 %v449, 7
      %v451 = vsub.s32 6, %v450
      %v452 = vrot.slane %v171, %v451
      %v453 = vmul.f32 %v175, %v452
      %v454 = vmul.f32 %v176, %v452
      %v455 = vmul.f32 %v177, %v452
      %v456 = vmul.f32 %v178, %v452
      %v461 = vrot.slane %v453, 2
      %v462 = vrot.slane %v454, 2
      %v463 = vrot.slane %v455, 2
      %v464 = vrot.slane %v456, 2
      %v469 = vadd.f32 %v445, %v461
      %v470 = vadd.f32 %v446, %v462
      %v471 = vadd.f32 %v447, %v463
      %v472 = vadd.f32 %v448, %v464
      %v473 = vlaneseq
      %v474 = vshrl.u32 %v473, 7
      %v475 = vsub.s32 7, %v474
      %v476 = vrot.slane %v171, %v475
      %478 = vrot.lane.b32.xlu0 %v476, 32
      %v479 = vpop.permute.xlu0 %478
      %v481 = vmul.f32 %v175, %v479
      %v482 = vmul.f32 %v181, %v479
      %v483 = vmul.f32 %v176, %v479
      %v484 = vmul.f32 %v182, %v479
      %v485 = vmul.f32 %v177, %v479
      %v486 = vmul.f32 %v183, %v479
      %v487 = vmul.f32 %v178, %v479
      %v488 = vmul.f32 %v184, %v479
      %v497 = vrot.slane %v481, 2
      %v498 = vrot.slane %v482, 2
      %v499 = vrot.slane %v483, 2
      %v500 = vrot.slane %v484, 2
      %v501 = vrot.slane %v485, 2
      %v502 = vrot.slane %v486, 2
      %v503 = vrot.slane %v487, 2
      %v504 = vrot.slane %v488, 2
      %505 = vrot.lane.b32.xlu0 %v497, 96
      %v506 = vpop.permute.xlu0 %505
      %507 = vrot.lane.b32.xlu0 %v498, 96
      %v508 = vpop.permute.xlu0 %507
      %509 = vrot.lane.b32.xlu0 %v499, 96
      %v510 = vpop.permute.xlu0 %509
      %511 = vrot.lane.b32.xlu0 %v500, 96
      %v512 = vpop.permute.xlu0 %511
      %513 = vrot.lane.b32.xlu0 %v501, 96
      %v514 = vpop.permute.xlu0 %513
      %515 = vrot.lane.b32.xlu0 %v502, 96
      %v516 = vpop.permute.xlu0 %515
      %517 = vrot.lane.b32.xlu0 %v503, 96
      %v518 = vpop.permute.xlu0 %517
      %519 = vrot.lane.b32.xlu0 %v504, 96
      %v520 = vpop.permute.xlu0 %519
      %v521 = vsel %vm239, %v506, %v508
      %v522 = vsel %vm239, %v510, %v512
      %v523 = vsel %vm239, %v514, %v516
      %v524 = vsel %vm239, %v518, %v520
      %v529 = vadd.f32 %v469, %v521
      %v530 = vadd.f32 %v470, %v522
      %v531 = vadd.f32 %v471, %v523
      %v532 = vadd.f32 %v472, %v524
      %v533 = vlaneseq
      %v534 = vshrl.u32 %v533, 7
      %v535 = vsub.s32 0, %v534
      %v536 = vrot.slane %v172, %v535
      %538 = vrot.lane.b32.xlu0 %v536, 64
      %v539 = vpop.permute.xlu0 %538
      %v541 = vmul.f32 %v175, %v539
      %v542 = vmul.f32 %v181, %v539
      %v543 = vmul.f32 %v176, %v539
      %v544 = vmul.f32 %v182, %v539
      %v545 = vmul.f32 %v177, %v539
      %v546 = vmul.f32 %v183, %v539
      %v547 = vmul.f32 %v178, %v539
      %v548 = vmul.f32 %v184, %v539
      %v557 = vrot.slane %v541, 2
      %v558 = vrot.slane %v542, 2
      %v559 = vrot.slane %v543, 2
      %v560 = vrot.slane %v544, 2
      %v561 = vrot.slane %v545, 2
      %v562 = vrot.slane %v546, 2
      %v563 = vrot.slane %v547, 2
      %v564 = vrot.slane %v548, 2
      %565 = vrot.lane.b32.xlu0 %v557, 64
      %v566 = vpop.permute.xlu0 %565
      %567 = vrot.lane.b32.xlu0 %v558, 64
      %v568 = vpop.permute.xlu0 %567
      %569 = vrot.lane.b32.xlu0 %v559, 64
      %v570 = vpop.permute.xlu0 %569
      %571 = vrot.lane.b32.xlu0 %v560, 64
      %v572 = vpop.permute.xlu0 %571
      %573 = vrot.lane.b32.xlu0 %v561, 64
      %v574 = vpop.permute.xlu0 %573
      %575 = vrot.lane.b32.xlu0 %v562, 64
      %v576 = vpop.permute.xlu0 %575
      %577 = vrot.lane.b32.xlu0 %v563, 64
      %v578 = vpop.permute.xlu0 %577
      %579 = vrot.lane.b32.xlu0 %v564, 64
      %v580 = vpop.permute.xlu0 %579
      %v581 = vsel %vm292, %v566, %v568
      %v582 = vsel %vm292, %v570, %v572
      %v583 = vsel %vm292, %v574, %v576
      %v584 = vsel %vm292, %v578, %v580
      %v589 = vadd.f32 %v529, %v581
      %v590 = vadd.f32 %v530, %v582
      %v591 = vadd.f32 %v531, %v583
      %v592 = vadd.f32 %v532, %v584
      %v593 = vlaneseq
      %v594 = vshrl.u32 %v593, 7
      %v595 = vsub.s32 1, %v594
      %v596 = vrot.slane %v172, %v595
      %v597 = vmul.f32 %v176, %v596
      %v598 = vmul.f32 %v177, %v596
      %v599 = vmul.f32 %v178, %v596
      %v600 = vmul.f32 %v179, %v596
      %v601 = vadd.f32 %v589, %v597
      %v602 = vadd.f32 %v590, %v598
      %v603 = vadd.f32 %v591, %v599
      %v604 = vadd.f32 %v592, %v600
      %v605 = vlaneseq
      %v606 = vshrl.u32 %v605, 7
      %v607 = vsub.s32 2, %v606
      %v608 = vrot.slane %v172, %v607
      %610 = vrot.lane.b32.xlu0 %v608, 32
      %v611 = vpop.permute.xlu0 %610
      %v613 = vmul.f32 %v176, %v611
      %v614 = vmul.f32 %v182, %v611
      %v615 = vmul.f32 %v177, %v611
      %v616 = vmul.f32 %v183, %v611
      %v617 = vmul.f32 %v178, %v611
      %v618 = vmul.f32 %v184, %v611
      %v619 = vmul.f32 %v179, %v611
      %v620 = vmul.f32 %v185, %v611
      %629 = vrot.lane.b32.xlu0 %v613, 96
      %v630 = vpop.permute.xlu0 %629
      %631 = vrot.lane.b32.xlu0 %v614, 96
      %v632 = vpop.permute.xlu0 %631
      %633 = vrot.lane.b32.xlu0 %v615, 96
      %v634 = vpop.permute.xlu0 %633
      %635 = vrot.lane.b32.xlu0 %v616, 96
      %v636 = vpop.permute.xlu0 %635
      %637 = vrot.lane.b32.xlu0 %v617, 96
      %v638 = vpop.permute.xlu0 %637
      %639 = vrot.lane.b32.xlu0 %v618, 96
      %v640 = vpop.permute.xlu0 %639
      %641 = vrot.lane.b32.xlu0 %v619, 96
      %v642 = vpop.permute.xlu0 %641
      %643 = vrot.lane.b32.xlu0 %v620, 96
      %v644 = vpop.permute.xlu0 %643
      %v645 = vsel %vm239, %v630, %v632
      %v646 = vsel %vm239, %v634, %v636
      %v647 = vsel %vm239, %v638, %v640
      %v648 = vsel %vm239, %v642, %v644
      %v653 = vadd.f32 %v601, %v645
      %v654 = vadd.f32 %v602, %v646
      %v655 = vadd.f32 %v603, %v647
      %v656 = vadd.f32 %v604, %v648
      %v657 = vlaneseq
      %v658 = vshrl.u32 %v657, 7
      %v659 = vsub.s32 3, %v658
      %v660 = vrot.slane %v172, %v659
      %662 = vrot.lane.b32.xlu0 %v660, 64
      %v663 = vpop.permute.xlu0 %662
      %v665 = vmul.f32 %v176, %v663
      %v666 = vmul.f32 %v182, %v663
      %v667 = vmul.f32 %v177, %v663
      %v668 = vmul.f32 %v183, %v663
      %v669 = vmul.f32 %v178, %v663
      %v670 = vmul.f32 %v184, %v663
      %v671 = vmul.f32 %v179, %v663
      %v672 = vmul.f32 %v185, %v663
      %681 = vrot.lane.b32.xlu0 %v665, 64
      %v682 = vpop.permute.xlu0 %681
      %683 = vrot.lane.b32.xlu0 %v666, 64
      %v684 = vpop.permute.xlu0 %683
      %685 = vrot.lane.b32.xlu0 %v667, 64
      %v686 = vpop.permute.xlu0 %685
      %687 = vrot.lane.b32.xlu0 %v668, 64
      %v688 = vpop.permute.xlu0 %687
      %689 = vrot.lane.b32.xlu0 %v669, 64
      %v690 = vpop.permute.xlu0 %689
      %691 = vrot.lane.b32.xlu0 %v670, 64
      %v692 = vpop.permute.xlu0 %691
      %693 = vrot.lane.b32.xlu0 %v671, 64
      %v694 = vpop.permute.xlu0 %693
      %695 = vrot.lane.b32.xlu0 %v672, 64
      %v696 = vpop.permute.xlu0 %695
      %v697 = vsel %vm292, %v682, %v684
      %v698 = vsel %vm292, %v686, %v688
      %v699 = vsel %vm292, %v690, %v692
      %v700 = vsel %vm292, %v694, %v696
      %v705 = vadd.f32 %v653, %v697
      %v706 = vadd.f32 %v654, %v698
      %v707 = vadd.f32 %v655, %v699
      %v708 = vadd.f32 %v656, %v700
      %v709 = vlaneseq
      %v710 = vshrl.u32 %v709, 7
      %v711 = vsub.s32 4, %v710
      %v712 = vrot.slane %v172, %v711
      %v713 = vmul.f32 %v176, %v712
      %v714 = vmul.f32 %v177, %v712
      %v715 = vmul.f32 %v178, %v712
      %v716 = vmul.f32 %v179, %v712
      %v721 = vrot.slane %v713, 1
      %v722 = vrot.slane %v714, 1
      %v723 = vrot.slane %v715, 1
      %v724 = vrot.slane %v716, 1
      %v729 = vadd.f32 %v705, %v721
      %v730 = vadd.f32 %v706, %v722
      %v731 = vadd.f32 %v707, %v723
      %v732 = vadd.f32 %v708, %v724
      %v733 = vlaneseq
      %v734 = vshrl.u32 %v733, 7
      %v735 = vsub.s32 5, %v734
      %v736 = vrot.slane %v172, %v735
      %738 = vrot.lane.b32.xlu0 %v736, 32
      %v739 = vpop.permute.xlu0 %738
      %v741 = vmul.f32 %v176, %v739
      %v742 = vmul.f32 %v182, %v739
      %v743 = vmul.f32 %v177, %v739
      %v744 = vmul.f32 %v183, %v739
      %v745 = vmul.f32 %v178, %v739
      %v746 = vmul.f32 %v184, %v739
      %v747 = vmul.f32 %v179, %v739
      %v748 = vmul.f32 %v185, %v739
      %v757 = vrot.slane %v741, 1
      %v758 = vrot.slane %v742, 1
      %v759 = vrot.slane %v743, 1
      %v760 = vrot.slane %v744, 1
      %v761 = vrot.slane %v745, 1
      %v762 = vrot.slane %v746, 1
      %v763 = vrot.slane %v747, 1
      %v764 = vrot.slane %v748, 1
      %765 = vrot.lane.b32.xlu0 %v757, 96
      %v766 = vpop.permute.xlu0 %765
      %767 = vrot.lane.b32.xlu0 %v758, 96
      %v768 = vpop.permute.xlu0 %767
      %769 = vrot.lane.b32.xlu0 %v759, 96
      %v770 = vpop.permute.xlu0 %769
      %771 = vrot.lane.b32.xlu0 %v760, 96
      %v772 = vpop.permute.xlu0 %771
      %773 = vrot.lane.b32.xlu0 %v761, 96
      %v774 = vpop.permute.xlu0 %773
      %775 = vrot.lane.b32.xlu0 %v762, 96
      %v776 = vpop.permute.xlu0 %775
      %777 = vrot.lane.b32.xlu0 %v763, 96
      %v778 = vpop.permute.xlu0 %777
      %779 = vrot.lane.b32.xlu0 %v764, 96
      %v780 = vpop.permute.xlu0 %779
      %v781 = vsel %vm239, %v766, %v768
      %v782 = vsel %vm239, %v770, %v772
      %v783 = vsel %vm239, %v774, %v776
      %v784 = vsel %vm239, %v778, %v780
      %v789 = vadd.f32 %v729, %v781
      %v790 = vadd.f32 %v730, %v782
      %v791 = vadd.f32 %v731, %v783
      %v792 = vadd.f32 %v732, %v784
      %v793 = vlaneseq
      %v794 = vshrl.u32 %v793, 7
      %v795 = vsub.s32 6, %v794
      %v796 = vrot.slane %v172, %v795
      %798 = vrot.lane.b32.xlu0 %v796, 64
      %v799 = vpop.permute.xlu0 %798
      %v801 = vmul.f32 %v176, %v799
      %v802 = vmul.f32 %v182, %v799
      %v803 = vmul.f32 %v177, %v799
      %v804 = vmul.f32 %v183, %v799
      %v805 = vmul.f32 %v178, %v799
      %v806 = vmul.f32 %v184, %v799
      %v807 = vmul.f32 %v179, %v799
      %v808 = vmul.f32 %v185, %v799
      %v817 = vrot.slane %v801, 1
      %v818 = vrot.slane %v802, 1
      %v819 = vrot.slane %v803, 1
      %v820 = vrot.slane %v804, 1
      %v821 = vrot.slane %v805, 1
      %v822 = vrot.slane %v806, 1
      %v823 = vrot.slane %v807, 1
      %v824 = vrot.slane %v808, 1
      %825 = vrot.lane.b32.xlu0 %v817, 64
      %v826 = vpop.permute.xlu0 %825
      %827 = vrot.lane.b32.xlu0 %v818, 64
      %v828 = vpop.permute.xlu0 %827
      %829 = vrot.lane.b32.xlu0 %v819, 64
      %v830 = vpop.permute.xlu0 %829
      %831 = vrot.lane.b32.xlu0 %v820, 64
      %v832 = vpop.permute.xlu0 %831
      %833 = vrot.lane.b32.xlu0 %v821, 64
      %v834 = vpop.permute.xlu0 %833
      %835 = vrot.lane.b32.xlu0 %v822, 64
      %v836 = vpop.permute.xlu0 %835
      %837 = vrot.lane.b32.xlu0 %v823, 64
      %v838 = vpop.permute.xlu0 %837
      %839 = vrot.lane.b32.xlu0 %v824, 64
      %v840 = vpop.permute.xlu0 %839
      %v841 = vsel %vm292, %v826, %v828
      %v842 = vsel %vm292, %v830, %v832
      %v843 = vsel %vm292, %v834, %v836
      %v844 = vsel %vm292, %v838, %v840
      %v849 = vadd.f32 %v789, %v841
      %v850 = vadd.f32 %v790, %v842
      %v851 = vadd.f32 %v791, %v843
      %v852 = vadd.f32 %v792, %v844
      %v853 = vlaneseq
      %v854 = vshrl.u32 %v853, 7
      %v855 = vsub.s32 7, %v854
      %v856 = vrot.slane %v172, %v855
      %v857 = vmul.f32 %v176, %v856
      %v858 = vmul.f32 %v177, %v856
      %v859 = vmul.f32 %v178, %v856
      %v860 = vmul.f32 %v179, %v856
      %v865 = vrot.slane %v857, 2
      %v866 = vrot.slane %v858, 2
      %v867 = vrot.slane %v859, 2
      %v868 = vrot.slane %v860, 2
      %v873 = vadd.f32 %v849, %v865
      %v874 = vadd.f32 %v850, %v866
      %v875 = vadd.f32 %v851, %v867
      %v876 = vadd.f32 %v852, %v868
      %v877 = vlaneseq
      %v878 = vshrl.u32 %v877, 7
      %v879 = vsub.s32 0, %v878
      %v880 = vrot.slane %v173, %v879
      %882 = vrot.lane.b32.xlu0 %v880, 32
      %v883 = vpop.permute.xlu0 %882
      %v885 = vmul.f32 %v176, %v883
      %v886 = vmul.f32 %v182, %v883
      %v887 = vmul.f32 %v177, %v883
      %v888 = vmul.f32 %v183, %v883
      %v889 = vmul.f32 %v178, %v883
      %v890 = vmul.f32 %v184, %v883
      %v891 = vmul.f32 %v179, %v883
      %v892 = vmul.f32 %v185, %v883
      %v901 = vrot.slane %v885, 2
      %v902 = vrot.slane %v886, 2
      %v903 = vrot.slane %v887, 2
      %v904 = vrot.slane %v888, 2
      %v905 = vrot.slane %v889, 2
      %v906 = vrot.slane %v890, 2
      %v907 = vrot.slane %v891, 2
      %v908 = vrot.slane %v892, 2
      %909 = vrot.lane.b32.xlu0 %v901, 96
      %v910 = vpop.permute.xlu0 %909
      %911 = vrot.lane.b32.xlu0 %v902, 96
      %v912 = vpop.permute.xlu0 %911
      %913 = vrot.lane.b32.xlu0 %v903, 96
      %v914 = vpop.permute.xlu0 %913
      %915 = vrot.lane.b32.xlu0 %v904, 96
      %v916 = vpop.permute.xlu0 %915
      %917 = vrot.lane.b32.xlu0 %v905, 96
      %v918 = vpop.permute.xlu0 %917
      %919 = vrot.lane.b32.xlu0 %v906, 96
      %v920 = vpop.permute.xlu0 %919
      %921 = vrot.lane.b32.xlu0 %v907, 96
      %v922 = vpop.permute.xlu0 %921
      %923 = vrot.lane.b32.xlu0 %v908, 96
      %v924 = vpop.permute.xlu0 %923
      %v925 = vsel %vm239, %v910, %v912
      %v926 = vsel %vm239, %v914, %v916
      %v927 = vsel %vm239, %v918, %v920
      %v928 = vsel %vm239, %v922, %v924
      %v933 = vadd.f32 %v873, %v925
      %v934 = vadd.f32 %v874, %v926
      %v935 = vadd.f32 %v875, %v927
      %v936 = vadd.f32 %v876, %v928
      %v937 = vlaneseq
      %v938 = vshrl.u32 %v937, 7
      %v939 = vsub.s32 1, %v938
      %v940 = vrot.slane %v173, %v939
      %942 = vrot.lane.b32.xlu0 %v940, 64
      %v943 = vpop.permute.xlu0 %942
      %v945 = vmul.f32 %v176, %v943
      %v946 = vmul.f32 %v182, %v943
      %v947 = vmul.f32 %v177, %v943
      %v948 = vmul.f32 %v183, %v943
      %v949 = vmul.f32 %v178, %v943
      %v950 = vmul.f32 %v184, %v943
      %v951 = vmul.f32 %v179, %v943
      %v952 = vmul.f32 %v185, %v943
      %v961 = vrot.slane %v945, 2
      %v962 = vrot.slane %v946, 2
      %v963 = vrot.slane %v947, 2
      %v964 = vrot.slane %v948, 2
      %v965 = vrot.slane %v949, 2
      %v966 = vrot.slane %v950, 2
      %v967 = vrot.slane %v951, 2
      %v968 = vrot.slane %v952, 2
      %969 = vrot.lane.b32.xlu0 %v961, 64
      %v970 = vpop.permute.xlu0 %969
      %971 = vrot.lane.b32.xlu0 %v962, 64
      %v972 = vpop.permute.xlu0 %971
      %973 = vrot.lane.b32.xlu0 %v963, 64
      %v974 = vpop.permute.xlu0 %973
      %975 = vrot.lane.b32.xlu0 %v964, 64
      %v976 = vpop.permute.xlu0 %975
      %977 = vrot.lane.b32.xlu0 %v965, 64
      %v978 = vpop.permute.xlu0 %977
      %979 = vrot.lane.b32.xlu0 %v966, 64
      %v980 = vpop.permute.xlu0 %979
      %981 = vrot.lane.b32.xlu0 %v967, 64
      %v982 = vpop.permute.xlu0 %981
      %983 = vrot.lane.b32.xlu0 %v968, 64
      %v984 = vpop.permute.xlu0 %983
      %v985 = vsel %vm292, %v970, %v972
      %v986 = vsel %vm292, %v974, %v976
      %v987 = vsel %vm292, %v978, %v980
      %v988 = vsel %vm292, %v982, %v984
      %v993 = vadd.f32 %v933, %v985
      %v994 = vadd.f32 %v934, %v986
      %v995 = vadd.f32 %v935, %v987
      %v996 = vadd.f32 %v936, %v988
      %v997 = vlaneseq
      %v998 = vshrl.u32 %v997, 7
      %v999 = vsub.s32 2, %v998
      %v1000 = vrot.slane %v173, %v999
      %v1001 = vmul.f32 %v177, %v1000
      %v1002 = vmul.f32 %v178, %v1000
      %v1003 = vmul.f32 %v179, %v1000
      %v1004 = vmul.f32 %v180, %v1000
      %v1005 = vadd.f32 %v993, %v1001
      %v1006 = vadd.f32 %v994, %v1002
      %v1007 = vadd.f32 %v995, %v1003
      %v1008 = vadd.f32 %v996, %v1004
      %v1009 = vlaneseq
      %v1010 = vshrl.u32 %v1009, 7
      %v1011 = vsub.s32 3, %v1010
      %v1012 = vrot.slane %v173, %v1011
      %1014 = vrot.lane.b32.xlu0 %v1012, 32
      %v1015 = vpop.permute.xlu0 %1014
      %v1017 = vmul.f32 %v177, %v1015
      %v1018 = vmul.f32 %v183, %v1015
      %v1019 = vmul.f32 %v178, %v1015
      %v1020 = vmul.f32 %v184, %v1015
      %v1021 = vmul.f32 %v179, %v1015
      %v1022 = vmul.f32 %v185, %v1015
      %v1023 = vmul.f32 %v180, %v1015
      %v1024 = vmul.f32 %v186, %v1015
      %1033 = vrot.lane.b32.xlu0 %v1017, 96
      %v1034 = vpop.permute.xlu0 %1033
      %1035 = vrot.lane.b32.xlu0 %v1018, 96
      %v1036 = vpop.permute.xlu0 %1035
      %1037 = vrot.lane.b32.xlu0 %v1019, 96
      %v1038 = vpop.permute.xlu0 %1037
      %1039 = vrot.lane.b32.xlu0 %v1020, 96
      %v1040 = vpop.permute.xlu0 %1039
      %1041 = vrot.lane.b32.xlu0 %v1021, 96
      %v1042 = vpop.permute.xlu0 %1041
      %1043 = vrot.lane.b32.xlu0 %v1022, 96
      %v1044 = vpop.permute.xlu0 %1043
      %1045 = vrot.lane.b32.xlu0 %v1023, 96
      %v1046 = vpop.permute.xlu0 %1045
      %1047 = vrot.lane.b32.xlu0 %v1024, 96
      %v1048 = vpop.permute.xlu0 %1047
      %v1049 = vsel %vm239, %v1034, %v1036
      %v1050 = vsel %vm239, %v1038, %v1040
      %v1051 = vsel %vm239, %v1042, %v1044
      %v1052 = vsel %vm239, %v1046, %v1048
      %v1057 = vadd.f32 %v1005, %v1049
      %v1058 = vadd.f32 %v1006, %v1050
      %v1059 = vadd.f32 %v1007, %v1051
      %v1060 = vadd.f32 %v1008, %v1052
      %v1061 = vlaneseq
      %v1062 = vshrl.u32 %v1061, 7
      %v1063 = vsub.s32 4, %v1062
      %v1064 = vrot.slane %v173, %v1063
      %1066 = vrot.lane.b32.xlu0 %v1064, 64
      %v1067 = vpop.permute.xlu0 %1066
      %v1069 = vmul.f32 %v177, %v1067
      %v1070 = vmul.f32 %v183, %v1067
      %v1071 = vmul.f32 %v178, %v1067
      %v1072 = vmul.f32 %v184, %v1067
      %v1073 = vmul.f32 %v179, %v1067
      %v1074 = vmul.f32 %v185, %v1067
      %v1075 = vmul.f32 %v180, %v1067
      %v1076 = vmul.f32 %v186, %v1067
      %1085 = vrot.lane.b32.xlu0 %v1069, 64
      %v1086 = vpop.permute.xlu0 %1085
      %1087 = vrot.lane.b32.xlu0 %v1070, 64
      %v1088 = vpop.permute.xlu0 %1087
      %1089 = vrot.lane.b32.xlu0 %v1071, 64
      %v1090 = vpop.permute.xlu0 %1089
      %1091 = vrot.lane.b32.xlu0 %v1072, 64
      %v1092 = vpop.permute.xlu0 %1091
      %1093 = vrot.lane.b32.xlu0 %v1073, 64
      %v1094 = vpop.permute.xlu0 %1093
      %1095 = vrot.lane.b32.xlu0 %v1074, 64
      %v1096 = vpop.permute.xlu0 %1095
      %1097 = vrot.lane.b32.xlu0 %v1075, 64
      %v1098 = vpop.permute.xlu0 %1097
      %1099 = vrot.lane.b32.xlu0 %v1076, 64
      %v1100 = vpop.permute.xlu0 %1099
      %v1101 = vsel %vm292, %v1086, %v1088
      %v1102 = vsel %vm292, %v1090, %v1092
      %v1103 = vsel %vm292, %v1094, %v1096
      %v1104 = vsel %vm292, %v1098, %v1100
      %v1109 = vadd.f32 %v1057, %v1101
      %v1110 = vadd.f32 %v1058, %v1102
      %v1111 = vadd.f32 %v1059, %v1103
      %v1112 = vadd.f32 %v1060, %v1104
      %v1113 = vlaneseq
      %v1114 = vshrl.u32 %v1113, 7
      %v1115 = vsub.s32 5, %v1114
      %v1116 = vrot.slane %v173, %v1115
      %v1117 = vmul.f32 %v177, %v1116
      %v1118 = vmul.f32 %v178, %v1116
      %v1119 = vmul.f32 %v179, %v1116
      %v1120 = vmul.f32 %v180, %v1116
      %v1125 = vrot.slane %v1117, 1
      %v1126 = vrot.slane %v1118, 1
      %v1127 = vrot.slane %v1119, 1
      %v1128 = vrot.slane %v1120, 1
      %v1133 = vadd.f32 %v1109, %v1125
      %v1134 = vadd.f32 %v1110, %v1126
      %v1135 = vadd.f32 %v1111, %v1127
      %v1136 = vadd.f32 %v1112, %v1128
      %v1137 = vlaneseq
      %v1138 = vshrl.u32 %v1137, 7
      %v1139 = vsub.s32 6, %v1138
      %v1140 = vrot.slane %v173, %v1139
      %1142 = vrot.lane.b32.xlu0 %v1140, 32
      %v1143 = vpop.permute.xlu0 %1142
      %v1145 = vmul.f32 %v177, %v1143
      %v1146 = vmul.f32 %v183, %v1143
      %v1147 = vmul.f32 %v178, %v1143
      %v1148 = vmul.f32 %v184, %v1143
      %v1149 = vmul.f32 %v179, %v1143
      %v1150 = vmul.f32 %v185, %v1143
      %v1151 = vmul.f32 %v180, %v1143
      %v1152 = vmul.f32 %v186, %v1143
      %v1161 = vrot.slane %v1145, 1
      %v1162 = vrot.slane %v1146, 1
      %v1163 = vrot.slane %v1147, 1
      %v1164 = vrot.slane %v1148, 1
      %v1165 = vrot.slane %v1149, 1
      %v1166 = vrot.slane %v1150, 1
      %v1167 = vrot.slane %v1151, 1
      %v1168 = vrot.slane %v1152, 1
      %1169 = vrot.lane.b32.xlu0 %v1161, 96
      %v1170 = vpop.permute.xlu0 %1169
      %1171 = vrot.lane.b32.xlu0 %v1162, 96
      %v1172 = vpop.permute.xlu0 %1171
      %1173 = vrot.lane.b32.xlu0 %v1163, 96
      %v1174 = vpop.permute.xlu0 %1173
      %1175 = vrot.lane.b32.xlu0 %v1164, 96
      %v1176 = vpop.permute.xlu0 %1175
      %1177 = vrot.lane.b32.xlu0 %v1165, 96
      %v1178 = vpop.permute.xlu0 %1177
      %1179 = vrot.lane.b32.xlu0 %v1166, 96
      %v1180 = vpop.permute.xlu0 %1179
      %1181 = vrot.lane.b32.xlu0 %v1167, 96
      %v1182 = vpop.permute.xlu0 %1181
      %1183 = vrot.lane.b32.xlu0 %v1168, 96
      %v1184 = vpop.permute.xlu0 %1183
      %v1185 = vsel %vm239, %v1170, %v1172
      %v1186 = vsel %vm239, %v1174, %v1176
      %v1187 = vsel %vm239, %v1178, %v1180
      %v1188 = vsel %vm239, %v1182, %v1184
      %v1193 = vadd.f32 %v1133, %v1185
      %v1194 = vadd.f32 %v1134, %v1186
      %v1195 = vadd.f32 %v1135, %v1187
      %v1196 = vadd.f32 %v1136, %v1188
      %v1197 = vlaneseq
      %v1198 = vshrl.u32 %v1197, 7
      %v1199 = vsub.s32 7, %v1198
      %v1200 = vrot.slane %v173, %v1199
      %1202 = vrot.lane.b32.xlu0 %v1200, 64
      %v1203 = vpop.permute.xlu0 %1202
      %v1205 = vmul.f32 %v177, %v1203
      %v1206 = vmul.f32 %v183, %v1203
      %v1207 = vmul.f32 %v178, %v1203
      %v1208 = vmul.f32 %v184, %v1203
      %v1209 = vmul.f32 %v179, %v1203
      %v1210 = vmul.f32 %v185, %v1203
      %v1211 = vmul.f32 %v180, %v1203
      %v1212 = vmul.f32 %v186, %v1203
      %v1221 = vrot.slane %v1205, 1
      %v1222 = vrot.slane %v1206, 1
      %v1223 = vrot.slane %v1207, 1
      %v1224 = vrot.slane %v1208, 1
      %v1225 = vrot.slane %v1209, 1
      %v1226 = vrot.slane %v1210, 1
      %v1227 = vrot.slane %v1211, 1
      %v1228 = vrot.slane %v1212, 1
      %1229 = vrot.lane.b32.xlu0 %v1221, 64
      %v1230 = vpop.permute.xlu0 %1229
      %1231 = vrot.lane.b32.xlu0 %v1222, 64
      %v1232 = vpop.permute.xlu0 %1231
      %1233 = vrot.lane.b32.xlu0 %v1223, 64
      %v1234 = vpop.permute.xlu0 %1233
      %1235 = vrot.lane.b32.xlu0 %v1224, 64
      %v1236 = vpop.permute.xlu0 %1235
      %1237 = vrot.lane.b32.xlu0 %v1225, 64
      %v1238 = vpop.permute.xlu0 %1237
      %1239 = vrot.lane.b32.xlu0 %v1226, 64
      %v1240 = vpop.permute.xlu0 %1239
      %1241 = vrot.lane.b32.xlu0 %v1227, 64
      %v1242 = vpop.permute.xlu0 %1241
      %1243 = vrot.lane.b32.xlu0 %v1228, 64
      %v1244 = vpop.permute.xlu0 %1243
      %v1245 = vsel %vm292, %v1230, %v1232
      %v1246 = vsel %vm292, %v1234, %v1236
      %v1247 = vsel %vm292, %v1238, %v1240
      %v1248 = vsel %vm292, %v1242, %v1244
      %v1253 = vadd.f32 %v1193, %v1245
      %v1254 = vadd.f32 %v1194, %v1246
      %v1255 = vadd.f32 %v1195, %v1247
      %v1256 = vadd.f32 %v1196, %v1248
      %v1257 = vlaneseq
      %v1258 = vshrl.u32 %v1257, 7
      %v1259 = vsub.s32 0, %v1258
      %v1260 = vrot.slane %v174, %v1259
      %v1261 = vmul.f32 %v177, %v1260
      %v1262 = vmul.f32 %v178, %v1260
      %v1263 = vmul.f32 %v179, %v1260
      %v1264 = vmul.f32 %v180, %v1260
      %v1269 = vrot.slane %v1261, 2
      %v1270 = vrot.slane %v1262, 2
      %v1271 = vrot.slane %v1263, 2
      %v1272 = vrot.slane %v1264, 2
      %v1277 = vadd.f32 %v1253, %v1269
      %v1278 = vadd.f32 %v1254, %v1270
      %v1279 = vadd.f32 %v1255, %v1271
      %v1280 = vadd.f32 %v1256, %v1272
      %v1281 = vlaneseq
      %v1282 = vshrl.u32 %v1281, 7
      %v1283 = vsub.s32 1, %v1282
      %v1284 = vrot.slane %v174, %v1283
      %1286 = vrot.lane.b32.xlu0 %v1284, 32
      %v1287 = vpop.permute.xlu0 %1286
      %v1289 = vmul.f32 %v177, %v1287
      %v1290 = vmul.f32 %v183, %v1287
      %v1291 = vmul.f32 %v178, %v1287
      %v1292 = vmul.f32 %v184, %v1287
      %v1293 = vmul.f32 %v179, %v1287
      %v1294 = vmul.f32 %v185, %v1287
      %v1295 = vmul.f32 %v180, %v1287
      %v1296 = vmul.f32 %v186, %v1287
      %v1305 = vrot.slane %v1289, 2
      %v1306 = vrot.slane %v1290, 2
      %v1307 = vrot.slane %v1291, 2
      %v1308 = vrot.slane %v1292, 2
      %v1309 = vrot.slane %v1293, 2
      %v1310 = vrot.slane %v1294, 2
      %v1311 = vrot.slane %v1295, 2
      %v1312 = vrot.slane %v1296, 2
      %1313 = vrot.lane.b32.xlu0 %v1305, 96
      %v1314 = vpop.permute.xlu0 %1313
      %1315 = vrot.lane.b32.xlu0 %v1306, 96
      %v1316 = vpop.permute.xlu0 %1315
      %1317 = vrot.lane.b32.xlu0 %v1307, 96
      %v1318 = vpop.permute.xlu0 %1317
      %1319 = vrot.lane.b32.xlu0 %v1308, 96
      %v1320 = vpop.permute.xlu0 %1319
      %1321 = vrot.lane.b32.xlu0 %v1309, 96
      %v1322 = vpop.permute.xlu0 %1321
      %1323 = vrot.lane.b32.xlu0 %v1310, 96
      %v1324 = vpop.permute.xlu0 %1323
      %1325 = vrot.lane.b32.xlu0 %v1311, 96
      %v1326 = vpop.permute.xlu0 %1325
      %1327 = vrot.lane.b32.xlu0 %v1312, 96
      %v1328 = vpop.permute.xlu0 %1327
      %v1329 = vsel %vm239, %v1314, %v1316
      %v1330 = vsel %vm239, %v1318, %v1320
      %v1331 = vsel %vm239, %v1322, %v1324
      %v1332 = vsel %vm239, %v1326, %v1328
      %v1337 = vadd.f32 %v1277, %v1329
      %v1338 = vadd.f32 %v1278, %v1330
      %v1339 = vadd.f32 %v1279, %v1331
      %v1340 = vadd.f32 %v1280, %v1332
      %v1341 = vlaneseq
      %v1342 = vshrl.u32 %v1341, 7
      %v1343 = vsub.s32 2, %v1342
      %v1344 = vrot.slane %v174, %v1343
      %1346 = vrot.lane.b32.xlu0 %v1344, 64
      %v1347 = vpop.permute.xlu0 %1346
      %v1349 = vmul.f32 %v177, %v1347
      %v1350 = vmul.f32 %v183, %v1347
      %v1351 = vmul.f32 %v178, %v1347
      %v1352 = vmul.f32 %v184, %v1347
      %v1353 = vmul.f32 %v179, %v1347
      %v1354 = vmul.f32 %v185, %v1347
      %v1355 = vmul.f32 %v180, %v1347
      %v1356 = vmul.f32 %v186, %v1347
      %v1365 = vrot.slane %v1349, 2
      %v1366 = vrot.slane %v1350, 2
      %v1367 = vrot.slane %v1351, 2
      %v1368 = vrot.slane %v1352, 2
      %v1369 = vrot.slane %v1353, 2
      %v1370 = vrot.slane %v1354, 2
      %v1371 = vrot.slane %v1355, 2
      %v1372 = vrot.slane %v1356, 2
      %1373 = vrot.lane.b32.xlu0 %v1365, 64
      %v1374 = vpop.permute.xlu0 %1373
      %1375 = vrot.lane.b32.xlu0 %v1366, 64
      %v1376 = vpop.permute.xlu0 %1375
      %1377 = vrot.lane.b32.xlu0 %v1367, 64
      %v1378 = vpop.permute.xlu0 %1377
      %1379 = vrot.lane.b32.xlu0 %v1368, 64
      %v1380 = vpop.permute.xlu0 %1379
      %1381 = vrot.lane.b32.xlu0 %v1369, 64
      %v1382 = vpop.permute.xlu0 %1381
      %1383 = vrot.lane.b32.xlu0 %v1370, 64
      %v1384 = vpop.permute.xlu0 %1383
      %1385 = vrot.lane.b32.xlu0 %v1371, 64
      %v1386 = vpop.permute.xlu0 %1385
      %1387 = vrot.lane.b32.xlu0 %v1372, 64
      %v1388 = vpop.permute.xlu0 %1387
      %v1389 = vsel %vm292, %v1374, %v1376
      %v1390 = vsel %vm292, %v1378, %v1380
      %v1391 = vsel %vm292, %v1382, %v1384
      %v1392 = vsel %vm292, %v1386, %v1388
      %v1397 = vadd.f32 %v1337, %v1389
      %v1398 = vadd.f32 %v1338, %v1390
      %v1399 = vadd.f32 %v1339, %v1391
      %v1400 = vadd.f32 %v1340, %v1392
      %v1401 = vld [vmem:[%s2] sm:$0x1]
      %v1403 = vlaneseq
      %v1404 = vshrl.u32 %v1403, 7
      %v1405 = vsub.s32 0, %v1404
      %v1406 = vrot.slane %v1401, %v1405
      %v1408 = vadd.f32 %v1397, %v1406
      %v1409 = vadd.f32 %v1398, %v1406
      %v1410 = vadd.f32 %v1399, %v1406
      %v1411 = vadd.f32 %v1400, %v1406
      %v1412 = vxor.u32 %v1408, 2147483648
      %v1413 = vxor.u32 %v1409, 2147483648
      %v1414 = vxor.u32 %v1410, 2147483648
      %v1415 = vxor.u32 %v1411, 2147483648
      %v1416 = vmul.f32 %v1412, 1.442695
      %v1417 = vpow.pop %v1416
      %v1418 = vmul.f32 %v1413, 1.442695
      %v1419 = vpow.pop %v1418
      %v1420 = vmul.f32 %v1414, 1.442695
      %v1421 = vpow.pop %v1420
      %v1422 = vmul.f32 %v1415, 1.442695
      %v1423 = vpow.pop %v1422
      %v1424 = vadd.f32 %v1417, 1.0
      %v1425 = vadd.f32 %v1419, 1.0
      %v1426 = vadd.f32 %v1421, 1.0
      %v1427 = vadd.f32 %v1423, 1.0
      %v1428 = vrcp.pop %v1424
      %v1429 = vmul.f32 1.0, %v1428
      %v1430 = vrcp.pop %v1425
      %v1431 = vmul.f32 1.0, %v1430
      %v1432 = vrcp.pop %v1426
      %v1433 = vmul.f32 1.0, %v1432
      %v1434 = vrcp.pop %v1427
      %v1435 = vmul.f32 1.0, %v1434
      %v1436 = vmul.f32 %v1408, %v1429
      %v1437 = vmul.f32 %v1409, %v1431
      %v1438 = vmul.f32 %v1410, %v1433
      %v1439 = vmul.f32 %v1411, %v1435
      %1440 = vst [vmem:[%s170] sm:$0xf] %v1436
      %1441 = vst [vmem:[%s170 + $0x4] sm:$0xf] %v1437
      %1442 = vst [vmem:[%s170 + $0x8] sm:$0xf] %v1438
      %1443 = vst [vmem:[%s170 + $0xc] sm:$0xf] %v1439
      %p1444 = scmp.lt.s32.totalorder %s14, 1
      %s1445 = scalar_select %p1444, %s14, 1
      %s1446 = smul.addr %s1445, 4
      %s1447 = smul.addr %s1446, 4
      %s1448 = scalar_lea.vmem %s3, %s1447
      // Predicated region
      $region33: #{_lambda_.6} parent=31 // pred_check
        %p1449 = pneg %p100
      $region34: #{_lambda_.6} parent=31 // pred_check_branch
        %1451 = sbr.rel (%p1449) target = $region36
      $region35: #{_lambda_.6} parent=31 // pred_region
        _
      $region36: #{_lambda_.6} parent=31 // pred_fallthru
        _
    $region32: #{_lambda_.6} parent=5 // pred_fallthru
      _
    %p1452 = scmp.le.s32.totalorder 2, %s9
    // Predicated region
    $region37: #{_lambda_.6} parent=5 // pred_check
      %p1453 = pneg %p1452
    $region38: #{_lambda_.6} parent=5 // pred_check_branch
      %1455 = sbr.rel (%p1453) target = $region40
    $region39: #{_lambda_.6} parent=5 // pred_region
      %s1456 = ssub.s32 %s9, 2
      // Predicated region
      $region41: #{_lambda_.6} parent=39 // pred_check
        %p1457 = pneg %p106
      $region42: #{_lambda_.6} parent=39 // pred_check_branch
        %1459 = sbr.rel (%p1457) target = $region44
      $region43: #{_lambda_.6} parent=39 // pred_region
        %p1460 = scmp.lt.s32.totalorder %s15, 1
        %s1461 = scalar_select %p1460, %s15, 1
        %s1462 = smul.addr %s1461, 4
        %s1463 = smul.addr %s1462, 4
        %s1464 = scalar_lea.vmem %s3, %s1463
      $region44: #{_lambda_.6} parent=39 // pred_fallthru
        _
    $region40: #{_lambda_.6} parent=5 // pred_fallthru
      _
  $region6: #{_lambda_.6} parent=0 // loop_footer
    %s13 = sadd.s32 1, %s9
  $region7: #{_lambda_.6} parent=0 // loop_footer_branch
    %8 = sbr.rel target = $region3
  $region8: #{_lambda_.6} parent=0 // loop_exit
    _

// kernel: _lambda_.9
$region0: #{_lambda_.9}
  #allocation0 [shape = 'u32[]', space=smem, size = 0x4, offset = 0x4, fixed_abs, tag = 'smem constant byte address 0x4 - core index']
  #allocation1 [shape = 'u32[144,128]{1,0:T(1,128)}', space=vmem, size = 0x12000, scoped, tag = 'internal scratch']
  %s0 = inlined_call_operand.vmem [shape: f32[128,32], index: 0, kind: input, shape index: {}]
  %s1 = inlined_call_operand.vmem [shape: f32[128,32], index: 1, kind: input, shape index: {}]
  %s2 = inlined_call_operand.vmem [shape: f32[1,32], index: 2, kind: input, shape index: {}]
  %s3 = inlined_call_operand.vmem [shape: f32[1,32], index: 3, kind: input, shape index: {}]
  %s4 = inlined_call_operand.vmem [shape: f32[32,32], index: 4, kind: input, shape index: {}]
  %s5 = inlined_call_operand.hbm [shape: f32[128,32], index: 5, kind: output, shape index: {}]
  %s6 = sld [smem:[#allocation0]]
  $region30: #{_lambda_.9} parent=0
    _
  %s8 = ssub.s32 1, %s6
  %s9 = scalar_select 0, %s8, %s6
  $region1: #{_lambda_.9} parent=0
    #allocation2 [shape = 'u8[65536]{0}', space=vmem, size = 0x10000, scoped, tag = 'output window, operand 0, single buffered']
    #allocation3 [shape = 's32[1]{0}', space=sflag, size = 0x4, scoped, tag = 'scoped memory for _lambda_.9']
    %10 = vsyncpa [#allocation3], 0
    // Predicated region
    $region2: #{_lambda_.9} parent=1 // pred_check
      _
    $region3: #{_lambda_.9} parent=1 // pred_check_branch
      %12 = sbr.rel (0) target = $region5
    $region4: #{_lambda_.9} parent=1 // pred_region
      _
    $region5: #{_lambda_.9} parent=1 // pred_fallthru
      _
    // Predicated region
    $region6: #{_lambda_.9} parent=1 // pred_check
      _
    $region7: #{_lambda_.9} parent=1 // pred_check_branch
      %14 = sbr.rel (0) target = $region9
    $region8: #{_lambda_.9} parent=1 // pred_region
      _
    $region9: #{_lambda_.9} parent=1 // pred_fallthru
      _
    // Predicated region
    $region10: #{_lambda_.9} parent=1 // pred_check
      _
    $region11: #{_lambda_.9} parent=1 // pred_check_branch
      %16 = sbr.rel (0) target = $region13
    $region12: #{_lambda_.9} parent=1 // pred_region
      _
    $region13: #{_lambda_.9} parent=1 // pred_fallthru
      _
    // Predicated region
    $region14: #{_lambda_.9} parent=1 // pred_check
      _
    $region15: #{_lambda_.9} parent=1 // pred_check_branch
      %18 = sbr.rel (0) target = $region17
    $region16: #{_lambda_.9} parent=1 // pred_region
      _
    $region17: #{_lambda_.9} parent=1 // pred_fallthru
      _
    // Predicated region
    $region18: #{_lambda_.9} parent=1 // pred_check
      _
    $region19: #{_lambda_.9} parent=1 // pred_check_branch
      %20 = sbr.rel (0) target = $region21
    $region20: #{_lambda_.9} parent=1 // pred_region
      _
    $region21: #{_lambda_.9} parent=1 // pred_fallthru
      _
    %v21 = vld [vmem:[%s0] sm:$0xff]
    %v22 = vld [vmem:[%s0 + $0x8] sm:$0xff]
    %v23 = vld [vmem:[%s0 + $0x10] sm:$0xff]
    %v24 = vld [vmem:[%s0 + $0x18] sm:$0xff]
    %v25 = vld [vmem:[%s0 + $0x20] sm:$0xff]
    %v26 = vld [vmem:[%s0 + $0x28] sm:$0xff]
    %v27 = vld [vmem:[%s0 + $0x30] sm:$0xff]
    %v28 = vld [vmem:[%s0 + $0x38] sm:$0xff]
    %v29 = vld [vmem:[%s0 + $0x40] sm:$0xff]
    %v30 = vld [vmem:[%s0 + $0x48] sm:$0xff]
    %v31 = vld [vmem:[%s0 + $0x50] sm:$0xff]
    %v32 = vld [vmem:[%s0 + $0x58] sm:$0xff]
    %v33 = vld [vmem:[%s0 + $0x60] sm:$0xff]
    %v34 = vld [vmem:[%s0 + $0x68] sm:$0xff]
    %v35 = vld [vmem:[%s0 + $0x70] sm:$0xff]
    %v36 = vld [vmem:[%s0 + $0x78] sm:$0xff]
    %vm37 = vcmask 261120
    %v38 = vsel %vm37, %v21, 0.0
    %39 = vadd.xlane.f32.xlu0 %v38
    %v40 = vpop.xlane.xlu0 %39
    %v41 = vsel %vm37, %v22, 0.0
    %42 = vadd.xlane.f32.xlu0 %v41
    %v43 = vpop.xlane.xlu0 %42
    %v44 = vsel %vm37, %v23, 0.0
    %45 = vadd.xlane.f32.xlu0 %v44
    %v46 = vpop.xlane.xlu0 %45
    %v47 = vsel %vm37, %v24, 0.0
    %48 = vadd.xlane.f32.xlu0 %v47
    %v49 = vpop.xlane.xlu0 %48
    %v50 = vsel %vm37, %v25, 0.0
    %51 = vadd.xlane.f32.xlu0 %v50
    %v52 = vpop.xlane.xlu0 %51
    %v53 = vsel %vm37, %v26, 0.0
    %54 = vadd.xlane.f32.xlu0 %v53
    %v55 = vpop.xlane.xlu0 %54
    %v56 = vsel %vm37, %v27, 0.0
    %57 = vadd.xlane.f32.xlu0 %v56
    %v58 = vpop.xlane.xlu0 %57
    %v59 = vsel %vm37, %v28, 0.0
    %60 = vadd.xlane.f32.xlu0 %v59
    %v61 = vpop.xlane.xlu0 %60
    %v62 = vsel %vm37, %v29, 0.0
    %63 = vadd.xlane.f32.xlu0 %v62
    %v64 = vpop.xlane.xlu0 %63
    %v65 = vsel %vm37, %v30, 0.0
    %66 = vadd.xlane.f32.xlu0 %v65
    %v67 = vpop.xlane.xlu0 %66
    %v68 = vsel %vm37, %v31, 0.0
    %69 = vadd.xlane.f32.xlu0 %v68
    %v70 = vpop.xlane.xlu0 %69
    %v71 = vsel %vm37, %v32, 0.0
    %72 = vadd.xlane.f32.xlu0 %v71
    %v73 = vpop.xlane.xlu0 %72
    %v74 = vsel %vm37, %v33, 0.0
    %75 = vadd.xlane.f32.xlu0 %v74
    %v76 = vpop.xlane.xlu0 %75
    %v77 = vsel %vm37, %v34, 0.0
    %78 = vadd.xlane.f32.xlu0 %v77
    %v79 = vpop.xlane.xlu0 %78
    %v80 = vsel %vm37, %v35, 0.0
    %81 = vadd.xlane.f32.xlu0 %v80
    %v82 = vpop.xlane.xlu0 %81
    %v83 = vsel %vm37, %v36, 0.0
    %84 = vadd.xlane.f32.xlu0 %v83
    %v85 = vpop.xlane.xlu0 %84
    %v86 = vrcp.pop 32.0
    %v87 = vmul.f32 %v40, %v86
    %v88 = vmul.f32 %v43, %v86
    %v89 = vmul.f32 %v46, %v86
    %v90 = vmul.f32 %v49, %v86
    %v91 = vmul.f32 %v52, %v86
    %v92 = vmul.f32 %v55, %v86
    %v93 = vmul.f32 %v58, %v86
    %v94 = vmul.f32 %v61, %v86
    %v95 = vmul.f32 %v64, %v86
    %v96 = vmul.f32 %v67, %v86
    %v97 = vmul.f32 %v70, %v86
    %v98 = vmul.f32 %v73, %v86
    %v99 = vmul.f32 %v76, %v86
    %v100 = vmul.f32 %v79, %v86
    %v101 = vmul.f32 %v82, %v86
    %v102 = vmul.f32 %v85, %v86
    %v103 = vsub.f32 %v21, %v87
    %v104 = vsub.f32 %v22, %v88
    %v105 = vsub.f32 %v23, %v89
    %v106 = vsub.f32 %v24, %v90
    %v107 = vsub.f32 %v25, %v91
    %v108 = vsub.f32 %v26, %v92
    %v109 = vsub.f32 %v27, %v93
    %v110 = vsub.f32 %v28, %v94
    %v111 = vsub.f32 %v29, %v95
    %v112 = vsub.f32 %v30, %v96
    %v113 = vsub.f32 %v31, %v97
    %v114 = vsub.f32 %v32, %v98
    %v115 = vsub.f32 %v33, %v99
    %v116 = vsub.f32 %v34, %v100
    %v117 = vsub.f32 %v35, %v101
    %v118 = vsub.f32 %v36, %v102
    %v119 = vmul.f32 %v103, %v103
    %v120 = vmul.f32 %v104, %v104
    %v121 = vmul.f32 %v105, %v105
    %v122 = vmul.f32 %v106, %v106
    %v123 = vmul.f32 %v107, %v107
    %v124 = vmul.f32 %v108, %v108
    %v125 = vmul.f32 %v109, %v109
    %v126 = vmul.f32 %v110, %v110
    %v127 = vmul.f32 %v111, %v111
    %v128 = vmul.f32 %v112, %v112
    %v129 = vmul.f32 %v113, %v113
    %v130 = vmul.f32 %v114, %v114
    %v131 = vmul.f32 %v115, %v115
    %v132 = vmul.f32 %v116, %v116
    %v133 = vmul.f32 %v117, %v117
    %v134 = vmul.f32 %v118, %v118
    %v135 = vsel %vm37, %v119, 0.0
    %136 = vadd.xlane.f32.xlu0 %v135
    %v137 = vpop.xlane.xlu0 %136
    %v138 = vsel %vm37, %v120, 0.0
    %139 = vadd.xlane.f32.xlu0 %v138
    %v140 = vpop.xlane.xlu0 %139
    %v141 = vsel %vm37, %v121, 0.0
    %142 = vadd.xlane.f32.xlu0 %v141
    %v143 = vpop.xlane.xlu0 %142
    %v144 = vsel %vm37, %v122, 0.0
    %145 = vadd.xlane.f32.xlu0 %v144
    %v146 = vpop.xlane.xlu0 %145
    %v147 = vsel %vm37, %v123, 0.0
    %148 = vadd.xlane.f32.xlu0 %v147
    %v149 = vpop.xlane.xlu0 %148
    %v150 = vsel %vm37, %v124, 0.0
    %151 = vadd.xlane.f32.xlu0 %v150
    %v152 = vpop.xlane.xlu0 %151
    %v153 = vsel %vm37, %v125, 0.0
    %154 = vadd.xlane.f32.xlu0 %v153
    %v155 = vpop.xlane.xlu0 %154
    %v156 = vsel %vm37, %v126, 0.0
    %157 = vadd.xlane.f32.xlu0 %v156
    %v158 = vpop.xlane.xlu0 %157
    %v159 = vsel %vm37, %v127, 0.0
    %160 = vadd.xlane.f32.xlu0 %v159
    %v161 = vpop.xlane.xlu0 %160
    %v162 = vsel %vm37, %v128, 0.0
    %163 = vadd.xlane.f32.xlu0 %v162
    %v164 = vpop.xlane.xlu0 %163
    %v165 = vsel %vm37, %v129, 0.0
    %166 = vadd.xlane.f32.xlu0 %v165
    %v167 = vpop.xlane.xlu0 %166
    %v168 = vsel %vm37, %v130, 0.0
    %169 = vadd.xlane.f32.xlu0 %v168
    %v170 = vpop.xlane.xlu0 %169
    %v171 = vsel %vm37, %v131, 0.0
    %172 = vadd.xlane.f32.xlu0 %v171
    %v173 = vpop.xlane.xlu0 %172
    %v174 = vsel %vm37, %v132, 0.0
    %175 = vadd.xlane.f32.xlu0 %v174
    %v176 = vpop.xlane.xlu0 %175
    %v177 = vsel %vm37, %v133, 0.0
    %178 = vadd.xlane.f32.xlu0 %v177
    %v179 = vpop.xlane.xlu0 %178
    %v180 = vsel %vm37, %v134, 0.0
    %181 = vadd.xlane.f32.xlu0 %v180
    %v182 = vpop.xlane.xlu0 %181
    %v183 = vmul.f32 %v137, %v86
    %v184 = vmul.f32 %v140, %v86
    %v185 = vmul.f32 %v143, %v86
    %v186 = vmul.f32 %v146, %v86
    %v187 = vmul.f32 %v149, %v86
    %v188 = vmul.f32 %v152, %v86
    %v189 = vmul.f32 %v155, %v86
    %v190 = vmul.f32 %v158, %v86
    %v191 = vmul.f32 %v161, %v86
    %v192 = vmul.f32 %v164, %v86
    %v193 = vmul.f32 %v167, %v86
    %v194 = vmul.f32 %v170, %v86
    %v195 = vmul.f32 %v173, %v86
    %v196 = vmul.f32 %v176, %v86
    %v197 = vmul.f32 %v179, %v86
    %v198 = vmul.f32 %v182, %v86
    %v199 = vadd.f32 %v183, 1e-05
    %v200 = vadd.f32 %v184, 1e-05
    %v201 = vadd.f32 %v185, 1e-05
    %v202 = vadd.f32 %v186, 1e-05
    %v203 = vadd.f32 %v187, 1e-05
    %v204 = vadd.f32 %v188, 1e-05
    %v205 = vadd.f32 %v189, 1e-05
    %v206 = vadd.f32 %v190, 1e-05
    %v207 = vadd.f32 %v191, 1e-05
    %v208 = vadd.f32 %v192, 1e-05
    %v209 = vadd.f32 %v193, 1e-05
    %v210 = vadd.f32 %v194, 1e-05
    %v211 = vadd.f32 %v195, 1e-05
    %v212 = vadd.f32 %v196, 1e-05
    %v213 = vadd.f32 %v197, 1e-05
    %v214 = vadd.f32 %v198, 1e-05
    %v215 = vrsqrt.pop %v199
    %v216 = vrsqrt.pop %v200
    %v217 = vrsqrt.pop %v201
    %v218 = vrsqrt.pop %v202
    %v219 = vrsqrt.pop %v203
    %v220 = vrsqrt.pop %v204
    %v221 = vrsqrt.pop %v205
    %v222 = vrsqrt.pop %v206
    %v223 = vrsqrt.pop %v207
    %v224 = vrsqrt.pop %v208
    %v225 = vrsqrt.pop %v209
    %v226 = vrsqrt.pop %v210
    %v227 = vrsqrt.pop %v211
    %v228 = vrsqrt.pop %v212
    %v229 = vrsqrt.pop %v213
    %v230 = vrsqrt.pop %v214
    %v231 = vmul.f32 %v103, %v215
    %v232 = vmul.f32 %v104, %v216
    %v233 = vmul.f32 %v105, %v217
    %v234 = vmul.f32 %v106, %v218
    %v235 = vmul.f32 %v107, %v219
    %v236 = vmul.f32 %v108, %v220
    %v237 = vmul.f32 %v109, %v221
    %v238 = vmul.f32 %v110, %v222
    %v239 = vmul.f32 %v111, %v223
    %v240 = vmul.f32 %v112, %v224
    %v241 = vmul.f32 %v113, %v225
    %v242 = vmul.f32 %v114, %v226
    %v243 = vmul.f32 %v115, %v227
    %v244 = vmul.f32 %v116, %v228
    %v245 = vmul.f32 %v117, %v229
    %v246 = vmul.f32 %v118, %v230
    %v247 = vld [vmem:[%s2] sm:$0x1]
    %v249 = vlaneseq
    %v250 = vshrl.u32 %v249, 7
    %v251 = vsub.s32 0, %v250
    %v252 = vrot.slane %v247, %v251
    %v254 = vmul.f32 %v231, %v252
    %v255 = vmul.f32 %v232, %v252
    %v256 = vmul.f32 %v233, %v252
    %v257 = vmul.f32 %v234, %v252
    %v258 = vmul.f32 %v235, %v252
    %v259 = vmul.f32 %v236, %v252
    %v260 = vmul.f32 %v237, %v252
    %v261 = vmul.f32 %v238, %v252
    %v262 = vmul.f32 %v239, %v252
    %v263 = vmul.f32 %v240, %v252
    %v264 = vmul.f32 %v241, %v252
    %v265 = vmul.f32 %v242, %v252
    %v266 = vmul.f32 %v243, %v252
    %v267 = vmul.f32 %v244, %v252
    %v268 = vmul.f32 %v245, %v252
    %v269 = vmul.f32 %v246, %v252
    %v270 = vld [vmem:[%s3] sm:$0x1]
    %v272 = vlaneseq
    %v273 = vshrl.u32 %v272, 7
    %v274 = vsub.s32 0, %v273
    %v275 = vrot.slane %v270, %v274
    %v277 = vadd.f32 %v254, %v275
    %v278 = vadd.f32 %v255, %v275
    %v279 = vadd.f32 %v256, %v275
    %v280 = vadd.f32 %v257, %v275
    %v281 = vadd.f32 %v258, %v275
    %v282 = vadd.f32 %v259, %v275
    %v283 = vadd.f32 %v260, %v275
    %v284 = vadd.f32 %v261, %v275
    %v285 = vadd.f32 %v262, %v275
    %v286 = vadd.f32 %v263, %v275
    %v287 = vadd.f32 %v264, %v275
    %v288 = vadd.f32 %v265, %v275
    %v289 = vadd.f32 %v266, %v275
    %v290 = vadd.f32 %v267, %v275
    %v291 = vadd.f32 %v268, %v275
    %v292 = vadd.f32 %v269, %v275
    %v293 = vld [vmem:[%s1] sm:$0xff]
    %v294 = vld [vmem:[%s1 + $0x8] sm:$0xff]
    %v295 = vld [vmem:[%s1 + $0x10] sm:$0xff]
    %v296 = vld [vmem:[%s1 + $0x18] sm:$0xff]
    %v297 = vld [vmem:[%s1 + $0x20] sm:$0xff]
    %v298 = vld [vmem:[%s1 + $0x28] sm:$0xff]
    %v299 = vld [vmem:[%s1 + $0x30] sm:$0xff]
    %v300 = vld [vmem:[%s1 + $0x38] sm:$0xff]
    %v301 = vld [vmem:[%s1 + $0x40] sm:$0xff]
    %v302 = vld [vmem:[%s1 + $0x48] sm:$0xff]
    %v303 = vld [vmem:[%s1 + $0x50] sm:$0xff]
    %v304 = vld [vmem:[%s1 + $0x58] sm:$0xff]
    %v305 = vld [vmem:[%s1 + $0x60] sm:$0xff]
    %v306 = vld [vmem:[%s1 + $0x68] sm:$0xff]
    %v307 = vld [vmem:[%s1 + $0x70] sm:$0xff]
    %v308 = vld [vmem:[%s1 + $0x78] sm:$0xff]
    %v309 = vmul.f32 %v277, %v293
    %v310 = vmul.f32 %v278, %v294
    %v311 = vmul.f32 %v279, %v295
    %v312 = vmul.f32 %v280, %v296
    %v313 = vmul.f32 %v281, %v297
    %v314 = vmul.f32 %v282, %v298
    %v315 = vmul.f32 %v283, %v299
    %v316 = vmul.f32 %v284, %v300
    %v317 = vmul.f32 %v285, %v301
    %v318 = vmul.f32 %v286, %v302
    %v319 = vmul.f32 %v287, %v303
    %v320 = vmul.f32 %v288, %v304
    %v321 = vmul.f32 %v289, %v305
    %v322 = vmul.f32 %v290, %v306
    %v323 = vmul.f32 %v291, %v307
    %v324 = vmul.f32 %v292, %v308
    %v325 = vxor.u32 %v293, 2147483648
    %v326 = vxor.u32 %v294, 2147483648
    %v327 = vxor.u32 %v295, 2147483648
    %v328 = vxor.u32 %v296, 2147483648
    %v329 = vxor.u32 %v297, 2147483648
    %v330 = vxor.u32 %v298, 2147483648
    %v331 = vxor.u32 %v299, 2147483648
    %v332 = vxor.u32 %v300, 2147483648
    %v333 = vxor.u32 %v301, 2147483648
    %v334 = vxor.u32 %v302, 2147483648
    %v335 = vxor.u32 %v303, 2147483648
    %v336 = vxor.u32 %v304, 2147483648
    %v337 = vxor.u32 %v305, 2147483648
    %v338 = vxor.u32 %v306, 2147483648
    %v339 = vxor.u32 %v307, 2147483648
    %v340 = vxor.u32 %v308, 2147483648
    %v341 = vmul.f32 %v325, 1.442695
    %v342 = vpow.pop %v341
    %v343 = vmul.f32 %v326, 1.442695
    %v344 = vpow.pop %v343
    %v345 = vmul.f32 %v327, 1.442695
    %v346 = vpow.pop %v345
    %v347 = vmul.f32 %v328, 1.442695
    %v348 = vpow.pop %v347
    %v349 = vmul.f32 %v329, 1.442695
    %v350 = vpow.pop %v349
    %v351 = vmul.f32 %v330, 1.442695
    %v352 = vpow.pop %v351
    %v353 = vmul.f32 %v331, 1.442695
    %v354 = vpow.pop %v353
    %v355 = vmul.f32 %v332, 1.442695
    %v356 = vpow.pop %v355
    %v357 = vmul.f32 %v333, 1.442695
    %v358 = vpow.pop %v357
    %v359 = vmul.f32 %v334, 1.442695
    %v360 = vpow.pop %v359
    %v361 = vmul.f32 %v335, 1.442695
    %v362 = vpow.pop %v361
    %v363 = vmul.f32 %v336, 1.442695
    %v364 = vpow.pop %v363
    %v365 = vmul.f32 %v337, 1.442695
    %v366 = vpow.pop %v365
    %v367 = vmul.f32 %v338, 1.442695
    %v368 = vpow.pop %v367
    %v369 = vmul.f32 %v339, 1.442695
    %v370 = vpow.pop %v369
    %v371 = vmul.f32 %v340, 1.442695
    %v372 = vpow.pop %v371
    %v373 = vadd.f32 %v342, 1.0
    %v374 = vadd.f32 %v344, 1.0
    %v375 = vadd.f32 %v346, 1.0
    %v376 = vadd.f32 %v348, 1.0
    %v377 = vadd.f32 %v350, 1.0
    %v378 = vadd.f32 %v352, 1.0
    %v379 = vadd.f32 %v354, 1.0
    %v380 = vadd.f32 %v356, 1.0
    %v381 = vadd.f32 %v358, 1.0
    %v382 = vadd.f32 %v360, 1.0
    %v383 = vadd.f32 %v362, 1.0
    %v384 = vadd.f32 %v364, 1.0
    %v385 = vadd.f32 %v366, 1.0
    %v386 = vadd.f32 %v368, 1.0
    %v387 = vadd.f32 %v370, 1.0
    %v388 = vadd.f32 %v372, 1.0
    %v389 = vrcp.pop %v373
    %v390 = vmul.f32 1.0, %v389
    %v391 = vrcp.pop %v374
    %v392 = vmul.f32 1.0, %v391
    %v393 = vrcp.pop %v375
    %v394 = vmul.f32 1.0, %v393
    %v395 = vrcp.pop %v376
    %v396 = vmul.f32 1.0, %v395
    %v397 = vrcp.pop %v377
    %v398 = vmul.f32 1.0, %v397
    %v399 = vrcp.pop %v378
    %v400 = vmul.f32 1.0, %v399
    %v401 = vrcp.pop %v379
    %v402 = vmul.f32 1.0, %v401
    %v403 = vrcp.pop %v380
    %v404 = vmul.f32 1.0, %v403
    %v405 = vrcp.pop %v381
    %v406 = vmul.f32 1.0, %v405
    %v407 = vrcp.pop %v382
    %v408 = vmul.f32 1.0, %v407
    %v409 = vrcp.pop %v383
    %v410 = vmul.f32 1.0, %v409
    %v411 = vrcp.pop %v384
    %v412 = vmul.f32 1.0, %v411
    %v413 = vrcp.pop %v385
    %v414 = vmul.f32 1.0, %v413
    %v415 = vrcp.pop %v386
    %v416 = vmul.f32 1.0, %v415
    %v417 = vrcp.pop %v387
    %v418 = vmul.f32 1.0, %v417
    %v419 = vrcp.pop %v388
    %v420 = vmul.f32 1.0, %v419
    %v421 = vmul.f32 %v309, %v390
    %v422 = vmul.f32 %v310, %v392
    %v423 = vmul.f32 %v311, %v394
    %v424 = vmul.f32 %v312, %v396
    %v425 = vmul.f32 %v313, %v398
    %v426 = vmul.f32 %v314, %v400
    %v427 = vmul.f32 %v315, %v402
    %v428 = vmul.f32 %v316, %v404
    %v429 = vmul.f32 %v317, %v406
    %v430 = vmul.f32 %v318, %v408
    %v431 = vmul.f32 %v319, %v410
    %v432 = vmul.f32 %v320, %v412
    %v433 = vmul.f32 %v321, %v414
    %v434 = vmul.f32 %v322, %v416
    %v435 = vmul.f32 %v323, %v418
    %v436 = vmul.f32 %v324, %v420
    %v437 = vld [vmem:[%s4] sm:$0xff]
    %v438 = vld [vmem:[%s4 + $0x8] sm:$0xff]
    %v439 = vld [vmem:[%s4 + $0x10] sm:$0xff]
    %v440 = vld [vmem:[%s4 + $0x18] sm:$0xff]
    %v442 = vsel %vm37, %v421, 0
    %v445 = vsel %vm37, %v422, 0
    %v448 = vsel %vm37, %v423, 0
    %v451 = vsel %vm37, %v424, 0
    %v454 = vsel %vm37, %v425, 0
    %v457 = vsel %vm37, %v426, 0
    %v460 = vsel %vm37, %v427, 0
    %v463 = vsel %vm37, %v428, 0
    %v466 = vsel %vm37, %v429, 0
    %v469 = vsel %vm37, %v430, 0
    %v472 = vsel %vm37, %v431, 0
    %v475 = vsel %vm37, %v432, 0
    %v478 = vsel %vm37, %v433, 0
    %v481 = vsel %vm37, %v434, 0
    %v484 = vsel %vm37, %v435, 0
    %v487 = vsel %vm37, %v436, 0
    %489 = vmatprep.subr.mxu0 0.0
    %490 = vmatpush1.msra.mxu0 0.0
    %491 = vmatprep.subr.mxu0 0.0
    %492 = vmatpush1.msra.mxu0 0.0
    %493 = vmatprep.subr.mxu0 0.0
    %494 = vmatpush1.msra.mxu0 0.0
    %495 = vmatprep.subr.mxu0 0.0
    %496 = vmatpush1.msra.mxu0 0.0
    %497 = vmatprep.subr.mxu0 0.0
    %498 = vmatpush1.msra.mxu0 0.0
    %499 = vmatprep.subr.mxu0 0.0
    %500 = vmatpush1.msra.mxu0 0.0
    %501 = vmatprep.subr.mxu0 0.0
    %502 = vmatpush1.msra.mxu0 0.0
    %503 = vmatprep.subr.mxu0 0.0
    %504 = vmatpush1.msra.mxu0 0.0
    %505 = vmatprep.subr.mxu0 0.0
    %506 = vmatpush1.msra.mxu0 0.0
    %507 = vmatprep.subr.mxu0 0.0
    %508 = vmatpush1.msra.mxu0 0.0
    %509 = vmatprep.subr.mxu0 0.0
    %510 = vmatpush1.msra.mxu0 0.0
    %511 = vmatprep.subr.mxu0 0.0
    %512 = vmatpush1.msra.mxu0 0.0
    %513 = vmatprep.subr.mxu0 0.0
    %514 = vmatpush1.msra.mxu0 %v440
    %515 = vmatprep.subr.mxu0 0.0
    %516 = vmatpush1.msra.mxu0 %v439
    %517 = vmatprep.subr.mxu0 0.0
    %518 = vmatpush1.msra.mxu0 %v438
    %519 = vmatprep.subr.mxu0 0.0
    %520 = vmatpush1.msra.mxu0 %v437
    %521 = vmatprep.subr.mxu0 0.0
    %522 = vmatpush2.msra.mxu0 0.0
    %523 = vmatprep.subr.mxu0 0.0
    %524 = vmatpush2.msra.mxu0 0.0
    %525 = vmatprep.subr.mxu0 0.0
    %526 = vmatpush2.msra.mxu0 0.0
    %527 = vmatprep.subr.mxu0 0.0
    %528 = vmatpush2.msra.mxu0 0.0
    %529 = vmatprep.subr.mxu0 0.0
    %530 = vmatpush2.msra.mxu0 0.0
    %531 = vmatprep.subr.mxu0 0.0
    %532 = vmatpush2.msra.mxu0 0.0
    %533 = vmatprep.subr.mxu0 0.0
    %534 = vmatpush2.msra.mxu0 0.0
    %535 = vmatprep.subr.mxu0 0.0
    %536 = vmatpush2.msra.mxu0 0.0
    %537 = vmatprep.subr.mxu0 0.0
    %538 = vmatpush2.msra.mxu0 0.0
    %539 = vmatprep.subr.mxu0 0.0
    %540 = vmatpush2.msra.mxu0 0.0
    %541 = vmatprep.subr.mxu0 0.0
    %542 = vmatpush2.msra.mxu0 0.0
    %543 = vmatprep.subr.mxu0 0.0
    %544 = vmatpush2.msra.mxu0 0.0
    %545 = vmatprep.subr.mxu0 0.0
    %546 = vmatpush2.msra.mxu0 0.0
    %547 = vmatprep.subr.mxu0 0.0
    %548 = vmatpush2.msra.mxu0 0.0
    %549 = vmatprep.subr.mxu0 0.0
    %550 = vmatpush2.msra.mxu0 0.0
    %551 = vmatprep.subr.mxu0 0.0
    %552 = vmatpush2.msra.mxu0 0.0
    %553 = vmatprep.mubr.f32.mxu0 0.0
    %554 = vmatmul.mubr.f32.gmra.mxu0 %v442
    %v555 = vpop.f32.mrf.mxu0
    %v556 = vadd.f32 0.0, %v555
    %v557 = vpop.f32.mrf.mxu0
    %558 = vmatprep.mubr.f32.mxu0 0.0
    %559 = vmatmul.mubr.f32.gmra.mxu0 %v445
    %v560 = vpop.f32.mrf.mxu0
    %v561 = vadd.f32 0.0, %v560
    %v562 = vpop.f32.mrf.mxu0
    %563 = vmatprep.mubr.f32.mxu0 0.0
    %564 = vmatmul.mubr.f32.gmra.mxu0 %v448
    %v565 = vpop.f32.mrf.mxu0
    %v566 = vadd.f32 0.0, %v565
    %v567 = vpop.f32.mrf.mxu0
    %568 = vmatprep.mubr.f32.mxu0 0.0
    %569 = vmatmul.mubr.f32.gmra.mxu0 %v451
    %v570 = vpop.f32.mrf.mxu0
    %v571 = vadd.f32 0.0, %v570
    %v572 = vpop.f32.mrf.mxu0
    %573 = vmatprep.mubr.f32.mxu0 0.0
    %574 = vmatmul.mubr.f32.gmra.mxu0 %v454
    %v575 = vpop.f32.mrf.mxu0
    %v576 = vadd.f32 0.0, %v575
    %v577 = vpop.f32.mrf.mxu0
    %578 = vmatprep.mubr.f32.mxu0 0.0
    %579 = vmatmul.mubr.f32.gmra.mxu0 %v457
    %v580 = vpop.f32.mrf.mxu0
    %v581 = vadd.f32 0.0, %v580
    %v582 = vpop.f32.mrf.mxu0
    %583 = vmatprep.mubr.f32.mxu0 0.0
    %584 = vmatmul.mubr.f32.gmra.mxu0 %v460
    %v585 = vpop.f32.mrf.mxu0
    %v586 = vadd.f32 0.0, %v585
    %v587 = vpop.f32.mrf.mxu0
    %588 = vmatprep.mubr.f32.mxu0 0.0
    %589 = vmatmul.mubr.f32.gmra.mxu0 %v463
    %v590 = vpop.f32.mrf.mxu0
    %v591 = vadd.f32 0.0, %v590
    %v592 = vpop.f32.mrf.mxu0
    %593 = vmatprep.mubr.f32.mxu0 0.0
    %594 = vmatmul.mubr.f32.gmra.mxu0 %v466
    %v595 = vpop.f32.mrf.mxu0
    %v596 = vadd.f32 0.0, %v595
    %v597 = vpop.f32.mrf.mxu0
    %598 = vmatprep.mubr.f32.mxu0 0.0
    %599 = vmatmul.mubr.f32.gmra.mxu0 %v469
    %v600 = vpop.f32.mrf.mxu0
    %v601 = vadd.f32 0.0, %v600
    %v602 = vpop.f32.mrf.mxu0
    %603 = vmatprep.mubr.f32.mxu0 0.0
    %604 = vmatmul.mubr.f32.gmra.mxu0 %v472
    %v605 = vpop.f32.mrf.mxu0
    %v606 = vadd.f32 0.0, %v605
    %v607 = vpop.f32.mrf.mxu0
    %608 = vmatprep.mubr.f32.mxu0 0.0
    %609 = vmatmul.mubr.f32.gmra.mxu0 %v475
    %v610 = vpop.f32.mrf.mxu0
    %v611 = vadd.f32 0.0, %v610
    %v612 = vpop.f32.mrf.mxu0
    %613 = vmatprep.mubr.f32.mxu0 0.0
    %614 = vmatmul.mubr.f32.gmra.mxu0 %v478
    %v615 = vpop.f32.mrf.mxu0
    %v616 = vadd.f32 0.0, %v615
    %v617 = vpop.f32.mrf.mxu0
    %618 = vmatprep.mubr.f32.mxu0 0.0
    %619 = vmatmul.mubr.f32.gmra.mxu0 %v481
    %v620 = vpop.f32.mrf.mxu0
    %v621 = vadd.f32 0.0, %v620
    %v622 = vpop.f32.mrf.mxu0
    %623 = vmatprep.mubr.f32.mxu0 0.0
    %624 = vmatmul.mubr.f32.gmra.mxu0 %v484
    %v625 = vpop.f32.mrf.mxu0
    %v626 = vadd.f32 0.0, %v625
    %v627 = vpop.f32.mrf.mxu0
    %628 = vmatprep.mubr.f32.mxu0 0.0
    %629 = vmatmul.mubr.f32.gmra.mxu0 %v487
    %v630 = vpop.f32.mrf.mxu0
    %v631 = vadd.f32 0.0, %v630
    %v632 = vpop.f32.mrf.mxu0
    %633 = vdwg.mxu0
    %634 = vst.msk [vmem:[#allocation2] sm:$0xff] %vm37, %v556
    %635 = vst.msk [vmem:[#allocation2 + $0x8] sm:$0xff] %vm37, %v561
    %636 = vst.msk [vmem:[#allocation2 + $0x10] sm:$0xff] %vm37, %v566
    %637 = vst.msk [vmem:[#allocation2 + $0x18] sm:$0xff] %vm37, %v571
    %638 = vst.msk [vmem:[#allocation2 + $0x20] sm:$0xff] %vm37, %v576
    %639 = vst.msk [vmem:[#allocation2 + $0x28] sm:$0xff] %vm37, %v581
    %640 = vst.msk [vmem:[#allocation2 + $0x30] sm:$0xff] %vm37, %v586
    %641 = vst.msk [vmem:[#allocation2 + $0x38] sm:$0xff] %vm37, %v591
    %642 = vst.msk [vmem:[#allocation2 + $0x40] sm:$0xff] %vm37, %v596
    %643 = vst.msk [vmem:[#allocation2 + $0x48] sm:$0xff] %vm37, %v601
    %644 = vst.msk [vmem:[#allocation2 + $0x50] sm:$0xff] %vm37, %v606
    %645 = vst.msk [vmem:[#allocation2 + $0x58] sm:$0xff] %vm37, %v611
    %646 = vst.msk [vmem:[#allocation2 + $0x60] sm:$0xff] %vm37, %v616
    %647 = vst.msk [vmem:[#allocation2 + $0x68] sm:$0xff] %vm37, %v621
    %648 = vst.msk [vmem:[#allocation2 + $0x70] sm:$0xff] %vm37, %v626
    %649 = vst.msk [vmem:[#allocation2 + $0x78] sm:$0xff] %vm37, %v631
    // Predicated region
    $region22: #{_lambda_.9} parent=1 // pred_check
      _
    $region23: #{_lambda_.9} parent=1 // pred_check_branch
      %651 = sbr.rel (0) target = $region25
    $region24: #{_lambda_.9} parent=1 // pred_region
      %s653 = ssub.s32 2048, 2048
      %654 = vsyncadd [#allocation3], %s653
      %s655 = sshll.u32 [#allocation2], 4
      %s656 = int_to_ptr.vmem [resolvable:$true] %s655
      %661 = dma.vmem_to_hbm [thread:$0]  %s656, 2048, %s5, [#allocation3], 128, 128, 8
    $region25: #{_lambda_.9} parent=1 // pred_fallthru
      _
    // Predicated region
    $region26: #{_lambda_.9} parent=1 // pred_check
      _
    $region27: #{_lambda_.9} parent=1 // pred_check_branch
      %663 = sbr.rel (0) target = $region29
    $region28: #{_lambda_.9} parent=1 // pred_region
      %664 = dma.done [#allocation3], 2048
    $region29: #{_lambda_.9} parent=1 // pred_fallthru
      _
    %665 = vsyncpa [#allocation3], 1

// kernel: _lambda_.8
$region0: #{_lambda_.8}
  #allocation0 [shape = 'u32[]', space=smem, size = 0x4, offset = 0x4, fixed_abs, tag = 'smem constant byte address 0x4 - core index']
  #allocation1 [shape = 'u32[144,128]{1,0:T(1,128)}', space=vmem, size = 0x12000, scoped, tag = 'internal scratch']
  #allocation2 [shape = 'f32[1,512]{1,0:T(1,128)}', space=vmem, size = 0x800, scoped, tag = 'scratch operand']
  #allocation3 [shape = 'f32[64,512]{1,0:T(8,128)}', space=vmem, size = 0x20000, scoped, tag = 'scratch operand']
  #allocation4 [shape = 'f32[64,512]{1,0:T(8,128)}', space=vmem, size = 0x20000, scoped, tag = 'scratch operand']
  %s0 = inlined_call_operand.vmem [shape: f32[2,512,32], index: 0, kind: input, shape index: {}]
  %s1 = inlined_call_operand.vmem [shape: f32[2,512,32], index: 1, kind: input, shape index: {}]
  %s2 = inlined_call_operand.vmem [shape: f32[2,512,16], index: 2, kind: input, shape index: {}]
  %s3 = inlined_call_operand.vmem [shape: f32[2,512,16], index: 3, kind: input, shape index: {}]
  %s4 = inlined_call_operand.vmem [shape: f32[1,512], index: 4, kind: input, shape index: {}]
  %s5 = inlined_call_operand.vmem [shape: f32[32,512], index: 5, kind: input, shape index: {}]
  %s6 = inlined_call_operand.vmem [shape: f32[16,512], index: 6, kind: input, shape index: {}]
  %s7 = inlined_call_operand.vmem [shape: f32[512,32], index: 7, kind: input, shape index: {}]
  %s8 = inlined_call_operand.vmem [shape: f32[1,32], index: 8, kind: input, shape index: {}]
  %s9 = inlined_call_operand.vmem [shape: f32[1,32], index: 9, kind: input, shape index: {}]
  %s10 = inlined_call_operand.vmem [shape: f32[2,64,32], index: 10, kind: output, shape index: {}]
  %s11 = sld [smem:[#allocation0]]
  $region88: #{_lambda_.8} parent=0
    _
  %s13 = ssub.s32 1, %s11
  %s14 = scalar_select 0, %s13, %s11
  loop: start=0, step=1, limit=18
  $region2: #{_lambda_.8} parent=0 // loop_pre_header
    _
  $region3: #{_lambda_.8} parent=0 // loop_header
    %s16 = sphi 0, %s20
    %p17 = scmp.ge.s32.totalorder %s16, 18
    %s23 = sphi 0, %s35
    %s24 = sphi 0, %s31
    %s25 = sphi 0, %s23
    %s26 = sphi 0, %s24
    %s27 = sphi 0, %s25
    %s28 = sphi 0, %s26
    %s40 = sphi 0, %s42
    %s43 = sphi 0, %s40
    %s44 = sphi 0, %s43
    %s60 = sphi 0, %s44
    %s68 = sphi 0, %s70
    %s71 = sphi 0, %s68
    %s72 = sphi 0, %s71
    %s88 = sphi 0, %s72
    %s96 = sphi 0, %s98
    %s99 = sphi 0, %s96
    %s100 = sphi 0, %s99
    %s116 = sphi 0, %s100
    %s124 = sphi 0, %s126
    %s127 = sphi 0, %s124
    %s128 = sphi 0, %s127
    %s144 = sphi 0, %s128
    %s148 = sphi 0, %s148
    %s150 = sphi 0, %s148
    %s151 = sphi 0, %s150
    %s165 = sphi 0, %s151
    %s169 = sphi 0, %s169
    %s171 = sphi 0, %s169
    %s172 = sphi 0, %s171
    %s186 = sphi 0, %s172
    %s190 = sphi 0, %s190
    %s192 = sphi 0, %s190
    %s193 = sphi 0, %s192
    %s207 = sphi 0, %s193
    %s211 = sphi 0, %s211
    %s213 = sphi 0, %s211
    %s214 = sphi 0, %s213
    %s228 = sphi 0, %s214
    %s232 = sphi 0, %s232
    %s234 = sphi 0, %s232
    %s235 = sphi 0, %s234
    %s249 = sphi 0, %s235
    %s253 = sphi 0, %s253
    %s255 = sphi 0, %s253
    %s256 = sphi 0, %s255
    %s270 = sphi 0, %s256
    %s284 = sphi 0, %s286
    %s287 = sphi 0, %s284
    %s288 = sphi 0, %s287
    %s304 = sphi 0, %s288
  $region4: #{_lambda_.8} parent=0 // loop_header_branch
    %19 = sbr.rel (%p17) target = $region8
  $region5: #{_lambda_.8} parent=0 // loop_body
    %s21 = ssub.s32 %s16, 1
    %s22 = ssub.s32 %s16, 2
    %s29 = sadd.s32 1, %s24
    %p30 = scmp.ge.s32.totalorder %s29, 8
    %s31 = scalar_select %p30, 0, %s29
    %s32 = sadd.s32 1, %s23
    %s33 = scalar_select %p30, %s32, %s23
    %p34 = scmp.ge.s32.totalorder %s33, 2
    %s35 = scalar_select %p34, 0, %s33
    %s36 = ssub.s32 %s23, %s35
    %s37 = ssub.s32 %s24, %s31
    %s38 = sor.u32 %s36, %s37
    %p39 = scmp.eq.s32.totalorder %s38, 0
    %s41 = sadd.s32 %s40, 1
    %s42 = scalar_select %p39, %s40, %s41
    %p45 = pneg %p39
    %p46 = scmp.eq.s32.totalorder %s16, 15
    %p47 = por %p45, %p46
    %p48 = scmp.ne.s32.totalorder %s40, %s43
    %p49 = scmp.eq.s32.totalorder %s16, 0
    %p50 = por %p48, %p49
    %p51 = scmp.ne.s32.totalorder %s40, %s43
    %p52 = scmp.eq.s32.totalorder %s21, 15
    %p53 = por %p51, %p52
    %p54 = scmp.ne.s32.totalorder %s43, %s44
    %p55 = scmp.eq.s32.totalorder %s21, 0
    %p56 = por %p54, %p55
    %p57 = scmp.ne.s32.totalorder %s43, %s44
    %p58 = scmp.eq.s32.totalorder %s22, 15
    %p59 = por %p57, %p58
    %p61 = scmp.ne.s32.totalorder %s44, %s60
    %p62 = scmp.eq.s32.totalorder %s22, 0
    %p63 = por %p61, %p62
    %s64 = ssub.s32 %s23, %s35
    %s65 = ssub.s32 %s24, %s31
    %s66 = sor.u32 %s64, %s65
    %p67 = scmp.eq.s32.totalorder %s66, 0
    %s69 = sadd.s32 %s68, 1
    %s70 = scalar_select %p67, %s68, %s69
    %p73 = pneg %p67
    %p74 = scmp.eq.s32.totalorder %s16, 15
    %p75 = por %p73, %p74
    %p76 = scmp.ne.s32.totalorder %s68, %s71
    %p77 = scmp.eq.s32.totalorder %s16, 0
    %p78 = por %p76, %p77
    %p79 = scmp.ne.s32.totalorder %s68, %s71
    %p80 = scmp.eq.s32.totalorder %s21, 15
    %p81 = por %p79, %p80
    %p82 = scmp.ne.s32.totalorder %s71, %s72
    %p83 = scmp.eq.s32.totalorder %s21, 0
    %p84 = por %p82, %p83
    %p85 = scmp.ne.s32.totalorder %s71, %s72
    %p86 = scmp.eq.s32.totalorder %s22, 15
    %p87 = por %p85, %p86
    %p89 = scmp.ne.s32.totalorder %s72, %s88
    %p90 = scmp.eq.s32.totalorder %s22, 0
    %p91 = por %p89, %p90
    %s92 = ssub.s32 %s23, %s35
    %s93 = ssub.s32 %s24, %s31
    %s94 = sor.u32 %s92, %s93
    %p95 = scmp.eq.s32.totalorder %s94, 0
    %s97 = sadd.s32 %s96, 1
    %s98 = scalar_select %p95, %s96, %s97
    %p101 = pneg %p95
    %p102 = scmp.eq.s32.totalorder %s16, 15
    %p103 = por %p101, %p102
    %p104 = scmp.ne.s32.totalorder %s96, %s99
    %p105 = scmp.eq.s32.totalorder %s16, 0
    %p106 = por %p104, %p105
    %p107 = scmp.ne.s32.totalorder %s96, %s99
    %p108 = scmp.eq.s32.totalorder %s21, 15
    %p109 = por %p107, %p108
    %p110 = scmp.ne.s32.totalorder %s99, %s100
    %p111 = scmp.eq.s32.totalorder %s21, 0
    %p112 = por %p110, %p111
    %p113 = scmp.ne.s32.totalorder %s99, %s100
    %p114 = scmp.eq.s32.totalorder %s22, 15
    %p115 = por %p113, %p114
    %p117 = scmp.ne.s32.totalorder %s100, %s116
    %p118 = scmp.eq.s32.totalorder %s22, 0
    %p119 = por %p117, %p118
    %s120 = ssub.s32 %s23, %s35
    %s121 = ssub.s32 %s24, %s31
    %s122 = sor.u32 %s120, %s121
    %p123 = scmp.eq.s32.totalorder %s122, 0
    %s125 = sadd.s32 %s124, 1
    %s126 = scalar_select %p123, %s124, %s125
    %p129 = pneg %p123
    %p130 = scmp.eq.s32.totalorder %s16, 15
    %p131 = por %p129, %p130
    %p132 = scmp.ne.s32.totalorder %s124, %s127
    %p133 = scmp.eq.s32.totalorder %s16, 0
    %p134 = por %p132, %p133
    %p135 = scmp.ne.s32.totalorder %s124, %s127
    %p136 = scmp.eq.s32.totalorder %s21, 15
    %p137 = por %p135, %p136
    %p138 = scmp.ne.s32.totalorder %s127, %s128
    %p139 = scmp.eq.s32.totalorder %s21, 0
    %p140 = por %p138, %p139
    %p141 = scmp.ne.s32.totalorder %s127, %s128
    %p142 = scmp.eq.s32.totalorder %s22, 15
    %p143 = por %p141, %p142
    %p145 = scmp.ne.s32.totalorder %s128, %s144
    %p146 = scmp.eq.s32.totalorder %s22, 0
    %p147 = por %p145, %p146
    %s149 = sadd.s32 %s148, 1
    %p152 = scmp.eq.s32.totalorder %s16, 15
    %p153 = scmp.ne.s32.totalorder %s148, %s150
    %p154 = scmp.eq.s32.totalorder %s16, 0
    %p155 = por %p153, %p154
    %p156 = scmp.ne.s32.totalorder %s148, %s150
    %p157 = scmp.eq.s32.totalorder %s21, 15
    %p158 = por %p156, %p157
    %p159 = scmp.ne.s32.totalorder %s150, %s151
    %p160 = scmp.eq.s32.totalorder %s21, 0
    %p161 = por %p159, %p160
    %p162 = scmp.ne.s32.totalorder %s150, %s151
    %p163 = scmp.eq.s32.totalorder %s22, 15
    %p164 = por %p162, %p163
    %p166 = scmp.ne.s32.totalorder %s151, %s165
    %p167 = scmp.eq.s32.totalorder %s22, 0
    %p168 = por %p166, %p167
    %s170 = sadd.s32 %s169, 1
    %p173 = scmp.eq.s32.totalorder %s16, 15
    %p174 = scmp.ne.s32.totalorder %s169, %s171
    %p175 = scmp.eq.s32.totalorder %s16, 0
    %p176 = por %p174, %p175
    %p177 = scmp.ne.s32.totalorder %s169, %s171
    %p178 = scmp.eq.s32.totalorder %s21, 15
    %p179 = por %p177, %p178
    %p180 = scmp.ne.s32.totalorder %s171, %s172
    %p181 = scmp.eq.s32.totalorder %s21, 0
    %p182 = por %p180, %p181
    %p183 = scmp.ne.s32.totalorder %s171, %s172
    %p184 = scmp.eq.s32.totalorder %s22, 15
    %p185 = por %p183, %p184
    %p187 = scmp.ne.s32.totalorder %s172, %s186
    %p188 = scmp.eq.s32.totalorder %s22, 0
    %p189 = por %p187, %p188
    %s191 = sadd.s32 %s190, 1
    %p194 = scmp.eq.s32.totalorder %s16, 15
    %p195 = scmp.ne.s32.totalorder %s190, %s192
    %p196 = scmp.eq.s32.totalorder %s16, 0
    %p197 = por %p195, %p196
    %p198 = scmp.ne.s32.totalorder %s190, %s192
    %p199 = scmp.eq.s32.totalorder %s21, 15
    %p200 = por %p198, %p199
    %p201 = scmp.ne.s32.totalorder %s192, %s193
    %p202 = scmp.eq.s32.totalorder %s21, 0
    %p203 = por %p201, %p202
    %p204 = scmp.ne.s32.totalorder %s192, %s193
    %p205 = scmp.eq.s32.totalorder %s22, 15
    %p206 = por %p204, %p205
    %p208 = scmp.ne.s32.totalorder %s193, %s207
    %p209 = scmp.eq.s32.totalorder %s22, 0
    %p210 = por %p208, %p209
    %s212 = sadd.s32 %s211, 1
    %p215 = scmp.eq.s32.totalorder %s16, 15
    %p216 = scmp.ne.s32.totalorder %s211, %s213
    %p217 = scmp.eq.s32.totalorder %s16, 0
    %p218 = por %p216, %p217
    %p219 = scmp.ne.s32.totalorder %s211, %s213
    %p220 = scmp.eq.s32.totalorder %s21, 15
    %p221 = por %p219, %p220
    %p222 = scmp.ne.s32.totalorder %s213, %s214
    %p223 = scmp.eq.s32.totalorder %s21, 0
    %p224 = por %p222, %p223
    %p225 = scmp.ne.s32.totalorder %s213, %s214
    %p226 = scmp.eq.s32.totalorder %s22, 15
    %p227 = por %p225, %p226
    %p229 = scmp.ne.s32.totalorder %s214, %s228
    %p230 = scmp.eq.s32.totalorder %s22, 0
    %p231 = por %p229, %p230
    %s233 = sadd.s32 %s232, 1
    %p236 = scmp.eq.s32.totalorder %s16, 15
    %p237 = scmp.ne.s32.totalorder %s232, %s234
    %p238 = scmp.eq.s32.totalorder %s16, 0
    %p239 = por %p237, %p238
    %p240 = scmp.ne.s32.totalorder %s232, %s234
    %p241 = scmp.eq.s32.totalorder %s21, 15
    %p242 = por %p240, %p241
    %p243 = scmp.ne.s32.totalorder %s234, %s235
    %p244 = scmp.eq.s32.totalorder %s21, 0
    %p245 = por %p243, %p244
    %p246 = scmp.ne.s32.totalorder %s234, %s235
    %p247 = scmp.eq.s32.totalorder %s22, 15
    %p248 = por %p246, %p247
    %p250 = scmp.ne.s32.totalorder %s235, %s249
    %p251 = scmp.eq.s32.totalorder %s22, 0
    %p252 = por %p250, %p251
    %s254 = sadd.s32 %s253, 1
    %p257 = scmp.eq.s32.totalorder %s16, 15
    %p258 = scmp.ne.s32.totalorder %s253, %s255
    %p259 = scmp.eq.s32.totalorder %s16, 0
    %p260 = por %p258, %p259
    %p261 = scmp.ne.s32.totalorder %s253, %s255
    %p262 = scmp.eq.s32.totalorder %s21, 15
    %p263 = por %p261, %p262
    %p264 = scmp.ne.s32.totalorder %s255, %s256
    %p265 = scmp.eq.s32.totalorder %s21, 0
    %p266 = por %p264, %p265
    %p267 = scmp.ne.s32.totalorder %s255, %s256
    %p268 = scmp.eq.s32.totalorder %s22, 15
    %p269 = por %p267, %p268
    %p271 = scmp.ne.s32.totalorder %s256, %s270
    %p272 = scmp.eq.s32.totalorder %s22, 0
    %p273 = por %p271, %p272
    %s274 = ssub.s32 %s24, 7
    %p275 = scmp.gt.s32.totalorder %s274, 0
    %s276 = scalar_select %p275, %s274, 0
    %s277 = ssub.s32 %s31, 7
    %p278 = scmp.gt.s32.totalorder %s277, 0
    %s279 = scalar_select %p278, %s277, 0
    %s280 = ssub.s32 %s23, %s35
    %s281 = ssub.s32 %s276, %s279
    %s282 = sor.u32 %s280, %s281
    %p283 = scmp.eq.s32.totalorder %s282, 0
    %s285 = sadd.s32 %s284, 1
    %s286 = scalar_select %p283, %s284, %s285
    %p289 = pneg %p283
    %p290 = scmp.eq.s32.totalorder %s16, 15
    %p291 = por %p289, %p290
    %p292 = scmp.ne.s32.totalorder %s284, %s287
    %p293 = scmp.eq.s32.totalorder %s16, 0
    %p294 = por %p292, %p293
    %p295 = scmp.ne.s32.totalorder %s284, %s287
    %p296 = scmp.eq.s32.totalorder %s21, 15
    %p297 = por %p295, %p296
    %p298 = scmp.ne.s32.totalorder %s287, %s288
    %p299 = scmp.eq.s32.totalorder %s21, 0
    %p300 = por %p298, %p299
    %p301 = scmp.ne.s32.totalorder %s287, %s288
    %p302 = scmp.eq.s32.totalorder %s22, 15
    %p303 = por %p301, %p302
    %p305 = scmp.ne.s32.totalorder %s288, %s304
    %p306 = scmp.eq.s32.totalorder %s22, 0
    %p307 = por %p305, %p306
    %p308 = scmp.le.s32.totalorder 1, %s16
    %p309 = scmp.lt.s32.totalorder %s16, 17
    %p310 = pnand %p308, %p309
    %p311 = pneg %p310
    // Predicated region
    $region9: #{_lambda_.8} parent=5 // pred_check
      _
    $region10: #{_lambda_.8} parent=5 // pred_check_branch
      %313 = sbr.rel (%p310) target = $region12
    $region11: #{_lambda_.8} parent=5 // pred_region
      %s314 = ssub.s32 %s16, 1
      // Predicated region
      $region13: #{_lambda_.8} parent=11 // pred_check
        %p315 = pneg %p161
      $region14: #{_lambda_.8} parent=11 // pred_check_branch
        %317 = sbr.rel (%p315) target = $region16
      $region15: #{_lambda_.8} parent=11 // pred_region
        _
      $region16: #{_lambda_.8} parent=11 // pred_fallthru
        _
      // Predicated region
      $region17: #{_lambda_.8} parent=11 // pred_check
        %p318 = pneg %p182
      $region18: #{_lambda_.8} parent=11 // pred_check_branch
        %320 = sbr.rel (%p318) target = $region20
      $region19: #{_lambda_.8} parent=11 // pred_region
        _
      $region20: #{_lambda_.8} parent=11 // pred_fallthru
        _
      // Predicated region
      $region21: #{_lambda_.8} parent=11 // pred_check
        %p321 = pneg %p203
      $region22: #{_lambda_.8} parent=11 // pred_check_branch
        %323 = sbr.rel (%p321) target = $region24
      $region23: #{_lambda_.8} parent=11 // pred_region
        _
      $region24: #{_lambda_.8} parent=11 // pred_fallthru
        _
      // Predicated region
      $region25: #{_lambda_.8} parent=11 // pred_check
        %p324 = pneg %p224
      $region26: #{_lambda_.8} parent=11 // pred_check_branch
        %326 = sbr.rel (%p324) target = $region28
      $region27: #{_lambda_.8} parent=11 // pred_region
        _
      $region28: #{_lambda_.8} parent=11 // pred_fallthru
        _
      // Predicated region
      $region29: #{_lambda_.8} parent=11 // pred_check
        %p327 = pneg %p245
      $region30: #{_lambda_.8} parent=11 // pred_check_branch
        %329 = sbr.rel (%p327) target = $region32
      $region31: #{_lambda_.8} parent=11 // pred_region
        _
      $region32: #{_lambda_.8} parent=11 // pred_fallthru
        _
      // Predicated region
      $region33: #{_lambda_.8} parent=11 // pred_check
        %p330 = pneg %p266
      $region34: #{_lambda_.8} parent=11 // pred_check_branch
        %332 = sbr.rel (%p330) target = $region36
      $region35: #{_lambda_.8} parent=11 // pred_region
        _
      $region36: #{_lambda_.8} parent=11 // pred_fallthru
        _
    $region12: #{_lambda_.8} parent=5 // pred_fallthru
      _
    %p333 = scmp.lt.s32.totalorder %s16, 16
    // Predicated region
    $region37: #{_lambda_.8} parent=5 // pred_check
      %p334 = pneg %p333
    $region38: #{_lambda_.8} parent=5 // pred_check_branch
      %336 = sbr.rel (%p334) target = $region40
    $region39: #{_lambda_.8} parent=5 // pred_region
      // Predicated region
      $region41: #{_lambda_.8} parent=39 // pred_check
        %p337 = pneg %p50
      $region42: #{_lambda_.8} parent=39 // pred_check_branch
        %339 = sbr.rel (%p337) target = $region44
      $region43: #{_lambda_.8} parent=39 // pred_region
        %s340 = smul.u32 8, %s24
        %p341 = scmp.lt.s32.totalorder %s23, 1
        %s342 = scalar_select %p341, %s23, 1
        %p343 = scmp.lt.s32.totalorder %s340, 63
        %s344 = scalar_select %p343, %s340, 63
        %s345 = smul.addr %s342, 64
        %s346 = sadd.s32 %s344, %s345
        %s347 = smul.addr %s346, 8
        %s348 = scalar_lea.vmem %s0, %s347
        %s349 = smul.u32 8, %s24
      $region44: #{_lambda_.8} parent=39 // pred_fallthru
        _
      // Predicated region
      $region45: #{_lambda_.8} parent=39 // pred_check
        %p350 = pneg %p78
      $region46: #{_lambda_.8} parent=39 // pred_check_branch
        %352 = sbr.rel (%p350) target = $region48
      $region47: #{_lambda_.8} parent=39 // pred_region
        %s353 = smul.u32 8, %s24
        %p354 = scmp.lt.s32.totalorder %s23, 1
        %s355 = scalar_select %p354, %s23, 1
        %p356 = scmp.lt.s32.totalorder %s353, 63
        %s357 = scalar_select %p356, %s353, 63
        %s358 = smul.addr %s355, 64
        %s359 = sadd.s32 %s357, %s358
        %s360 = smul.addr %s359, 8
        %s361 = scalar_lea.vmem %s1, %s360
        %s362 = smul.u32 8, %s24
      $region48: #{_lambda_.8} parent=39 // pred_fallthru
        _
      // Predicated region
      $region49: #{_lambda_.8} parent=39 // pred_check
        %p363 = pneg %p106
      $region50: #{_lambda_.8} parent=39 // pred_check_branch
        %365 = sbr.rel (%p363) target = $region52
      $region51: #{_lambda_.8} parent=39 // pred_region
        %s366 = smul.u32 8, %s24
        %p367 = scmp.lt.s32.totalorder %s23, 1
        %s368 = scalar_select %p367, %s23, 1
        %p369 = scmp.lt.s32.totalorder %s366, 63
        %s370 = scalar_select %p369, %s366, 63
        %s371 = smul.addr %s368, 64
        %s372 = sadd.s32 %s370, %s371
        %s373 = smul.addr %s372, 8
        %s374 = scalar_lea.vmem %s2, %s373
        %s375 = smul.u32 8, %s24
      $region52: #{_lambda_.8} parent=39 // pred_fallthru
        _
      // Predicated region
      $region53: #{_lambda_.8} parent=39 // pred_check
        %p376 = pneg %p134
      $region54: #{_lambda_.8} parent=39 // pred_check_branch
        %378 = sbr.rel (%p376) target = $region56
      $region55: #{_lambda_.8} parent=39 // pred_region
        %s379 = smul.u32 8, %s24
        %p380 = scmp.lt.s32.totalorder %s23, 1
        %s381 = scalar_select %p380, %s23, 1
        %p382 = scmp.lt.s32.totalorder %s379, 63
        %s383 = scalar_select %p382, %s379, 63
        %s384 = smul.addr %s381, 64
        %s385 = sadd.s32 %s383, %s384
        %s386 = smul.addr %s385, 8
        %s387 = scalar_lea.vmem %s3, %s386
        %s388 = smul.u32 8, %s24
      $region56: #{_lambda_.8} parent=39 // pred_fallthru
        _
    $region40: #{_lambda_.8} parent=5 // pred_fallthru
      _
    %p389 = scmp.le.s32.totalorder 1, %s16
    %p390 = scmp.lt.s32.totalorder %s16, 17
    %p391 = pnand %p389, %p390
    %p392 = pneg %p391
    // Predicated region
    $region57: #{_lambda_.8} parent=5 // pred_check
      _
    $region58: #{_lambda_.8} parent=5 // pred_check_branch
      %394 = sbr.rel (%p391) target = $region60
    $region59: #{_lambda_.8} parent=5 // pred_region
      %s395 = ssub.s32 %s16, 1
      %s396 = smul.u32 8, %s26
      %p397 = scmp.lt.s32.totalorder %s25, 1
      %s398 = scalar_select %p397, %s25, 1
      %p399 = scmp.lt.s32.totalorder %s396, 63
      %s400 = scalar_select %p399, %s396, 63
      %s401 = smul.addr %s398, 64
      %s402 = sadd.s32 %s400, %s401
      %s403 = smul.addr %s402, 8
      %s404 = scalar_lea.vmem %s0, %s403
      %p405 = pneg %p56
      %p406 = pneg %p53
      %s407 = smul.u32 8, %s26
      %p408 = scmp.lt.s32.totalorder %s25, 1
      %s409 = scalar_select %p408, %s25, 1
      %p410 = scmp.lt.s32.totalorder %s407, 63
      %s411 = scalar_select %p410, %s407, 63
      %s412 = smul.addr %s409, 64
      %s413 = sadd.s32 %s411, %s412
      %s414 = smul.addr %s413, 8
      %s415 = scalar_lea.vmem %s1, %s414
      %p416 = pneg %p84
      %p417 = pneg %p81
      %s418 = smul.u32 8, %s26
      %p419 = scmp.lt.s32.totalorder %s25, 1
      %s420 = scalar_select %p419, %s25, 1
      %p421 = scmp.lt.s32.totalorder %s418, 63
      %s422 = scalar_select %p421, %s418, 63
      %s423 = smul.addr %s420, 64
      %s424 = sadd.s32 %s422, %s423
      %s425 = smul.addr %s424, 8
      %s426 = scalar_lea.vmem %s2, %s425
      %p427 = pneg %p112
      %p428 = pneg %p109
      %s429 = smul.u32 8, %s26
      %p430 = scmp.lt.s32.totalorder %s25, 1
      %s431 = scalar_select %p430, %s25, 1
      %p432 = scmp.lt.s32.totalorder %s429, 63
      %s433 = scalar_select %p432, %s429, 63
      %s434 = smul.addr %s431, 64
      %s435 = sadd.s32 %s433, %s434
      %s436 = smul.addr %s435, 8
      %s437 = scalar_lea.vmem %s3, %s436
      %p438 = pneg %p140
      %p439 = pneg %p137
      %p440 = pneg %p161
      %p441 = pneg %p158
      %p442 = pneg %p182
      %p443 = pneg %p179
      %p444 = pneg %p203
      %p445 = pneg %p200
      %p446 = pneg %p224
      %p447 = pneg %p221
      %p448 = pneg %p245
      %p449 = pneg %p242
      %p450 = pneg %p266
      %p451 = pneg %p263
      %p452 = pneg %p300
      %p453 = pneg %p297
      %s454 = ssub.s32 %s26, 7
      %p455 = scmp.gt.s32.totalorder %s454, 0
      %s456 = scalar_select %p455, %s454, 0
      %s457 = smul.u32 8, %s456
      %p458 = scmp.lt.s32.totalorder %s25, 1
      %s459 = scalar_select %p458, %s25, 1
      %p460 = scmp.lt.s32.totalorder %s457, 7
      %s461 = scalar_select %p460, %s457, 7
      %s462 = smul.addr %s459, 8
      %s463 = sadd.s32 %s461, %s462
      %s464 = smul.addr %s463, 8
      %s465 = scalar_lea.vmem %s10, %s464
      %s466 = smul.u32 8, %s26
      %p467 = scmp.lt.s32.totalorder %s25, 1
      %s468 = scalar_select %p467, %s25, 1
      %p469 = scmp.lt.s32.totalorder %s466, 63
      %s470 = scalar_select %p469, %s466, 63
      %s471 = smul.addr %s468, 64
      %s472 = sadd.s32 %s470, %s471
      %s473 = smul.addr %s472, 8
      %s474 = scalar_lea.vmem %s0, %s473
      %s475 = smul.u32 8, %s26
      %s476 = smul.u32 8, %s26
      %p477 = scmp.lt.s32.totalorder %s25, 1
      %s478 = scalar_select %p477, %s25, 1
      %p479 = scmp.lt.s32.totalorder %s476, 63
      %s480 = scalar_select %p479, %s476, 63
      %s481 = smul.addr %s478, 64
      %s482 = sadd.s32 %s480, %s481
      %s483 = smul.addr %s482, 8
      %s484 = scalar_lea.vmem %s1, %s483
      %s485 = smul.u32 8, %s26
      %s486 = smul.u32 8, %s26
      %p487 = scmp.lt.s32.totalorder %s25, 1
      %s488 = scalar_select %p487, %s25, 1
      %p489 = scmp.lt.s32.totalorder %s486, 63
      %s490 = scalar_select %p489, %s486, 63
      %s491 = smul.addr %s488, 64
      %s492 = sadd.s32 %s490, %s491
      %s493 = smul.addr %s492, 8
      %s494 = scalar_lea.vmem %s2, %s493
      %s495 = smul.u32 8, %s26
      %s496 = smul.u32 8, %s26
      %p497 = scmp.lt.s32.totalorder %s25, 1
      %s498 = scalar_select %p497, %s25, 1
      %p499 = scmp.lt.s32.totalorder %s496, 63
      %s500 = scalar_select %p499, %s496, 63
      %s501 = smul.addr %s498, 64
      %s502 = sadd.s32 %s500, %s501
      %s503 = smul.addr %s502, 8
      %s504 = scalar_lea.vmem %s3, %s503
      %s505 = smul.u32 8, %s26
      %s506 = ssub.s32 %s26, 7
      %p507 = scmp.gt.s32.totalorder %s506, 0
      %s508 = scalar_select %p507, %s506, 0
      %s509 = smul.u32 8, %s508
      %p510 = scmp.lt.s32.totalorder %s25, 1
      %s511 = scalar_select %p510, %s25, 1
      %p512 = scmp.lt.s32.totalorder %s509, 7
      %s513 = scalar_select %p512, %s509, 7
      %s514 = smul.addr %s511, 8
      %s515 = sadd.s32 %s513, %s514
      %s516 = smul.addr %s515, 8
      %s517 = scalar_lea.vmem %s10, %s516
      %s518 = ssub.s32 %s26, 7
      %p519 = scmp.gt.s32.totalorder %s518, 0
      %s520 = scalar_select %p519, %s518, 0
      %s521 = smul.u32 8, %s520
      %p522 = scmp.eq.s32.totalorder %s26, 0
      // Predicated region
      $region61: #{_lambda_.8} parent=59 // pred_check
        %p523 = pneg %p522
      $region62: #{_lambda_.8} parent=59 // pred_check_branch
        %525 = sbr.rel (%p523) target = $region64
      $region63: #{_lambda_.8} parent=59 // pred_region
        %v526 = vlaneseq
        %vm527 = vcmp.ge.s32.totalorder %v526, 0
        %vm528 = vcmp.lt.s32.totalorder %v526, 512
        %vm529 = vmand %vm527, %vm528
        %530 = vst.msk [vmem:[#allocation2] sm:$0xf] %vm529, 0.0
      $region64: #{_lambda_.8} parent=59 // pred_fallthru
        _
      %v531 = vld [vmem:[%s474] sm:$0xff]
      %v532 = vld [vmem:[%s474 + $0x8] sm:$0xff]
      %v533 = vld [vmem:[%s474 + $0x10] sm:$0xff]
      %v534 = vld [vmem:[%s474 + $0x18] sm:$0xff]
      %v535 = vld [vmem:[%s474 + $0x20] sm:$0xff]
      %v536 = vld [vmem:[%s474 + $0x28] sm:$0xff]
      %v537 = vld [vmem:[%s474 + $0x30] sm:$0xff]
      %v538 = vld [vmem:[%s474 + $0x38] sm:$0xff]
      %v539 = vld [vmem:[%s484] sm:$0xff]
      %v540 = vld [vmem:[%s484 + $0x8] sm:$0xff]
      %v541 = vld [vmem:[%s484 + $0x10] sm:$0xff]
      %v542 = vld [vmem:[%s484 + $0x18] sm:$0xff]
      %v543 = vld [vmem:[%s484 + $0x20] sm:$0xff]
      %v544 = vld [vmem:[%s484 + $0x28] sm:$0xff]
      %v545 = vld [vmem:[%s484 + $0x30] sm:$0xff]
      %v546 = vld [vmem:[%s484 + $0x38] sm:$0xff]
      %v547 = vld [vmem:[%s9] sm:$0x1]
      %v549 = vlaneseq
      %v550 = vshrl.u32 %v549, 7
      %v551 = vsub.s32 0, %v550
      %v552 = vrot.slane %v547, %v551
      %v554 = vadd.f32 %v539, %v552
      %v555 = vadd.f32 %v540, %v552
      %v556 = vadd.f32 %v541, %v552
      %v557 = vadd.f32 %v542, %v552
      %v558 = vadd.f32 %v543, %v552
      %v559 = vadd.f32 %v544, %v552
      %v560 = vadd.f32 %v545, %v552
      %v561 = vadd.f32 %v546, %v552
      %vm562 = vcmp.gt.f32.partialorder %v554, 20.0
      %vm563 = vcmp.gt.f32.partialorder %v555, 20.0
      %vm564 = vcmp.gt.f32.partialorder %v556, 20.0
      %vm565 = vcmp.gt.f32.partialorder %v557, 20.0
      %vm566 = vcmp.gt.f32.partialorder %v558, 20.0
      %vm567 = vcmp.gt.f32.partialorder %v559, 20.0
      %vm568 = vcmp.gt.f32.partialorder %v560, 20.0
      %vm569 = vcmp.gt.f32.partialorder %v561, 20.0
      %v570 = vmin.f32 %v554, 20.0
      %v571 = vmin.f32 %v555, 20.0
      %v572 = vmin.f32 %v556, 20.0
      %v573 = vmin.f32 %v557, 20.0
      %v574 = vmin.f32 %v558, 20.0
      %v575 = vmin.f32 %v559, 20.0
      %v576 = vmin.f32 %v560, 20.0
      %v577 = vmin.f32 %v561, 20.0
      %v578 = vmul.f32 %v570, 1.442695
      %v579 = vpow.pop %v578
      %v580 = vmul.f32 %v571, 1.442695
      %v581 = vpow.pop %v580
      %v582 = vmul.f32 %v572, 1.442695
      %v583 = vpow.pop %v582
      %v584 = vmul.f32 %v573, 1.442695
      %v585 = vpow.pop %v584
      %v586 = vmul.f32 %v574, 1.442695
      %v587 = vpow.pop %v586
      %v588 = vmul.f32 %v575, 1.442695
      %v589 = vpow.pop %v588
      %v590 = vmul.f32 %v576, 1.442695
      %v591 = vpow.pop %v590
      %v592 = vmul.f32 %v577, 1.442695
      %v593 = vpow.pop %v592
      %v594 = vadd.f32 %v579, 1.0
      %v595 = vlog2.pop %v594
      %v596 = vmul.f32 %v595, 0.6931472
      %v597 = vmul.f32 -0.5, %v579
      %v598 = vadd.f32 %v597, 1.0
      %v599 = vmul.f32 %v598, %v579
      %v600 = vand.u32 2147483647, %v579
      %vm601 = vcmp.lt.f32.partialorder %v600, 0.0004427343
      %v602 = vsel %vm601, %v599, %v596
      %v603 = vadd.f32 %v581, 1.0
      %v604 = vlog2.pop %v603
      %v605 = vmul.f32 %v604, 0.6931472
      %v606 = vmul.f32 -0.5, %v581
      %v607 = vadd.f32 %v606, 1.0
      %v608 = vmul.f32 %v607, %v581
      %v609 = vand.u32 2147483647, %v581
      %vm610 = vcmp.lt.f32.partialorder %v609, 0.0004427343
      %v611 = vsel %vm610, %v608, %v605
      %v612 = vadd.f32 %v583, 1.0
      %v613 = vlog2.pop %v612
      %v614 = vmul.f32 %v613, 0.6931472
      %v615 = vmul.f32 -0.5, %v583
      %v616 = vadd.f32 %v615, 1.0
      %v617 = vmul.f32 %v616, %v583
      %v618 = vand.u32 2147483647, %v583
      %vm619 = vcmp.lt.f32.partialorder %v618, 0.0004427343
      %v620 = vsel %vm619, %v617, %v614
      %v621 = vadd.f32 %v585, 1.0
      %v622 = vlog2.pop %v621
      %v623 = vmul.f32 %v622, 0.6931472
      %v624 = vmul.f32 -0.5, %v585
      %v625 = vadd.f32 %v624, 1.0
      %v626 = vmul.f32 %v625, %v585
      %v627 = vand.u32 2147483647, %v585
      %vm628 = vcmp.lt.f32.partialorder %v627, 0.0004427343
      %v629 = vsel %vm628, %v626, %v623
      %v630 = vadd.f32 %v587, 1.0
      %v631 = vlog2.pop %v630
      %v632 = vmul.f32 %v631, 0.6931472
      %v633 = vmul.f32 -0.5, %v587
      %v634 = vadd.f32 %v633, 1.0
      %v635 = vmul.f32 %v634, %v587
      %v636 = vand.u32 2147483647, %v587
      %vm637 = vcmp.lt.f32.partialorder %v636, 0.0004427343
      %v638 = vsel %vm637, %v635, %v632
      %v639 = vadd.f32 %v589, 1.0
      %v640 = vlog2.pop %v639
      %v641 = vmul.f32 %v640, 0.6931472
      %v642 = vmul.f32 -0.5, %v589
      %v643 = vadd.f32 %v642, 1.0
      %v644 = vmul.f32 %v643, %v589
      %v645 = vand.u32 2147483647, %v589
      %vm646 = vcmp.lt.f32.partialorder %v645, 0.0004427343
      %v647 = vsel %vm646, %v644, %v641
      %v648 = vadd.f32 %v591, 1.0
      %v649 = vlog2.pop %v648
      %v650 = vmul.f32 %v649, 0.6931472
      %v651 = vmul.f32 -0.5, %v591
      %v652 = vadd.f32 %v651, 1.0
      %v653 = vmul.f32 %v652, %v591
      %v654 = vand.u32 2147483647, %v591
      %vm655 = vcmp.lt.f32.partialorder %v654, 0.0004427343
      %v656 = vsel %vm655, %v653, %v650
      %v657 = vadd.f32 %v593, 1.0
      %v658 = vlog2.pop %v657
      %v659 = vmul.f32 %v658, 0.6931472
      %v660 = vmul.f32 -0.5, %v593
      %v661 = vadd.f32 %v660, 1.0
      %v662 = vmul.f32 %v661, %v593
      %v663 = vand.u32 2147483647, %v593
      %vm664 = vcmp.lt.f32.partialorder %v663, 0.0004427343
      %v665 = vsel %vm664, %v662, %v659
      %v666 = vsel %vm562, %v554, %v602
      %v667 = vsel %vm563, %v555, %v611
      %v668 = vsel %vm564, %v556, %v620
      %v669 = vsel %vm565, %v557, %v629
      %v670 = vsel %vm566, %v558, %v638
      %v671 = vsel %vm567, %v559, %v647
      %v672 = vsel %vm568, %v560, %v656
      %v673 = vsel %vm569, %v561, %v665
      %v674 = vld [vmem:[%s5] sm:$0xff]
      %v675 = vld [vmem:[%s5 + $0x8] sm:$0xff]
      %v676 = vld [vmem:[%s5 + $0x10] sm:$0xff]
      %v677 = vld [vmem:[%s5 + $0x18] sm:$0xff]
      %v678 = vld [vmem:[%s5 + $0x20] sm:$0xff]
      %v679 = vld [vmem:[%s5 + $0x28] sm:$0xff]
      %v680 = vld [vmem:[%s5 + $0x30] sm:$0xff]
      %v681 = vld [vmem:[%s5 + $0x38] sm:$0xff]
      %v682 = vld [vmem:[%s5 + $0x40] sm:$0xff]
      %v683 = vld [vmem:[%s5 + $0x48] sm:$0xff]
      %v684 = vld [vmem:[%s5 + $0x50] sm:$0xff]
      %v685 = vld [vmem:[%s5 + $0x58] sm:$0xff]
      %v686 = vld [vmem:[%s5 + $0x60] sm:$0xff]
      %v687 = vld [vmem:[%s5 + $0x68] sm:$0xff]
      %v688 = vld [vmem:[%s5 + $0x70] sm:$0xff]
      %v689 = vld [vmem:[%s5 + $0x78] sm:$0xff]
      %vm690 = vcmask 261120
      %v692 = vsel %vm690, %v666, 0
      %v695 = vsel %vm690, %v667, 0
      %v698 = vsel %vm690, %v668, 0
      %v701 = vsel %vm690, %v669, 0
      %v704 = vsel %vm690, %v670, 0
      %v707 = vsel %vm690, %v671, 0
      %v710 = vsel %vm690, %v672, 0
      %v713 = vsel %vm690, %v673, 0
      %715 = vmatprep.subr.mxu0 0.0
      %716 = vmatpush1.msra.mxu0 0.0
      %717 = vmatprep.subr.mxu0 0.0
      %718 = vmatpush1.msra.mxu0 0.0
      %719 = vmatprep.subr.mxu0 0.0
      %720 = vmatpush1.msra.mxu0 0.0
      %721 = vmatprep.subr.mxu0 0.0
      %722 = vmatpush1.msra.mxu0 0.0
      %723 = vmatprep.subr.mxu0 0.0
      %724 = vmatpush1.msra.mxu0 0.0
      %725 = vmatprep.subr.mxu0 0.0
      %726 = vmatpush1.msra.mxu0 0.0
      %727 = vmatprep.subr.mxu0 0.0
      %728 = vmatpush1.msra.mxu0 0.0
      %729 = vmatprep.subr.mxu0 0.0
      %730 = vmatpush1.msra.mxu0 0.0
      %731 = vmatprep.subr.mxu0 0.0
      %732 = vmatpush1.msra.mxu0 0.0
      %733 = vmatprep.subr.mxu0 0.0
      %734 = vmatpush1.msra.mxu0 0.0
      %735 = vmatprep.subr.mxu0 0.0
      %736 = vmatpush1.msra.mxu0 0.0
      %737 = vmatprep.subr.mxu0 0.0
      %738 = vmatpush1.msra.mxu0 0.0
      %739 = vmatprep.subr.mxu0 %v687
      %740 = vmatpush1.msra.mxu0 %v686
      %741 = vmatprep.subr.mxu0 %v683
      %742 = vmatpush1.msra.mxu0 %v682
      %743 = vmatprep.subr.mxu0 %v679
      %744 = vmatpush1.msra.mxu0 %v678
      %745 = vmatprep.subr.mxu0 %v675
      %746 = vmatpush1.msra.mxu0 %v674
      %747 = vmatprep.subr.mxu0 0.0
      %748 = vmatpush2.msra.mxu0 0.0
      %749 = vmatprep.subr.mxu0 0.0
      %750 = vmatpush2.msra.mxu0 0.0
      %751 = vmatprep.subr.mxu0 0.0
      %752 = vmatpush2.msra.mxu0 0.0
      %753 = vmatprep.subr.mxu0 0.0
      %754 = vmatpush2.msra.mxu0 0.0
      %755 = vmatprep.subr.mxu0 0.0
      %756 = vmatpush2.msra.mxu0 0.0
      %757 = vmatprep.subr.mxu0 0.0
      %758 = vmatpush2.msra.mxu0 0.0
      %759 = vmatprep.subr.mxu0 0.0
      %760 = vmatpush2.msra.mxu0 0.0
      %761 = vmatprep.subr.mxu0 0.0
      %762 = vmatpush2.msra.mxu0 0.0
      %763 = vmatprep.subr.mxu0 0.0
      %764 = vmatpush2.msra.mxu0 0.0
      %765 = vmatprep.subr.mxu0 0.0
      %766 = vmatpush2.msra.mxu0 0.0
      %767 = vmatprep.subr.mxu0 0.0
      %768 = vmatpush2.msra.mxu0 0.0
      %769 = vmatprep.subr.mxu0 0.0
      %770 = vmatpush2.msra.mxu0 0.0
      %771 = vmatprep.subr.mxu0 0.0
      %772 = vmatpush2.msra.mxu0 0.0
      %773 = vmatprep.subr.mxu0 0.0
      %774 = vmatpush2.msra.mxu0 0.0
      %775 = vmatprep.subr.mxu0 0.0
      %776 = vmatpush2.msra.mxu0 0.0
      %777 = vmatprep.subr.mxu0 0.0
      %778 = vmatpush2.msra.mxu0 0.0
      %779 = vmatprep.mubr.f32.mxu0 0.0
      %780 = vmatmul.mubr.f32.gmra.mxu0 %v692
      %v781 = vpop.f32.mrf.mxu0
      %v782 = vadd.f32 0.0, %v781
      %v783 = vpop.f32.mrf.mxu0
      %v784 = vadd.f32 0.0, %v783
      %785 = vmatprep.mubr.f32.mxu0 0.0
      %786 = vmatmul.mubr.f32.gmra.mxu0 %v695
      %v787 = vpop.f32.mrf.mxu0
      %v788 = vadd.f32 0.0, %v787
      %v789 = vpop.f32.mrf.mxu0
      %v790 = vadd.f32 0.0, %v789
      %791 = vmatprep.mubr.f32.mxu0 0.0
      %792 = vmatmul.mubr.f32.gmra.mxu0 %v698
      %v793 = vpop.f32.mrf.mxu0
      %v794 = vadd.f32 0.0, %v793
      %v795 = vpop.f32.mrf.mxu0
      %v796 = vadd.f32 0.0, %v795
      %797 = vmatprep.mubr.f32.mxu0 0.0
      %798 = vmatmul.mubr.f32.gmra.mxu0 %v701
      %v799 = vpop.f32.mrf.mxu0
      %v800 = vadd.f32 0.0, %v799
      %v801 = vpop.f32.mrf.mxu0
      %v802 = vadd.f32 0.0, %v801
      %803 = vmatprep.mubr.f32.mxu0 0.0
      %804 = vmatmul.mubr.f32.gmra.mxu0 %v704
      %v805 = vpop.f32.mrf.mxu0
      %v806 = vadd.f32 0.0, %v805
      %v807 = vpop.f32.mrf.mxu0
      %v808 = vadd.f32 0.0, %v807
      %809 = vmatprep.mubr.f32.mxu0 0.0
      %810 = vmatmul.mubr.f32.gmra.mxu0 %v707
      %v811 = vpop.f32.mrf.mxu0
      %v812 = vadd.f32 0.0, %v811
      %v813 = vpop.f32.mrf.mxu0
      %v814 = vadd.f32 0.0, %v813
      %815 = vmatprep.mubr.f32.mxu0 0.0
      %816 = vmatmul.mubr.f32.gmra.mxu0 %v710
      %v817 = vpop.f32.mrf.mxu0
      %v818 = vadd.f32 0.0, %v817
      %v819 = vpop.f32.mrf.mxu0
      %v820 = vadd.f32 0.0, %v819
      %821 = vmatprep.mubr.f32.mxu0 0.0
      %822 = vmatmul.mubr.f32.gmra.mxu0 %v713
      %v823 = vpop.f32.mrf.mxu0
      %v824 = vadd.f32 0.0, %v823
      %v825 = vpop.f32.mrf.mxu0
      %v826 = vadd.f32 0.0, %v825
      %827 = vdwg.mxu0
      %828 = vmatprep.subr.mxu0 0.0
      %829 = vmatpush1.msra.mxu0 0.0
      %830 = vmatprep.subr.mxu0 0.0
      %831 = vmatpush1.msra.mxu0 0.0
      %832 = vmatprep.subr.mxu0 0.0
      %833 = vmatpush1.msra.mxu0 0.0
      %834 = vmatprep.subr.mxu0 0.0
      %835 = vmatpush1.msra.mxu0 0.0
      %836 = vmatprep.subr.mxu0 0.0
      %837 = vmatpush1.msra.mxu0 0.0
      %838 = vmatprep.subr.mxu0 0.0
      %839 = vmatpush1.msra.mxu0 0.0
      %840 = vmatprep.subr.mxu0 0.0
      %841 = vmatpush1.msra.mxu0 0.0
      %842 = vmatprep.subr.mxu0 0.0
      %843 = vmatpush1.msra.mxu0 0.0
      %844 = vmatprep.subr.mxu0 0.0
      %845 = vmatpush1.msra.mxu0 0.0
      %846 = vmatprep.subr.mxu0 0.0
      %847 = vmatpush1.msra.mxu0 0.0
      %848 = vmatprep.subr.mxu0 0.0
      %849 = vmatpush1.msra.mxu0 0.0
      %850 = vmatprep.subr.mxu0 0.0
      %851 = vmatpush1.msra.mxu0 0.0
      %852 = vmatprep.subr.mxu0 %v689
      %853 = vmatpush1.msra.mxu0 %v688
      %854 = vmatprep.subr.mxu0 %v685
      %855 = vmatpush1.msra.mxu0 %v684
      %856 = vmatprep.subr.mxu0 %v681
      %857 = vmatpush1.msra.mxu0 %v680
      %858 = vmatprep.subr.mxu0 %v677
      %859 = vmatpush1.msra.mxu0 %v676
      %860 = vmatprep.subr.mxu0 0.0
      %861 = vmatpush2.msra.mxu0 0.0
      %862 = vmatprep.subr.mxu0 0.0
      %863 = vmatpush2.msra.mxu0 0.0
      %864 = vmatprep.subr.mxu0 0.0
      %865 = vmatpush2.msra.mxu0 0.0
      %866 = vmatprep.subr.mxu0 0.0
      %867 = vmatpush2.msra.mxu0 0.0
      %868 = vmatprep.subr.mxu0 0.0
      %869 = vmatpush2.msra.mxu0 0.0
      %870 = vmatprep.subr.mxu0 0.0
      %871 = vmatpush2.msra.mxu0 0.0
      %872 = vmatprep.subr.mxu0 0.0
      %873 = vmatpush2.msra.mxu0 0.0
      %874 = vmatprep.subr.mxu0 0.0
      %875 = vmatpush2.msra.mxu0 0.0
      %876 = vmatprep.subr.mxu0 0.0
      %877 = vmatpush2.msra.mxu0 0.0
      %878 = vmatprep.subr.mxu0 0.0
      %879 = vmatpush2.msra.mxu0 0.0
      %880 = vmatprep.subr.mxu0 0.0
      %881 = vmatpush2.msra.mxu0 0.0
      %882 = vmatprep.subr.mxu0 0.0
      %883 = vmatpush2.msra.mxu0 0.0
      %884 = vmatprep.subr.mxu0 0.0
      %885 = vmatpush2.msra.mxu0 0.0
      %886 = vmatprep.subr.mxu0 0.0
      %887 = vmatpush2.msra.mxu0 0.0
      %888 = vmatprep.subr.mxu0 0.0
      %889 = vmatpush2.msra.mxu0 0.0
      %890 = vmatprep.subr.mxu0 0.0
      %891 = vmatpush2.msra.mxu0 0.0
      %892 = vmatprep.mubr.f32.mxu0 0.0
      %893 = vmatmul.mubr.f32.gmra.mxu0 %v692
      %v894 = vpop.f32.mrf.mxu0
      %v895 = vadd.f32 0.0, %v894
      %v896 = vpop.f32.mrf.mxu0
      %v897 = vadd.f32 0.0, %v896
      %898 = vmatprep.mubr.f32.mxu0 0.0
      %899 = vmatmul.mubr.f32.gmra.mxu0 %v695
      %v900 = vpop.f32.mrf.mxu0
      %v901 = vadd.f32 0.0, %v900
      %v902 = vpop.f32.mrf.mxu0
      %v903 = vadd.f32 0.0, %v902
      %904 = vmatprep.mubr.f32.mxu0 0.0
      %905 = vmatmul.mubr.f32.gmra.mxu0 %v698
      %v906 = vpop.f32.mrf.mxu0
      %v907 = vadd.f32 0.0, %v906
      %v908 = vpop.f32.mrf.mxu0
      %v909 = vadd.f32 0.0, %v908
      %910 = vmatprep.mubr.f32.mxu0 0.0
      %911 = vmatmul.mubr.f32.gmra.mxu0 %v701
      %v912 = vpop.f32.mrf.mxu0
      %v913 = vadd.f32 0.0, %v912
      %v914 = vpop.f32.mrf.mxu0
      %v915 = vadd.f32 0.0, %v914
      %916 = vmatprep.mubr.f32.mxu0 0.0
      %917 = vmatmul.mubr.f32.gmra.mxu0 %v704
      %v918 = vpop.f32.mrf.mxu0
      %v919 = vadd.f32 0.0, %v918
      %v920 = vpop.f32.mrf.mxu0
      %v921 = vadd.f32 0.0, %v920
      %922 = vmatprep.mubr.f32.mxu0 0.0
      %923 = vmatmul.mubr.f32.gmra.mxu0 %v707
      %v924 = vpop.f32.mrf.mxu0
      %v925 = vadd.f32 0.0, %v924
      %v926 = vpop.f32.mrf.mxu0
      %v927 = vadd.f32 0.0, %v926
      %928 = vmatprep.mubr.f32.mxu0 0.0
      %929 = vmatmul.mubr.f32.gmra.mxu0 %v710
      %v930 = vpop.f32.mrf.mxu0
      %v931 = vadd.f32 0.0, %v930
      %v932 = vpop.f32.mrf.mxu0
      %v933 = vadd.f32 0.0, %v932
      %934 = vmatprep.mubr.f32.mxu0 0.0
      %935 = vmatmul.mubr.f32.gmra.mxu0 %v713
      %v936 = vpop.f32.mrf.mxu0
      %v937 = vadd.f32 0.0, %v936
      %v938 = vpop.f32.mrf.mxu0
      %v939 = vadd.f32 0.0, %v938
      %940 = vdwg.mxu0
      %v941 = vld [vmem:[%s4] sm:$0xf]
      %v943 = vlaneseq
      %v944 = vshrl.u32 %v943, 7
      %v945 = vsub.s32 0, %v944
      %v946 = vrot.slane %v941, %v945
      %v947 = vlaneseq
      %v948 = vshrl.u32 %v947, 7
      %v949 = vsub.s32 1, %v948
      %v950 = vrot.slane %v941, %v949
      %v951 = vlaneseq
      %v952 = vshrl.u32 %v951, 7
      %v953 = vsub.s32 2, %v952
      %v954 = vrot.slane %v941, %v953
      %v955 = vlaneseq
      %v956 = vshrl.u32 %v955, 7
      %v957 = vsub.s32 3, %v956
      %v958 = vrot.slane %v941, %v957
      %v963 = vmul.f32 %v782, %v946
      %v964 = vmul.f32 %v784, %v950
      %v965 = vmul.f32 %v895, %v954
      %v966 = vmul.f32 %v897, %v958
      %v967 = vmul.f32 %v788, %v946
      %v968 = vmul.f32 %v790, %v950
      %v969 = vmul.f32 %v901, %v954
      %v970 = vmul.f32 %v903, %v958
      %v971 = vmul.f32 %v794, %v946
      %v972 = vmul.f32 %v796, %v950
      %v973 = vmul.f32 %v907, %v954
      %v974 = vmul.f32 %v909, %v958
      %v975 = vmul.f32 %v800, %v946
      %v976 = vmul.f32 %v802, %v950
      %v977 = vmul.f32 %v913, %v954
      %v978 = vmul.f32 %v915, %v958
      %v979 = vmul.f32 %v806, %v946
      %v980 = vmul.f32 %v808, %v950
      %v981 = vmul.f32 %v919, %v954
      %v982 = vmul.f32 %v921, %v958
      %v983 = vmul.f32 %v812, %v946
      %v984 = vmul.f32 %v814, %v950
      %v985 = vmul.f32 %v925, %v954
      %v986 = vmul.f32 %v927, %v958
      %v987 = vmul.f32 %v818, %v946
      %v988 = vmul.f32 %v820, %v950
      %v989 = vmul.f32 %v931, %v954
      %v990 = vmul.f32 %v933, %v958
      %v991 = vmul.f32 %v824, %v946
      %v992 = vmul.f32 %v826, %v950
      %v993 = vmul.f32 %v937, %v954
      %v994 = vmul.f32 %v939, %v958
      %v995 = vmul.f32 %v963, 1.442695
      %v996 = vpow.pop %v995
      %v997 = vmul.f32 %v964, 1.442695
      %v998 = vpow.pop %v997
      %v999 = vmul.f32 %v965, 1.442695
      %v1000 = vpow.pop %v999
      %v1001 = vmul.f32 %v966, 1.442695
      %v1002 = vpow.pop %v1001
      %v1003 = vmul.f32 %v967, 1.442695
      %v1004 = vpow.pop %v1003
      %v1005 = vmul.f32 %v968, 1.442695
      %v1006 = vpow.pop %v1005
      %v1007 = vmul.f32 %v969, 1.442695
      %v1008 = vpow.pop %v1007
      %v1009 = vmul.f32 %v970, 1.442695
      %v1010 = vpow.pop %v1009
      %v1011 = vmul.f32 %v971, 1.442695
      %v1012 = vpow.pop %v1011
      %v1013 = vmul.f32 %v972, 1.442695
      %v1014 = vpow.pop %v1013
      %v1015 = vmul.f32 %v973, 1.442695
      %v1016 = vpow.pop %v1015
      %v1017 = vmul.f32 %v974, 1.442695
      %v1018 = vpow.pop %v1017
      %v1019 = vmul.f32 %v975, 1.442695
      %v1020 = vpow.pop %v1019
      %v1021 = vmul.f32 %v976, 1.442695
      %v1022 = vpow.pop %v1021
      %v1023 = vmul.f32 %v977, 1.442695
      %v1024 = vpow.pop %v1023
      %v1025 = vmul.f32 %v978, 1.442695
      %v1026 = vpow.pop %v1025
      %v1027 = vmul.f32 %v979, 1.442695
      %v1028 = vpow.pop %v1027
      %v1029 = vmul.f32 %v980, 1.442695
      %v1030 = vpow.pop %v1029
      %v1031 = vmul.f32 %v981, 1.442695
      %v1032 = vpow.pop %v1031
      %v1033 = vmul.f32 %v982, 1.442695
      %v1034 = vpow.pop %v1033
      %v1035 = vmul.f32 %v983, 1.442695
      %v1036 = vpow.pop %v1035
      %v1037 = vmul.f32 %v984, 1.442695
      %v1038 = vpow.pop %v1037
      %v1039 = vmul.f32 %v985, 1.442695
      %v1040 = vpow.pop %v1039
      %v1041 = vmul.f32 %v986, 1.442695
      %v1042 = vpow.pop %v1041
      %v1043 = vmul.f32 %v987, 1.442695
      %v1044 = vpow.pop %v1043
      %v1045 = vmul.f32 %v988, 1.442695
      %v1046 = vpow.pop %v1045
      %v1047 = vmul.f32 %v989, 1.442695
      %v1048 = vpow.pop %v1047
      %v1049 = vmul.f32 %v990, 1.442695
      %v1050 = vpow.pop %v1049
      %v1051 = vmul.f32 %v991, 1.442695
      %v1052 = vpow.pop %v1051
      %v1053 = vmul.f32 %v992, 1.442695
      %v1054 = vpow.pop %v1053
      %v1055 = vmul.f32 %v993, 1.442695
      %v1056 = vpow.pop %v1055
      %v1057 = vmul.f32 %v994, 1.442695
      %v1058 = vpow.pop %v1057
      %1059 = vst [vmem:[#allocation3] sm:$0xff] %v996
      %1060 = vst [vmem:[#allocation3 + $0x8] sm:$0xff] %v998
      %1061 = vst [vmem:[#allocation3 + $0x10] sm:$0xff] %v1000
      %1062 = vst [vmem:[#allocation3 + $0x18] sm:$0xff] %v1002
      %1063 = vst [vmem:[#allocation3 + $0x20] sm:$0xff] %v1004
      %1064 = vst [vmem:[#allocation3 + $0x28] sm:$0xff] %v1006
      %1065 = vst [vmem:[#allocation3 + $0x30] sm:$0xff] %v1008
      %1066 = vst [vmem:[#allocation3 + $0x38] sm:$0xff] %v1010
      %1067 = vst [vmem:[#allocation3 + $0x40] sm:$0xff] %v1012
      %1068 = vst [vmem:[#allocation3 + $0x48] sm:$0xff] %v1014
      %1069 = vst [vmem:[#allocation3 + $0x50] sm:$0xff] %v1016
      %1070 = vst [vmem:[#allocation3 + $0x58] sm:$0xff] %v1018
      %1071 = vst [vmem:[#allocation3 + $0x60] sm:$0xff] %v1020
      %1072 = vst [vmem:[#allocation3 + $0x68] sm:$0xff] %v1022
      %1073 = vst [vmem:[#allocation3 + $0x70] sm:$0xff] %v1024
      %1074 = vst [vmem:[#allocation3 + $0x78] sm:$0xff] %v1026
      %1075 = vst [vmem:[#allocation3 + $0x80] sm:$0xff] %v1028
      %1076 = vst [vmem:[#allocation3 + $0x88] sm:$0xff] %v1030
      %1077 = vst [vmem:[#allocation3 + $0x90] sm:$0xff] %v1032
      %1078 = vst [vmem:[#allocation3 + $0x98] sm:$0xff] %v1034
      %1079 = vst [vmem:[#allocation3 + $0xa0] sm:$0xff] %v1036
      %1080 = vst [vmem:[#allocation3 + $0xa8] sm:$0xff] %v1038
      %1081 = vst [vmem:[#allocation3 + $0xb0] sm:$0xff] %v1040
      %1082 = vst [vmem:[#allocation3 + $0xb8] sm:$0xff] %v1042
      %1083 = vst [vmem:[#allocation3 + $0xc0] sm:$0xff] %v1044
      %1084 = vst [vmem:[#allocation3 + $0xc8] sm:$0xff] %v1046
      %1085 = vst [vmem:[#allocation3 + $0xd0] sm:$0xff] %v1048
      %1086 = vst [vmem:[#allocation3 + $0xd8] sm:$0xff] %v1050
      %1087 = vst [vmem:[#allocation3 + $0xe0] sm:$0xff] %v1052
      %1088 = vst [vmem:[#allocation3 + $0xe8] sm:$0xff] %v1054
      %1089 = vst [vmem:[#allocation3 + $0xf0] sm:$0xff] %v1056
      %1090 = vst [vmem:[#allocation3 + $0xf8] sm:$0xff] %v1058
      %v1091 = vmul.f32 %v666, %v531
      %v1092 = vmul.f32 %v667, %v532
      %v1093 = vmul.f32 %v668, %v533
      %v1094 = vmul.f32 %v669, %v534
      %v1095 = vmul.f32 %v670, %v535
      %v1096 = vmul.f32 %v671, %v536
      %v1097 = vmul.f32 %v672, %v537
      %v1098 = vmul.f32 %v673, %v538
      %v1099 = vld [vmem:[%s5] sm:$0xff]
      %v1100 = vld [vmem:[%s5 + $0x8] sm:$0xff]
      %v1101 = vld [vmem:[%s5 + $0x10] sm:$0xff]
      %v1102 = vld [vmem:[%s5 + $0x18] sm:$0xff]
      %v1103 = vld [vmem:[%s5 + $0x20] sm:$0xff]
      %v1104 = vld [vmem:[%s5 + $0x28] sm:$0xff]
      %v1105 = vld [vmem:[%s5 + $0x30] sm:$0xff]
      %v1106 = vld [vmem:[%s5 + $0x38] sm:$0xff]
      %v1107 = vld [vmem:[%s5 + $0x40] sm:$0xff]
      %v1108 = vld [vmem:[%s5 + $0x48] sm:$0xff]
      %v1109 = vld [vmem:[%s5 + $0x50] sm:$0xff]
      %v1110 = vld [vmem:[%s5 + $0x58] sm:$0xff]
      %v1111 = vld [vmem:[%s5 + $0x60] sm:$0xff]
      %v1112 = vld [vmem:[%s5 + $0x68] sm:$0xff]
      %v1113 = vld [vmem:[%s5 + $0x70] sm:$0xff]
      %v1114 = vld [vmem:[%s5 + $0x78] sm:$0xff]
      %v1116 = vsel %vm690, %v1091, 0
      %v1119 = vsel %vm690, %v1092, 0
      %v1122 = vsel %vm690, %v1093, 0
      %v1125 = vsel %vm690, %v1094, 0
      %v1128 = vsel %vm690, %v1095, 0
      %v1131 = vsel %vm690, %v1096, 0
      %v1134 = vsel %vm690, %v1097, 0
      %v1137 = vsel %vm690, %v1098, 0
      %1139 = vmatprep.subr.mxu0 0.0
      %1140 = vmatpush1.msra.mxu0 0.0
      %1141 = vmatprep.subr.mxu0 0.0
      %1142 = vmatpush1.msra.mxu0 0.0
      %1143 = vmatprep.subr.mxu0 0.0
      %1144 = vmatpush1.msra.mxu0 0.0
      %1145 = vmatprep.subr.mxu0 0.0
      %1146 = vmatpush1.msra.mxu0 0.0
      %1147 = vmatprep.subr.mxu0 0.0
      %1148 = vmatpush1.msra.mxu0 0.0
      %1149 = vmatprep.subr.mxu0 0.0
      %1150 = vmatpush1.msra.mxu0 0.0
      %1151 = vmatprep.subr.mxu0 0.0
      %1152 = vmatpush1.msra.mxu0 0.0
      %1153 = vmatprep.subr.mxu0 0.0
      %1154 = vmatpush1.msra.mxu0 0.0
      %1155 = vmatprep.subr.mxu0 0.0
      %1156 = vmatpush1.msra.mxu0 0.0
      %1157 = vmatprep.subr.mxu0 0.0
      %1158 = vmatpush1.msra.mxu0 0.0
      %1159 = vmatprep.subr.mxu0 0.0
      %1160 = vmatpush1.msra.mxu0 0.0
      %1161 = vmatprep.subr.mxu0 0.0
      %1162 = vmatpush1.msra.mxu0 0.0
      %1163 = vmatprep.subr.mxu0 %v1112
      %1164 = vmatpush1.msra.mxu0 %v1111
      %1165 = vmatprep.subr.mxu0 %v1108
      %1166 = vmatpush1.msra.mxu0 %v1107
      %1167 = vmatprep.subr.mxu0 %v1104
      %1168 = vmatpush1.msra.mxu0 %v1103
      %1169 = vmatprep.subr.mxu0 %v1100
      %1170 = vmatpush1.msra.mxu0 %v1099
      %1171 = vmatprep.subr.mxu0 0.0
      %1172 = vmatpush2.msra.mxu0 0.0
      %1173 = vmatprep.subr.mxu0 0.0
      %1174 = vmatpush2.msra.mxu0 0.0
      %1175 = vmatprep.subr.mxu0 0.0
      %1176 = vmatpush2.msra.mxu0 0.0
      %1177 = vmatprep.subr.mxu0 0.0
      %1178 = vmatpush2.msra.mxu0 0.0
      %1179 = vmatprep.subr.mxu0 0.0
      %1180 = vmatpush2.msra.mxu0 0.0
      %1181 = vmatprep.subr.mxu0 0.0
      %1182 = vmatpush2.msra.mxu0 0.0
      %1183 = vmatprep.subr.mxu0 0.0
      %1184 = vmatpush2.msra.mxu0 0.0
      %1185 = vmatprep.subr.mxu0 0.0
      %1186 = vmatpush2.msra.mxu0 0.0
      %1187 = vmatprep.subr.mxu0 0.0
      %1188 = vmatpush2.msra.mxu0 0.0
      %1189 = vmatprep.subr.mxu0 0.0
      %1190 = vmatpush2.msra.mxu0 0.0
      %1191 = vmatprep.subr.mxu0 0.0
      %1192 = vmatpush2.msra.mxu0 0.0
      %1193 = vmatprep.subr.mxu0 0.0
      %1194 = vmatpush2.msra.mxu0 0.0
      %1195 = vmatprep.subr.mxu0 0.0
      %1196 = vmatpush2.msra.mxu0 0.0
      %1197 = vmatprep.subr.mxu0 0.0
      %1198 = vmatpush2.msra.mxu0 0.0
      %1199 = vmatprep.subr.mxu0 0.0
      %1200 = vmatpush2.msra.mxu0 0.0
      %1201 = vmatprep.subr.mxu0 0.0
      %1202 = vmatpush2.msra.mxu0 0.0
      %1203 = vmatprep.mubr.f32.mxu0 0.0
      %1204 = vmatmul.mubr.f32.gmra.mxu0 %v1116
      %v1205 = vpop.f32.mrf.mxu0
      %v1206 = vadd.f32 0.0, %v1205
      %v1207 = vpop.f32.mrf.mxu0
      %v1208 = vadd.f32 0.0, %v1207
      %1209 = vmatprep.mubr.f32.mxu0 0.0
      %1210 = vmatmul.mubr.f32.gmra.mxu0 %v1119
      %v1211 = vpop.f32.mrf.mxu0
      %v1212 = vadd.f32 0.0, %v1211
      %v1213 = vpop.f32.mrf.mxu0
      %v1214 = vadd.f32 0.0, %v1213
      %1215 = vmatprep.mubr.f32.mxu0 0.0
      %1216 = vmatmul.mubr.f32.gmra.mxu0 %v1122
      %v1217 = vpop.f32.mrf.mxu0
      %v1218 = vadd.f32 0.0, %v1217
      %v1219 = vpop.f32.mrf.mxu0
      %v1220 = vadd.f32 0.0, %v1219
      %1221 = vmatprep.mubr.f32.mxu0 0.0
      %1222 = vmatmul.mubr.f32.gmra.mxu0 %v1125
      %v1223 = vpop.f32.mrf.mxu0
      %v1224 = vadd.f32 0.0, %v1223
      %v1225 = vpop.f32.mrf.mxu0
      %v1226 = vadd.f32 0.0, %v1225
      %1227 = vmatprep.mubr.f32.mxu0 0.0
      %1228 = vmatmul.mubr.f32.gmra.mxu0 %v1128
      %v1229 = vpop.f32.mrf.mxu0
      %v1230 = vadd.f32 0.0, %v1229
      %v1231 = vpop.f32.mrf.mxu0
      %v1232 = vadd.f32 0.0, %v1231
      %1233 = vmatprep.mubr.f32.mxu0 0.0
      %1234 = vmatmul.mubr.f32.gmra.mxu0 %v1131
      %v1235 = vpop.f32.mrf.mxu0
      %v1236 = vadd.f32 0.0, %v1235
      %v1237 = vpop.f32.mrf.mxu0
      %v1238 = vadd.f32 0.0, %v1237
      %1239 = vmatprep.mubr.f32.mxu0 0.0
      %1240 = vmatmul.mubr.f32.gmra.mxu0 %v1134
      %v1241 = vpop.f32.mrf.mxu0
      %v1242 = vadd.f32 0.0, %v1241
      %v1243 = vpop.f32.mrf.mxu0
      %v1244 = vadd.f32 0.0, %v1243
      %1245 = vmatprep.mubr.f32.mxu0 0.0
      %1246 = vmatmul.mubr.f32.gmra.mxu0 %v1137
      %v1247 = vpop.f32.mrf.mxu0
      %v1248 = vadd.f32 0.0, %v1247
      %v1249 = vpop.f32.mrf.mxu0
      %v1250 = vadd.f32 0.0, %v1249
      %1251 = vdwg.mxu0
      %1252 = vmatprep.subr.mxu0 0.0
      %1253 = vmatpush1.msra.mxu0 0.0
      %1254 = vmatprep.subr.mxu0 0.0
      %1255 = vmatpush1.msra.mxu0 0.0
      %1256 = vmatprep.subr.mxu0 0.0
      %1257 = vmatpush1.msra.mxu0 0.0
      %1258 = vmatprep.subr.mxu0 0.0
      %1259 = vmatpush1.msra.mxu0 0.0
      %1260 = vmatprep.subr.mxu0 0.0
      %1261 = vmatpush1.msra.mxu0 0.0
      %1262 = vmatprep.subr.mxu0 0.0
      %1263 = vmatpush1.msra.mxu0 0.0
      %1264 = vmatprep.subr.mxu0 0.0
      %1265 = vmatpush1.msra.mxu0 0.0
      %1266 = vmatprep.subr.mxu0 0.0
      %1267 = vmatpush1.msra.mxu0 0.0
      %1268 = vmatprep.subr.mxu0 0.0
      %1269 = vmatpush1.msra.mxu0 0.0
      %1270 = vmatprep.subr.mxu0 0.0
      %1271 = vmatpush1.msra.mxu0 0.0
      %1272 = vmatprep.subr.mxu0 0.0
      %1273 = vmatpush1.msra.mxu0 0.0
      %1274 = vmatprep.subr.mxu0 0.0
      %1275 = vmatpush1.msra.mxu0 0.0
      %1276 = vmatprep.subr.mxu0 %v1114
      %1277 = vmatpush1.msra.mxu0 %v1113
      %1278 = vmatprep.subr.mxu0 %v1110
      %1279 = vmatpush1.msra.mxu0 %v1109
      %1280 = vmatprep.subr.mxu0 %v1106
      %1281 = vmatpush1.msra.mxu0 %v1105
      %1282 = vmatprep.subr.mxu0 %v1102
      %1283 = vmatpush1.msra.mxu0 %v1101
      %1284 = vmatprep.subr.mxu0 0.0
      %1285 = vmatpush2.msra.mxu0 0.0
      %1286 = vmatprep.subr.mxu0 0.0
      %1287 = vmatpush2.msra.mxu0 0.0
      %1288 = vmatprep.subr.mxu0 0.0
      %1289 = vmatpush2.msra.mxu0 0.0
      %1290 = vmatprep.subr.mxu0 0.0
      %1291 = vmatpush2.msra.mxu0 0.0
      %1292 = vmatprep.subr.mxu0 0.0
      %1293 = vmatpush2.msra.mxu0 0.0
      %1294 = vmatprep.subr.mxu0 0.0
      %1295 = vmatpush2.msra.mxu0 0.0
      %1296 = vmatprep.subr.mxu0 0.0
      %1297 = vmatpush2.msra.mxu0 0.0
      %1298 = vmatprep.subr.mxu0 0.0
      %1299 = vmatpush2.msra.mxu0 0.0
      %1300 = vmatprep.subr.mxu0 0.0
      %1301 = vmatpush2.msra.mxu0 0.0
      %1302 = vmatprep.subr.mxu0 0.0
      %1303 = vmatpush2.msra.mxu0 0.0
      %1304 = vmatprep.subr.mxu0 0.0
      %1305 = vmatpush2.msra.mxu0 0.0
      %1306 = vmatprep.subr.mxu0 0.0
      %1307 = vmatpush2.msra.mxu0 0.0
      %1308 = vmatprep.subr.mxu0 0.0
      %1309 = vmatpush2.msra.mxu0 0.0
      %1310 = vmatprep.subr.mxu0 0.0
      %1311 = vmatpush2.msra.mxu0 0.0
      %1312 = vmatprep.subr.mxu0 0.0
      %1313 = vmatpush2.msra.mxu0 0.0
      %1314 = vmatprep.subr.mxu0 0.0
      %1315 = vmatpush2.msra.mxu0 0.0
      %1316 = vmatprep.mubr.f32.mxu0 0.0
      %1317 = vmatmul.mubr.f32.gmra.mxu0 %v1116
      %v1318 = vpop.f32.mrf.mxu0
      %v1319 = vadd.f32 0.0, %v1318
      %v1320 = vpop.f32.mrf.mxu0
      %v1321 = vadd.f32 0.0, %v1320
      %1322 = vmatprep.mubr.f32.mxu0 0.0
      %1323 = vmatmul.mubr.f32.gmra.mxu0 %v1119
      %v1324 = vpop.f32.mrf.mxu0
      %v1325 = vadd.f32 0.0, %v1324
      %v1326 = vpop.f32.mrf.mxu0
      %v1327 = vadd.f32 0.0, %v1326
      %1328 = vmatprep.mubr.f32.mxu0 0.0
      %1329 = vmatmul.mubr.f32.gmra.mxu0 %v1122
      %v1330 = vpop.f32.mrf.mxu0
      %v1331 = vadd.f32 0.0, %v1330
      %v1332 = vpop.f32.mrf.mxu0
      %v1333 = vadd.f32 0.0, %v1332
      %1334 = vmatprep.mubr.f32.mxu0 0.0
      %1335 = vmatmul.mubr.f32.gmra.mxu0 %v1125
      %v1336 = vpop.f32.mrf.mxu0
      %v1337 = vadd.f32 0.0, %v1336
      %v1338 = vpop.f32.mrf.mxu0
      %v1339 = vadd.f32 0.0, %v1338
      %1340 = vmatprep.mubr.f32.mxu0 0.0
      %1341 = vmatmul.mubr.f32.gmra.mxu0 %v1128
      %v1342 = vpop.f32.mrf.mxu0
      %v1343 = vadd.f32 0.0, %v1342
      %v1344 = vpop.f32.mrf.mxu0
      %v1345 = vadd.f32 0.0, %v1344
      %1346 = vmatprep.mubr.f32.mxu0 0.0
      %1347 = vmatmul.mubr.f32.gmra.mxu0 %v1131
      %v1348 = vpop.f32.mrf.mxu0
      %v1349 = vadd.f32 0.0, %v1348
      %v1350 = vpop.f32.mrf.mxu0
      %v1351 = vadd.f32 0.0, %v1350
      %1352 = vmatprep.mubr.f32.mxu0 0.0
      %1353 = vmatmul.mubr.f32.gmra.mxu0 %v1134
      %v1354 = vpop.f32.mrf.mxu0
      %v1355 = vadd.f32 0.0, %v1354
      %v1356 = vpop.f32.mrf.mxu0
      %v1357 = vadd.f32 0.0, %v1356
      %1358 = vmatprep.mubr.f32.mxu0 0.0
      %1359 = vmatmul.mubr.f32.gmra.mxu0 %v1137
      %v1360 = vpop.f32.mrf.mxu0
      %v1361 = vadd.f32 0.0, %v1360
      %v1362 = vpop.f32.mrf.mxu0
      %v1363 = vadd.f32 0.0, %v1362
      %1364 = vdwg.mxu0
      %v1365 = vld [vmem:[%s494] sm:$0xff]
      %v1366 = vld [vmem:[%s494 + $0x8] sm:$0xff]
      %v1367 = vld [vmem:[%s494 + $0x10] sm:$0xff]
      %v1368 = vld [vmem:[%s494 + $0x18] sm:$0xff]
      %v1369 = vld [vmem:[%s494 + $0x20] sm:$0xff]
      %v1370 = vld [vmem:[%s494 + $0x28] sm:$0xff]
      %v1371 = vld [vmem:[%s494 + $0x30] sm:$0xff]
      %v1372 = vld [vmem:[%s494 + $0x38] sm:$0xff]
      %v1373 = vld [vmem:[%s6] sm:$0xff]
      %v1374 = vld [vmem:[%s6 + $0x8] sm:$0xff]
      %v1375 = vld [vmem:[%s6 + $0x10] sm:$0xff]
      %v1376 = vld [vmem:[%s6 + $0x18] sm:$0xff]
      %v1377 = vld [vmem:[%s6 + $0x20] sm:$0xff]
      %v1378 = vld [vmem:[%s6 + $0x28] sm:$0xff]
      %v1379 = vld [vmem:[%s6 + $0x30] sm:$0xff]
      %v1380 = vld [vmem:[%s6 + $0x38] sm:$0xff]
      %vm1381 = vcmask 130048
      %v1383 = vsel %vm1381, %v1365, 0
      %v1386 = vsel %vm1381, %v1366, 0
      %v1389 = vsel %vm1381, %v1367, 0
      %v1392 = vsel %vm1381, %v1368, 0
      %v1395 = vsel %vm1381, %v1369, 0
      %v1398 = vsel %vm1381, %v1370, 0
      %v1401 = vsel %vm1381, %v1371, 0
      %v1404 = vsel %vm1381, %v1372, 0
      %1406 = vmatprep.subr.mxu0 0.0
      %1407 = vmatpush1.msra.mxu0 0.0
      %1408 = vmatprep.subr.mxu0 0.0
      %1409 = vmatpush1.msra.mxu0 0.0
      %1410 = vmatprep.subr.mxu0 0.0
      %1411 = vmatpush1.msra.mxu0 0.0
      %1412 = vmatprep.subr.mxu0 0.0
      %1413 = vmatpush1.msra.mxu0 0.0
      %1414 = vmatprep.subr.mxu0 0.0
      %1415 = vmatpush1.msra.mxu0 0.0
      %1416 = vmatprep.subr.mxu0 0.0
      %1417 = vmatpush1.msra.mxu0 0.0
      %1418 = vmatprep.subr.mxu0 0.0
      %1419 = vmatpush1.msra.mxu0 0.0
      %1420 = vmatprep.subr.mxu0 0.0
      %1421 = vmatpush1.msra.mxu0 0.0
      %1422 = vmatprep.subr.mxu0 0.0
      %1423 = vmatpush1.msra.mxu0 0.0
      %1424 = vmatprep.subr.mxu0 0.0
      %1425 = vmatpush1.msra.mxu0 0.0
      %1426 = vmatprep.subr.mxu0 0.0
      %1427 = vmatpush1.msra.mxu0 0.0
      %1428 = vmatprep.subr.mxu0 0.0
      %1429 = vmatpush1.msra.mxu0 0.0
      %1430 = vmatprep.subr.mxu0 0.0
      %1431 = vmatpush1.msra.mxu0 0.0
      %1432 = vmatprep.subr.mxu0 0.0
      %1433 = vmatpush1.msra.mxu0 0.0
      %1434 = vmatprep.subr.mxu0 %v1378
      %1435 = vmatpush1.msra.mxu0 %v1377
      %1436 = vmatprep.subr.mxu0 %v1374
      %1437 = vmatpush1.msra.mxu0 %v1373
      %1438 = vmatprep.subr.mxu0 0.0
      %1439 = vmatpush2.msra.mxu0 0.0
      %1440 = vmatprep.subr.mxu0 0.0
      %1441 = vmatpush2.msra.mxu0 0.0
      %1442 = vmatprep.subr.mxu0 0.0
      %1443 = vmatpush2.msra.mxu0 0.0
      %1444 = vmatprep.subr.mxu0 0.0
      %1445 = vmatpush2.msra.mxu0 0.0
      %1446 = vmatprep.subr.mxu0 0.0
      %1447 = vmatpush2.msra.mxu0 0.0
      %1448 = vmatprep.subr.mxu0 0.0
      %1449 = vmatpush2.msra.mxu0 0.0
      %1450 = vmatprep.subr.mxu0 0.0
      %1451 = vmatpush2.msra.mxu0 0.0
      %1452 = vmatprep.subr.mxu0 0.0
      %1453 = vmatpush2.msra.mxu0 0.0
      %1454 = vmatprep.subr.mxu0 0.0
      %1455 = vmatpush2.msra.mxu0 0.0
      %1456 = vmatprep.subr.mxu0 0.0
      %1457 = vmatpush2.msra.mxu0 0.0
      %1458 = vmatprep.subr.mxu0 0.0
      %1459 = vmatpush2.msra.mxu0 0.0
      %1460 = vmatprep.subr.mxu0 0.0
      %1461 = vmatpush2.msra.mxu0 0.0
      %1462 = vmatprep.subr.mxu0 0.0
      %1463 = vmatpush2.msra.mxu0 0.0
      %1464 = vmatprep.subr.mxu0 0.0
      %1465 = vmatpush2.msra.mxu0 0.0
      %1466 = vmatprep.subr.mxu0 0.0
      %1467 = vmatpush2.msra.mxu0 0.0
      %1468 = vmatprep.subr.mxu0 0.0
      %1469 = vmatpush2.msra.mxu0 0.0
      %1470 = vmatprep.mubr.f32.mxu0 0.0
      %1471 = vmatmul.mubr.f32.gmra.mxu0 %v1383
      %v1472 = vpop.f32.mrf.mxu0
      %v1473 = vadd.f32 0.0, %v1472
      %v1474 = vpop.f32.mrf.mxu0
      %v1475 = vadd.f32 0.0, %v1474
      %1476 = vmatprep.mubr.f32.mxu0 0.0
      %1477 = vmatmul.mubr.f32.gmra.mxu0 %v1386
      %v1478 = vpop.f32.mrf.mxu0
      %v1479 = vadd.f32 0.0, %v1478
      %v1480 = vpop.f32.mrf.mxu0
      %v1481 = vadd.f32 0.0, %v1480
      %1482 = vmatprep.mubr.f32.mxu0 0.0
      %1483 = vmatmul.mubr.f32.gmra.mxu0 %v1389
      %v1484 = vpop.f32.mrf.mxu0
      %v1485 = vadd.f32 0.0, %v1484
      %v1486 = vpop.f32.mrf.mxu0
      %v1487 = vadd.f32 0.0, %v1486
      %1488 = vmatprep.mubr.f32.mxu0 0.0
      %1489 = vmatmul.mubr.f32.gmra.mxu0 %v1392
      %v1490 = vpop.f32.mrf.mxu0
      %v1491 = vadd.f32 0.0, %v1490
      %v1492 = vpop.f32.mrf.mxu0
      %v1493 = vadd.f32 0.0, %v1492
      %1494 = vmatprep.mubr.f32.mxu0 0.0
      %1495 = vmatmul.mubr.f32.gmra.mxu0 %v1395
      %v1496 = vpop.f32.mrf.mxu0
      %v1497 = vadd.f32 0.0, %v1496
      %v1498 = vpop.f32.mrf.mxu0
      %v1499 = vadd.f32 0.0, %v1498
      %1500 = vmatprep.mubr.f32.mxu0 0.0
      %1501 = vmatmul.mubr.f32.gmra.mxu0 %v1398
      %v1502 = vpop.f32.mrf.mxu0
      %v1503 = vadd.f32 0.0, %v1502
      %v1504 = vpop.f32.mrf.mxu0
      %v1505 = vadd.f32 0.0, %v1504
      %1506 = vmatprep.mubr.f32.mxu0 0.0
      %1507 = vmatmul.mubr.f32.gmra.mxu0 %v1401
      %v1508 = vpop.f32.mrf.mxu0
      %v1509 = vadd.f32 0.0, %v1508
      %v1510 = vpop.f32.mrf.mxu0
      %v1511 = vadd.f32 0.0, %v1510
      %1512 = vmatprep.mubr.f32.mxu0 0.0
      %1513 = vmatmul.mubr.f32.gmra.mxu0 %v1404
      %v1514 = vpop.f32.mrf.mxu0
      %v1515 = vadd.f32 0.0, %v1514
      %v1516 = vpop.f32.mrf.mxu0
      %v1517 = vadd.f32 0.0, %v1516
      %1518 = vdwg.mxu0
      %1519 = vmatprep.subr.mxu0 0.0
      %1520 = vmatpush1.msra.mxu0 0.0
      %1521 = vmatprep.subr.mxu0 0.0
      %1522 = vmatpush1.msra.mxu0 0.0
      %1523 = vmatprep.subr.mxu0 0.0
      %1524 = vmatpush1.msra.mxu0 0.0
      %1525 = vmatprep.subr.mxu0 0.0
      %1526 = vmatpush1.msra.mxu0 0.0
      %1527 = vmatprep.subr.mxu0 0.0
      %1528 = vmatpush1.msra.mxu0 0.0
      %1529 = vmatprep.subr.mxu0 0.0
      %1530 = vmatpush1.msra.mxu0 0.0
      %1531 = vmatprep.subr.mxu0 0.0
      %1532 = vmatpush1.msra.mxu0 0.0
      %1533 = vmatprep.subr.mxu0 0.0
      %1534 = vmatpush1.msra.mxu0 0.0
      %1535 = vmatprep.subr.mxu0 0.0
      %1536 = vmatpush1.msra.mxu0 0.0
      %1537 = vmatprep.subr.mxu0 0.0
      %1538 = vmatpush1.msra.mxu0 0.0
      %1539 = vmatprep.subr.mxu0 0.0
      %1540 = vmatpush1.msra.mxu0 0.0
      %1541 = vmatprep.subr.mxu0 0.0
      %1542 = vmatpush1.msra.mxu0 0.0
      %1543 = vmatprep.subr.mxu0 0.0
      %1544 = vmatpush1.msra.mxu0 0.0
      %1545 = vmatprep.subr.mxu0 0.0
      %1546 = vmatpush1.msra.mxu0 0.0
      %1547 = vmatprep.subr.mxu0 %v1380
      %1548 = vmatpush1.msra.mxu0 %v1379
      %1549 = vmatprep.subr.mxu0 %v1376
      %1550 = vmatpush1.msra.mxu0 %v1375
      %1551 = vmatprep.subr.mxu0 0.0
      %1552 = vmatpush2.msra.mxu0 0.0
      %1553 = vmatprep.subr.mxu0 0.0
      %1554 = vmatpush2.msra.mxu0 0.0
      %1555 = vmatprep.subr.mxu0 0.0
      %1556 = vmatpush2.msra.mxu0 0.0
      %1557 = vmatprep.subr.mxu0 0.0
      %1558 = vmatpush2.msra.mxu0 0.0
      %1559 = vmatprep.subr.mxu0 0.0
      %1560 = vmatpush2.msra.mxu0 0.0
      %1561 = vmatprep.subr.mxu0 0.0
      %1562 = vmatpush2.msra.mxu0 0.0
      %1563 = vmatprep.subr.mxu0 0.0
      %1564 = vmatpush2.msra.mxu0 0.0
      %1565 = vmatprep.subr.mxu0 0.0
      %1566 = vmatpush2.msra.mxu0 0.0
      %1567 = vmatprep.subr.mxu0 0.0
      %1568 = vmatpush2.msra.mxu0 0.0
      %1569 = vmatprep.subr.mxu0 0.0
      %1570 = vmatpush2.msra.mxu0 0.0
      %1571 = vmatprep.subr.mxu0 0.0
      %1572 = vmatpush2.msra.mxu0 0.0
      %1573 = vmatprep.subr.mxu0 0.0
      %1574 = vmatpush2.msra.mxu0 0.0
      %1575 = vmatprep.subr.mxu0 0.0
      %1576 = vmatpush2.msra.mxu0 0.0
      %1577 = vmatprep.subr.mxu0 0.0
      %1578 = vmatpush2.msra.mxu0 0.0
      %1579 = vmatprep.subr.mxu0 0.0
      %1580 = vmatpush2.msra.mxu0 0.0
      %1581 = vmatprep.subr.mxu0 0.0
      %1582 = vmatpush2.msra.mxu0 0.0
      %1583 = vmatprep.mubr.f32.mxu0 0.0
      %1584 = vmatmul.mubr.f32.gmra.mxu0 %v1383
      %v1585 = vpop.f32.mrf.mxu0
      %v1586 = vadd.f32 0.0, %v1585
      %v1587 = vpop.f32.mrf.mxu0
      %v1588 = vadd.f32 0.0, %v1587
      %1589 = vmatprep.mubr.f32.mxu0 0.0
      %1590 = vmatmul.mubr.f32.gmra.mxu0 %v1386
      %v1591 = vpop.f32.mrf.mxu0
      %v1592 = vadd.f32 0.0, %v1591
      %v1593 = vpop.f32.mrf.mxu0
      %v1594 = vadd.f32 0.0, %v1593
      %1595 = vmatprep.mubr.f32.mxu0 0.0
      %1596 = vmatmul.mubr.f32.gmra.mxu0 %v1389
      %v1597 = vpop.f32.mrf.mxu0
      %v1598 = vadd.f32 0.0, %v1597
      %v1599 = vpop.f32.mrf.mxu0
      %v1600 = vadd.f32 0.0, %v1599
      %1601 = vmatprep.mubr.f32.mxu0 0.0
      %1602 = vmatmul.mubr.f32.gmra.mxu0 %v1392
      %v1603 = vpop.f32.mrf.mxu0
      %v1604 = vadd.f32 0.0, %v1603
      %v1605 = vpop.f32.mrf.mxu0
      %v1606 = vadd.f32 0.0, %v1605
      %1607 = vmatprep.mubr.f32.mxu0 0.0
      %1608 = vmatmul.mubr.f32.gmra.mxu0 %v1395
      %v1609 = vpop.f32.mrf.mxu0
      %v1610 = vadd.f32 0.0, %v1609
      %v1611 = vpop.f32.mrf.mxu0
      %v1612 = vadd.f32 0.0, %v1611
      %1613 = vmatprep.mubr.f32.mxu0 0.0
      %1614 = vmatmul.mubr.f32.gmra.mxu0 %v1398
      %v1615 = vpop.f32.mrf.mxu0
      %v1616 = vadd.f32 0.0, %v1615
      %v1617 = vpop.f32.mrf.mxu0
      %v1618 = vadd.f32 0.0, %v1617
      %1619 = vmatprep.mubr.f32.mxu0 0.0
      %1620 = vmatmul.mubr.f32.gmra.mxu0 %v1401
      %v1621 = vpop.f32.mrf.mxu0
      %v1622 = vadd.f32 0.0, %v1621
      %v1623 = vpop.f32.mrf.mxu0
      %v1624 = vadd.f32 0.0, %v1623
      %1625 = vmatprep.mubr.f32.mxu0 0.0
      %1626 = vmatmul.mubr.f32.gmra.mxu0 %v1404
      %v1627 = vpop.f32.mrf.mxu0
      %v1628 = vadd.f32 0.0, %v1627
      %v1629 = vpop.f32.mrf.mxu0
      %v1630 = vadd.f32 0.0, %v1629
      %1631 = vdwg.mxu0
      %v1632 = vmul.f32 %v1206, %v1473
      %v1633 = vmul.f32 %v1208, %v1475
      %v1634 = vmul.f32 %v1319, %v1586
      %v1635 = vmul.f32 %v1321, %v1588
      %v1636 = vmul.f32 %v1212, %v1479
      %v1637 = vmul.f32 %v1214, %v1481
      %v1638 = vmul.f32 %v1325, %v1592
      %v1639 = vmul.f32 %v1327, %v1594
      %v1640 = vmul.f32 %v1218, %v1485
      %v1641 = vmul.f32 %v1220, %v1487
      %v1642 = vmul.f32 %v1331, %v1598
      %v1643 = vmul.f32 %v1333, %v1600
      %v1644 = vmul.f32 %v1224, %v1491
      %v1645 = vmul.f32 %v1226, %v1493
      %v1646 = vmul.f32 %v1337, %v1604
      %v1647 = vmul.f32 %v1339, %v1606
      %v1648 = vmul.f32 %v1230, %v1497
      %v1649 = vmul.f32 %v1232, %v1499
      %v1650 = vmul.f32 %v1343, %v1610
      %v1651 = vmul.f32 %v1345, %v1612
      %v1652 = vmul.f32 %v1236, %v1503
      %v1653 = vmul.f32 %v1238, %v1505
      %v1654 = vmul.f32 %v1349, %v1616
      %v1655 = vmul.f32 %v1351, %v1618
      %v1656 = vmul.f32 %v1242, %v1509
      %v1657 = vmul.f32 %v1244, %v1511
      %v1658 = vmul.f32 %v1355, %v1622
      %v1659 = vmul.f32 %v1357, %v1624
      %v1660 = vmul.f32 %v1248, %v1515
      %v1661 = vmul.f32 %v1250, %v1517
      %v1662 = vmul.f32 %v1361, %v1628
      %v1663 = vmul.f32 %v1363, %v1630
      %1664 = vst [vmem:[#allocation4] sm:$0xff] %v1632
      %1665 = vst [vmem:[#allocation4 + $0x8] sm:$0xff] %v1633
      %1666 = vst [vmem:[#allocation4 + $0x10] sm:$0xff] %v1634
      %1667 = vst [vmem:[#allocation4 + $0x18] sm:$0xff] %v1635
      %1668 = vst [vmem:[#allocation4 + $0x20] sm:$0xff] %v1636
      %1669 = vst [vmem:[#allocation4 + $0x28] sm:$0xff] %v1637
      %1670 = vst [vmem:[#allocation4 + $0x30] sm:$0xff] %v1638
      %1671 = vst [vmem:[#allocation4 + $0x38] sm:$0xff] %v1639
      %1672 = vst [vmem:[#allocation4 + $0x40] sm:$0xff] %v1640
      %1673 = vst [vmem:[#allocation4 + $0x48] sm:$0xff] %v1641
      %1674 = vst [vmem:[#allocation4 + $0x50] sm:$0xff] %v1642
      %1675 = vst [vmem:[#allocation4 + $0x58] sm:$0xff] %v1643
      %1676 = vst [vmem:[#allocation4 + $0x60] sm:$0xff] %v1644
      %1677 = vst [vmem:[#allocation4 + $0x68] sm:$0xff] %v1645
      %1678 = vst [vmem:[#allocation4 + $0x70] sm:$0xff] %v1646
      %1679 = vst [vmem:[#allocation4 + $0x78] sm:$0xff] %v1647
      %1680 = vst [vmem:[#allocation4 + $0x80] sm:$0xff] %v1648
      %1681 = vst [vmem:[#allocation4 + $0x88] sm:$0xff] %v1649
      %1682 = vst [vmem:[#allocation4 + $0x90] sm:$0xff] %v1650
      %1683 = vst [vmem:[#allocation4 + $0x98] sm:$0xff] %v1651
      %1684 = vst [vmem:[#allocation4 + $0xa0] sm:$0xff] %v1652
      %1685 = vst [vmem:[#allocation4 + $0xa8] sm:$0xff] %v1653
      %1686 = vst [vmem:[#allocation4 + $0xb0] sm:$0xff] %v1654
      %1687 = vst [vmem:[#allocation4 + $0xb8] sm:$0xff] %v1655
      %1688 = vst [vmem:[#allocation4 + $0xc0] sm:$0xff] %v1656
      %1689 = vst [vmem:[#allocation4 + $0xc8] sm:$0xff] %v1657
      %1690 = vst [vmem:[#allocation4 + $0xd0] sm:$0xff] %v1658
      %1691 = vst [vmem:[#allocation4 + $0xd8] sm:$0xff] %v1659
      %1692 = vst [vmem:[#allocation4 + $0xe0] sm:$0xff] %v1660
      %1693 = vst [vmem:[#allocation4 + $0xe8] sm:$0xff] %v1661
      %1694 = vst [vmem:[#allocation4 + $0xf0] sm:$0xff] %v1662
      %1695 = vst [vmem:[#allocation4 + $0xf8] sm:$0xff] %v1663
      %v1696 = vld [vmem:[#allocation2] sm:$0xf]
      %v1698 = vlaneseq
      %v1699 = vshrl.u32 %v1698, 7
      %v1700 = vsub.s32 0, %v1699
      %v1701 = vrot.slane %v1696, %v1700
      %v1702 = vlaneseq
      %v1703 = vshrl.u32 %v1702, 7
      %v1704 = vsub.s32 1, %v1703
      %v1705 = vrot.slane %v1696, %v1704
      %v1706 = vlaneseq
      %v1707 = vshrl.u32 %v1706, 7
      %v1708 = vsub.s32 2, %v1707
      %v1709 = vrot.slane %v1696, %v1708
      %v1710 = vlaneseq
      %v1711 = vshrl.u32 %v1710, 7
      %v1712 = vsub.s32 3, %v1711
      %v1713 = vrot.slane %v1696, %v1712
      loop: start=0, step=1, limit=8
      $region65: #{_lambda_.8} parent=59 // loop_pre_header
        _
      $region66: #{_lambda_.8} parent=59 // loop_header
        %s1719 = sphi 0, %s1723
        %p1720 = scmp.ge.s32.totalorder %s1719, 8
        %v1724 = vphi %v1701, %v1935
        %v1725 = vphi %v1705, %v1936
        %v1726 = vphi %v1709, %v1937
        %v1727 = vphi %v1713, %v1938
      $region67: #{_lambda_.8} parent=59 // loop_header_branch
        %1722 = sbr.rel (%p1720) target = $region71
      $region68: #{_lambda_.8} parent=59 // loop_body
        %s1728 = smul.u32 %s1719, 8
        %s1729 = sshra.s32 %s1728, 3
        %s1730 = sand.u32 %s1728, 7
        %s1731 = smul.u32 %s1729, 4
        %s1732 = smul.addr %s1731, 8
        %s1733 = scalar_lea.vmem [#allocation3], %s1732
        %v1734 = vld [vmem:[%s1733] sm:$0xff]
        %v1735 = vld [vmem:[%s1733 + $0x8] sm:$0xff]
        %v1736 = vld [vmem:[%s1733 + $0x10] sm:$0xff]
        %v1737 = vld [vmem:[%s1733 + $0x18] sm:$0xff]
        %s1738 = smul.addr %s1731, 8
        %s1739 = scalar_lea.vmem [#allocation4], %s1738
        %v1740 = vld [vmem:[%s1739] sm:$0xff]
        %v1741 = vld [vmem:[%s1739 + $0x8] sm:$0xff]
        %v1742 = vld [vmem:[%s1739 + $0x10] sm:$0xff]
        %v1743 = vld [vmem:[%s1739 + $0x18] sm:$0xff]
        %v1744 = vmul.f32 %v1734, %v1724
        %v1745 = vmul.f32 %v1735, %v1725
        %v1746 = vmul.f32 %v1736, %v1726
        %v1747 = vmul.f32 %v1737, %v1727
        %v1748 = vadd.f32 %v1744, %v1740
        %v1749 = vadd.f32 %v1745, %v1741
        %v1750 = vadd.f32 %v1746, %v1742
        %v1751 = vadd.f32 %v1747, %v1743
        %v1756 = vrot.slane %v1748, 7
        %v1757 = vrot.slane %v1749, 7
        %v1758 = vrot.slane %v1750, 7
        %v1759 = vrot.slane %v1751, 7
        %v1764 = vmul.f32 %v1734, %v1756
        %v1765 = vmul.f32 %v1735, %v1757
        %v1766 = vmul.f32 %v1736, %v1758
        %v1767 = vmul.f32 %v1737, %v1759
        %v1768 = vadd.f32 %v1764, %v1740
        %v1769 = vadd.f32 %v1765, %v1741
        %v1770 = vadd.f32 %v1766, %v1742
        %v1771 = vadd.f32 %v1767, %v1743
        %v1776 = vrot.slane %v1768, 7
        %v1777 = vrot.slane %v1769, 7
        %v1778 = vrot.slane %v1770, 7
        %v1779 = vrot.slane %v1771, 7
        %v1784 = vmul.f32 %v1734, %v1776
        %v1785 = vmul.f32 %v1735, %v1777
        %v1786 = vmul.f32 %v1736, %v1778
        %v1787 = vmul.f32 %v1737, %v1779
        %v1788 = vadd.f32 %v1784, %v1740
        %v1789 = vadd.f32 %v1785, %v1741
        %v1790 = vadd.f32 %v1786, %v1742
        %v1791 = vadd.f32 %v1787, %v1743
        %v1796 = vrot.slane %v1788, 7
        %v1797 = vrot.slane %v1789, 7
        %v1798 = vrot.slane %v1790, 7
        %v1799 = vrot.slane %v1791, 7
        %v1804 = vmul.f32 %v1734, %v1796
        %v1805 = vmul.f32 %v1735, %v1797
        %v1806 = vmul.f32 %v1736, %v1798
        %v1807 = vmul.f32 %v1737, %v1799
        %v1808 = vadd.f32 %v1804, %v1740
        %v1809 = vadd.f32 %v1805, %v1741
        %v1810 = vadd.f32 %v1806, %v1742
        %v1811 = vadd.f32 %v1807, %v1743
        %v1816 = vrot.slane %v1808, 7
        %v1817 = vrot.slane %v1809, 7
        %v1818 = vrot.slane %v1810, 7
        %v1819 = vrot.slane %v1811, 7
        %v1824 = vmul.f32 %v1734, %v1816
        %v1825 = vmul.f32 %v1735, %v1817
        %v1826 = vmul.f32 %v1736, %v1818
        %v1827 = vmul.f32 %v1737, %v1819
        %v1828 = vadd.f32 %v1824, %v1740
        %v1829 = vadd.f32 %v1825, %v1741
        %v1830 = vadd.f32 %v1826, %v1742
        %v1831 = vadd.f32 %v1827, %v1743
        %v1836 = vrot.slane %v1828, 7
        %v1837 = vrot.slane %v1829, 7
        %v1838 = vrot.slane %v1830, 7
        %v1839 = vrot.slane %v1831, 7
        %v1844 = vmul.f32 %v1734, %v1836
        %v1845 = vmul.f32 %v1735, %v1837
        %v1846 = vmul.f32 %v1736, %v1838
        %v1847 = vmul.f32 %v1737, %v1839
        %v1848 = vadd.f32 %v1844, %v1740
        %v1849 = vadd.f32 %v1845, %v1741
        %v1850 = vadd.f32 %v1846, %v1742
        %v1851 = vadd.f32 %v1847, %v1743
        %v1856 = vrot.slane %v1848, 7
        %v1857 = vrot.slane %v1849, 7
        %v1858 = vrot.slane %v1850, 7
        %v1859 = vrot.slane %v1851, 7
        %v1864 = vmul.f32 %v1734, %v1856
        %v1865 = vmul.f32 %v1735, %v1857
        %v1866 = vmul.f32 %v1736, %v1858
        %v1867 = vmul.f32 %v1737, %v1859
        %v1868 = vadd.f32 %v1864, %v1740
        %v1869 = vadd.f32 %v1865, %v1741
        %v1870 = vadd.f32 %v1866, %v1742
        %v1871 = vadd.f32 %v1867, %v1743
        %v1876 = vrot.slane %v1868, 7
        %v1877 = vrot.slane %v1869, 7
        %v1878 = vrot.slane %v1870, 7
        %v1879 = vrot.slane %v1871, 7
        %v1884 = vmul.f32 %v1734, %v1876
        %v1885 = vmul.f32 %v1735, %v1877
        %v1886 = vmul.f32 %v1736, %v1878
        %v1887 = vmul.f32 %v1737, %v1879
        %v1888 = vadd.f32 %v1884, %v1740
        %v1889 = vadd.f32 %v1885, %v1741
        %v1890 = vadd.f32 %v1886, %v1742
        %v1891 = vadd.f32 %v1887, %v1743
        %vm1892 = vcmask 1040384
        %v1893 = vsel %vm1892, %v1748, %v1768
        %v1894 = vsel %vm1892, %v1749, %v1769
        %v1895 = vsel %vm1892, %v1750, %v1770
        %v1896 = vsel %vm1892, %v1751, %v1771
        %vm1897 = vcmask 1041408
        %v1898 = vsel %vm1897, %v1893, %v1788
        %v1899 = vsel %vm1897, %v1894, %v1789
        %v1900 = vsel %vm1897, %v1895, %v1790
        %v1901 = vsel %vm1897, %v1896, %v1791
        %vm1902 = vcmask 1042432
        %v1903 = vsel %vm1902, %v1898, %v1808
        %v1904 = vsel %vm1902, %v1899, %v1809
        %v1905 = vsel %vm1902, %v1900, %v1810
        %v1906 = vsel %vm1902, %v1901, %v1811
        %vm1907 = vcmask 1043456
        %v1908 = vsel %vm1907, %v1903, %v1828
        %v1909 = vsel %vm1907, %v1904, %v1829
        %v1910 = vsel %vm1907, %v1905, %v1830
        %v1911 = vsel %vm1907, %v1906, %v1831
        %vm1912 = vcmask 1044480
        %v1913 = vsel %vm1912, %v1908, %v1848
        %v1914 = vsel %vm1912, %v1909, %v1849
        %v1915 = vsel %vm1912, %v1910, %v1850
        %v1916 = vsel %vm1912, %v1911, %v1851
        %vm1917 = vcmask 1045504
        %v1918 = vsel %vm1917, %v1913, %v1868
        %v1919 = vsel %vm1917, %v1914, %v1869
        %v1920 = vsel %vm1917, %v1915, %v1870
        %v1921 = vsel %vm1917, %v1916, %v1871
        %vm1922 = vcmask 1046528
        %v1923 = vsel %vm1922, %v1918, %v1888
        %v1924 = vsel %vm1922, %v1919, %v1889
        %v1925 = vsel %vm1922, %v1920, %v1890
        %v1926 = vsel %vm1922, %v1921, %v1891
        %1927 = vst [vmem:[%s1739] sm:$0xff] %v1923
        %1928 = vst [vmem:[%s1739 + $0x8] sm:$0xff] %v1924
        %1929 = vst [vmem:[%s1739 + $0x10] sm:$0xff] %v1925
        %1930 = vst [vmem:[%s1739 + $0x18] sm:$0xff] %v1926
        %v1935 = vrot.slane %v1888, 7
        %v1936 = vrot.slane %v1889, 7
        %v1937 = vrot.slane %v1890, 7
        %v1938 = vrot.slane %v1891, 7
      $region69: #{_lambda_.8} parent=59 // loop_footer
        %s1723 = sadd.s32 1, %s1719
      $region70: #{_lambda_.8} parent=59 // loop_footer_branch
        %1718 = sbr.rel target = $region66
      $region71: #{_lambda_.8} parent=59 // loop_exit
        _
      %v1947 = vcombine.low %v1724, %v1725
      %v1948 = vcombine.low %v1726, %v1727
      %v1950 = vunpack.c.l.s4 1966171168
      %v1951 = vunpack.c.0.s8 %v1950
      %v1952 = vlaneseq
      %v1953 = vshrl.u32 %v1952, 7
      %v1954 = vsub.s32 %v1951, %v1953
      %v1955 = vrot.slane %v1947, %v1954
      %v1957 = vunpack.c.l.s4 1966171168
      %v1958 = vunpack.c.0.s8 %v1957
      %v1959 = vlaneseq
      %v1960 = vshrl.u32 %v1959, 7
      %v1961 = vsub.s32 %v1958, %v1960
      %v1962 = vrot.slane %v1948, %v1961
      %v1963 = vcombine.low %v1955, %v1962
      %v1965 = vunpack.c.l.s4 1966171168
      %v1966 = vunpack.c.0.s8 %v1965
      %v1967 = vlaneseq
      %v1968 = vshrl.u32 %v1967, 7
      %v1969 = vsub.s32 %v1966, %v1968
      %v1970 = vrot.slane %v1963, %v1969
      %v1972 = vlaneseq
      %vm1973 = vcmp.ge.s32.totalorder %v1972, 0
      %vm1974 = vcmp.lt.s32.totalorder %v1972, 512
      %vm1975 = vmand %vm1973, %vm1974
      %1976 = vst.msk [vmem:[#allocation2] sm:$0xf] %vm1975, %v1970
      %p1977 = scmp.ge.s32.totalorder %s26, 7
      // Predicated region
      $region72: #{_lambda_.8} parent=59 // pred_check
        %p1978 = pneg %p1977
      $region73: #{_lambda_.8} parent=59 // pred_check_branch
        %1980 = sbr.rel (%p1978) target = $region75
      $region74: #{_lambda_.8} parent=59 // pred_region
        %v1981 = vld [vmem:[%s504] sm:$0xff]
        %v1982 = vld [vmem:[%s504 + $0x8] sm:$0xff]
        %v1983 = vld [vmem:[%s504 + $0x10] sm:$0xff]
        %v1984 = vld [vmem:[%s504 + $0x18] sm:$0xff]
        %v1985 = vld [vmem:[%s504 + $0x20] sm:$0xff]
        %v1986 = vld [vmem:[%s504 + $0x28] sm:$0xff]
        %v1987 = vld [vmem:[%s504 + $0x30] sm:$0xff]
        %v1988 = vld [vmem:[%s504 + $0x38] sm:$0xff]
        %v1989 = vld [vmem:[%s6] sm:$0xff]
        %v1990 = vld [vmem:[%s6 + $0x8] sm:$0xff]
        %v1991 = vld [vmem:[%s6 + $0x10] sm:$0xff]
        %v1992 = vld [vmem:[%s6 + $0x18] sm:$0xff]
        %v1993 = vld [vmem:[%s6 + $0x20] sm:$0xff]
        %v1994 = vld [vmem:[%s6 + $0x28] sm:$0xff]
        %v1995 = vld [vmem:[%s6 + $0x30] sm:$0xff]
        %v1996 = vld [vmem:[%s6 + $0x38] sm:$0xff]
        %v1998 = vsel %vm1381, %v1981, 0
        %v2001 = vsel %vm1381, %v1982, 0
        %v2004 = vsel %vm1381, %v1983, 0
        %v2007 = vsel %vm1381, %v1984, 0
        %v2010 = vsel %vm1381, %v1985, 0
        %v2013 = vsel %vm1381, %v1986, 0
        %v2016 = vsel %vm1381, %v1987, 0
        %v2019 = vsel %vm1381, %v1988, 0
        %2021 = vmatprep.subr.mxu0 0.0
        %2022 = vmatpush1.msra.mxu0 0.0
        %2023 = vmatprep.subr.mxu0 0.0
        %2024 = vmatpush1.msra.mxu0 0.0
        %2025 = vmatprep.subr.mxu0 0.0
        %2026 = vmatpush1.msra.mxu0 0.0
        %2027 = vmatprep.subr.mxu0 0.0
        %2028 = vmatpush1.msra.mxu0 0.0
        %2029 = vmatprep.subr.mxu0 0.0
        %2030 = vmatpush1.msra.mxu0 0.0
        %2031 = vmatprep.subr.mxu0 0.0
        %2032 = vmatpush1.msra.mxu0 0.0
        %2033 = vmatprep.subr.mxu0 0.0
        %2034 = vmatpush1.msra.mxu0 0.0
        %2035 = vmatprep.subr.mxu0 0.0
        %2036 = vmatpush1.msra.mxu0 0.0
        %2037 = vmatprep.subr.mxu0 0.0
        %2038 = vmatpush1.msra.mxu0 0.0
        %2039 = vmatprep.subr.mxu0 0.0
        %2040 = vmatpush1.msra.mxu0 0.0
        %2041 = vmatprep.subr.mxu0 0.0
        %2042 = vmatpush1.msra.mxu0 0.0
        %2043 = vmatprep.subr.mxu0 0.0
        %2044 = vmatpush1.msra.mxu0 0.0
        %2045 = vmatprep.subr.mxu0 0.0
        %2046 = vmatpush1.msra.mxu0 0.0
        %2047 = vmatprep.subr.mxu0 0.0
        %2048 = vmatpush1.msra.mxu0 0.0
        %2049 = vmatprep.subr.mxu0 %v1994
        %2050 = vmatpush1.msra.mxu0 %v1993
        %2051 = vmatprep.subr.mxu0 %v1990
        %2052 = vmatpush1.msra.mxu0 %v1989
        %2053 = vmatprep.subr.mxu0 0.0
        %2054 = vmatpush2.msra.mxu0 0.0
        %2055 = vmatprep.subr.mxu0 0.0
        %2056 = vmatpush2.msra.mxu0 0.0
        %2057 = vmatprep.subr.mxu0 0.0
        %2058 = vmatpush2.msra.mxu0 0.0
        %2059 = vmatprep.subr.mxu0 0.0
        %2060 = vmatpush2.msra.mxu0 0.0
        %2061 = vmatprep.subr.mxu0 0.0
        %2062 = vmatpush2.msra.mxu0 0.0
        %2063 = vmatprep.subr.mxu0 0.0
        %2064 = vmatpush2.msra.mxu0 0.0
        %2065 = vmatprep.subr.mxu0 0.0
        %2066 = vmatpush2.msra.mxu0 0.0
        %2067 = vmatprep.subr.mxu0 0.0
        %2068 = vmatpush2.msra.mxu0 0.0
        %2069 = vmatprep.subr.mxu0 0.0
        %2070 = vmatpush2.msra.mxu0 0.0
        %2071 = vmatprep.subr.mxu0 0.0
        %2072 = vmatpush2.msra.mxu0 0.0
        %2073 = vmatprep.subr.mxu0 0.0
        %2074 = vmatpush2.msra.mxu0 0.0
        %2075 = vmatprep.subr.mxu0 0.0
        %2076 = vmatpush2.msra.mxu0 0.0
        %2077 = vmatprep.subr.mxu0 0.0
        %2078 = vmatpush2.msra.mxu0 0.0
        %2079 = vmatprep.subr.mxu0 0.0
        %2080 = vmatpush2.msra.mxu0 0.0
        %2081 = vmatprep.subr.mxu0 0.0
        %2082 = vmatpush2.msra.mxu0 0.0
        %2083 = vmatprep.subr.mxu0 0.0
        %2084 = vmatpush2.msra.mxu0 0.0
        %2085 = vmatprep.mubr.f32.mxu0 0.0
        %2086 = vmatmul.mubr.f32.gmra.mxu0 %v1998
        %v2087 = vpop.f32.mrf.mxu0
        %v2088 = vadd.f32 0.0, %v2087
        %v2089 = vpop.f32.mrf.mxu0
        %v2090 = vadd.f32 0.0, %v2089
        %2091 = vmatprep.mubr.f32.mxu0 0.0
        %2092 = vmatmul.mubr.f32.gmra.mxu0 %v2001
        %v2093 = vpop.f32.mrf.mxu0
        %v2094 = vadd.f32 0.0, %v2093
        %v2095 = vpop.f32.mrf.mxu0
        %v2096 = vadd.f32 0.0, %v2095
        %2097 = vmatprep.mubr.f32.mxu0 0.0
        %2098 = vmatmul.mubr.f32.gmra.mxu0 %v2004
        %v2099 = vpop.f32.mrf.mxu0
        %v2100 = vadd.f32 0.0, %v2099
        %v2101 = vpop.f32.mrf.mxu0
        %v2102 = vadd.f32 0.0, %v2101
        %2103 = vmatprep.mubr.f32.mxu0 0.0
        %2104 = vmatmul.mubr.f32.gmra.mxu0 %v2007
        %v2105 = vpop.f32.mrf.mxu0
        %v2106 = vadd.f32 0.0, %v2105
        %v2107 = vpop.f32.mrf.mxu0
        %v2108 = vadd.f32 0.0, %v2107
        %2109 = vmatprep.mubr.f32.mxu0 0.0
        %2110 = vmatmul.mubr.f32.gmra.mxu0 %v2010
        %v2111 = vpop.f32.mrf.mxu0
        %v2112 = vadd.f32 0.0, %v2111
        %v2113 = vpop.f32.mrf.mxu0
        %v2114 = vadd.f32 0.0, %v2113
        %2115 = vmatprep.mubr.f32.mxu0 0.0
        %2116 = vmatmul.mubr.f32.gmra.mxu0 %v2013
        %v2117 = vpop.f32.mrf.mxu0
        %v2118 = vadd.f32 0.0, %v2117
        %v2119 = vpop.f32.mrf.mxu0
        %v2120 = vadd.f32 0.0, %v2119
        %2121 = vmatprep.mubr.f32.mxu0 0.0
        %2122 = vmatmul.mubr.f32.gmra.mxu0 %v2016
        %v2123 = vpop.f32.mrf.mxu0
        %v2124 = vadd.f32 0.0, %v2123
        %v2125 = vpop.f32.mrf.mxu0
        %v2126 = vadd.f32 0.0, %v2125
        %2127 = vmatprep.mubr.f32.mxu0 0.0
        %2128 = vmatmul.mubr.f32.gmra.mxu0 %v2019
        %v2129 = vpop.f32.mrf.mxu0
        %v2130 = vadd.f32 0.0, %v2129
        %v2131 = vpop.f32.mrf.mxu0
        %v2132 = vadd.f32 0.0, %v2131
        %2133 = vdwg.mxu0
        %2134 = vmatprep.subr.mxu0 0.0
        %2135 = vmatpush1.msra.mxu0 0.0
        %2136 = vmatprep.subr.mxu0 0.0
        %2137 = vmatpush1.msra.mxu0 0.0
        %2138 = vmatprep.subr.mxu0 0.0
        %2139 = vmatpush1.msra.mxu0 0.0
        %2140 = vmatprep.subr.mxu0 0.0
        %2141 = vmatpush1.msra.mxu0 0.0
        %2142 = vmatprep.subr.mxu0 0.0
        %2143 = vmatpush1.msra.mxu0 0.0
        %2144 = vmatprep.subr.mxu0 0.0
        %2145 = vmatpush1.msra.mxu0 0.0
        %2146 = vmatprep.subr.mxu0 0.0
        %2147 = vmatpush1.msra.mxu0 0.0
        %2148 = vmatprep.subr.mxu0 0.0
        %2149 = vmatpush1.msra.mxu0 0.0
        %2150 = vmatprep.subr.mxu0 0.0
        %2151 = vmatpush1.msra.mxu0 0.0
        %2152 = vmatprep.subr.mxu0 0.0
        %2153 = vmatpush1.msra.mxu0 0.0
        %2154 = vmatprep.subr.mxu0 0.0
        %2155 = vmatpush1.msra.mxu0 0.0
        %2156 = vmatprep.subr.mxu0 0.0
        %2157 = vmatpush1.msra.mxu0 0.0
        %2158 = vmatprep.subr.mxu0 0.0
        %2159 = vmatpush1.msra.mxu0 0.0
        %2160 = vmatprep.subr.mxu0 0.0
        %2161 = vmatpush1.msra.mxu0 0.0
        %2162 = vmatprep.subr.mxu0 %v1996
        %2163 = vmatpush1.msra.mxu0 %v1995
        %2164 = vmatprep.subr.mxu0 %v1992
        %2165 = vmatpush1.msra.mxu0 %v1991
        %2166 = vmatprep.subr.mxu0 0.0
        %2167 = vmatpush2.msra.mxu0 0.0
        %2168 = vmatprep.subr.mxu0 0.0
        %2169 = vmatpush2.msra.mxu0 0.0
        %2170 = vmatprep.subr.mxu0 0.0
        %2171 = vmatpush2.msra.mxu0 0.0
        %2172 = vmatprep.subr.mxu0 0.0
        %2173 = vmatpush2.msra.mxu0 0.0
        %2174 = vmatprep.subr.mxu0 0.0
        %2175 = vmatpush2.msra.mxu0 0.0
        %2176 = vmatprep.subr.mxu0 0.0
        %2177 = vmatpush2.msra.mxu0 0.0
        %2178 = vmatprep.subr.mxu0 0.0
        %2179 = vmatpush2.msra.mxu0 0.0
        %2180 = vmatprep.subr.mxu0 0.0
        %2181 = vmatpush2.msra.mxu0 0.0
        %2182 = vmatprep.subr.mxu0 0.0
        %2183 = vmatpush2.msra.mxu0 0.0
        %2184 = vmatprep.subr.mxu0 0.0
        %2185 = vmatpush2.msra.mxu0 0.0
        %2186 = vmatprep.subr.mxu0 0.0
        %2187 = vmatpush2.msra.mxu0 0.0
        %2188 = vmatprep.subr.mxu0 0.0
        %2189 = vmatpush2.msra.mxu0 0.0
        %2190 = vmatprep.subr.mxu0 0.0
        %2191 = vmatpush2.msra.mxu0 0.0
        %2192 = vmatprep.subr.mxu0 0.0
        %2193 = vmatpush2.msra.mxu0 0.0
        %2194 = vmatprep.subr.mxu0 0.0
        %2195 = vmatpush2.msra.mxu0 0.0
        %2196 = vmatprep.subr.mxu0 0.0
        %2197 = vmatpush2.msra.mxu0 0.0
        %2198 = vmatprep.mubr.f32.mxu0 0.0
        %2199 = vmatmul.mubr.f32.gmra.mxu0 %v1998
        %v2200 = vpop.f32.mrf.mxu0
        %v2201 = vadd.f32 0.0, %v2200
        %v2202 = vpop.f32.mrf.mxu0
        %v2203 = vadd.f32 0.0, %v2202
        %2204 = vmatprep.mubr.f32.mxu0 0.0
        %2205 = vmatmul.mubr.f32.gmra.mxu0 %v2001
        %v2206 = vpop.f32.mrf.mxu0
        %v2207 = vadd.f32 0.0, %v2206
        %v2208 = vpop.f32.mrf.mxu0
        %v2209 = vadd.f32 0.0, %v2208
        %2210 = vmatprep.mubr.f32.mxu0 0.0
        %2211 = vmatmul.mubr.f32.gmra.mxu0 %v2004
        %v2212 = vpop.f32.mrf.mxu0
        %v2213 = vadd.f32 0.0, %v2212
        %v2214 = vpop.f32.mrf.mxu0
        %v2215 = vadd.f32 0.0, %v2214
        %2216 = vmatprep.mubr.f32.mxu0 0.0
        %2217 = vmatmul.mubr.f32.gmra.mxu0 %v2007
        %v2218 = vpop.f32.mrf.mxu0
        %v2219 = vadd.f32 0.0, %v2218
        %v2220 = vpop.f32.mrf.mxu0
        %v2221 = vadd.f32 0.0, %v2220
        %2222 = vmatprep.mubr.f32.mxu0 0.0
        %2223 = vmatmul.mubr.f32.gmra.mxu0 %v2010
        %v2224 = vpop.f32.mrf.mxu0
        %v2225 = vadd.f32 0.0, %v2224
        %v2226 = vpop.f32.mrf.mxu0
        %v2227 = vadd.f32 0.0, %v2226
        %2228 = vmatprep.mubr.f32.mxu0 0.0
        %2229 = vmatmul.mubr.f32.gmra.mxu0 %v2013
        %v2230 = vpop.f32.mrf.mxu0
        %v2231 = vadd.f32 0.0, %v2230
        %v2232 = vpop.f32.mrf.mxu0
        %v2233 = vadd.f32 0.0, %v2232
        %2234 = vmatprep.mubr.f32.mxu0 0.0
        %2235 = vmatmul.mubr.f32.gmra.mxu0 %v2016
        %v2236 = vpop.f32.mrf.mxu0
        %v2237 = vadd.f32 0.0, %v2236
        %v2238 = vpop.f32.mrf.mxu0
        %v2239 = vadd.f32 0.0, %v2238
        %2240 = vmatprep.mubr.f32.mxu0 0.0
        %2241 = vmatmul.mubr.f32.gmra.mxu0 %v2019
        %v2242 = vpop.f32.mrf.mxu0
        %v2243 = vadd.f32 0.0, %v2242
        %v2244 = vpop.f32.mrf.mxu0
        %v2245 = vadd.f32 0.0, %v2244
        %2246 = vdwg.mxu0
        %v2247 = vld [vmem:[#allocation4] sm:$0xff]
        %v2248 = vld [vmem:[#allocation4 + $0x8] sm:$0xff]
        %v2249 = vld [vmem:[#allocation4 + $0x10] sm:$0xff]
        %v2250 = vld [vmem:[#allocation4 + $0x18] sm:$0xff]
        %v2251 = vld [vmem:[#allocation4 + $0x20] sm:$0xff]
        %v2252 = vld [vmem:[#allocation4 + $0x28] sm:$0xff]
        %v2253 = vld [vmem:[#allocation4 + $0x30] sm:$0xff]
        %v2254 = vld [vmem:[#allocation4 + $0x38] sm:$0xff]
        %v2255 = vld [vmem:[#allocation4 + $0x40] sm:$0xff]
        %v2256 = vld [vmem:[#allocation4 + $0x48] sm:$0xff]
        %v2257 = vld [vmem:[#allocation4 + $0x50] sm:$0xff]
        %v2258 = vld [vmem:[#allocation4 + $0x58] sm:$0xff]
        %v2259 = vld [vmem:[#allocation4 + $0x60] sm:$0xff]
        %v2260 = vld [vmem:[#allocation4 + $0x68] sm:$0xff]
        %v2261 = vld [vmem:[#allocation4 + $0x70] sm:$0xff]
        %v2262 = vld [vmem:[#allocation4 + $0x78] sm:$0xff]
        %v2263 = vld [vmem:[#allocation4 + $0x80] sm:$0xff]
        %v2264 = vld [vmem:[#allocation4 + $0x88] sm:$0xff]
        %v2265 = vld [vmem:[#allocation4 + $0x90] sm:$0xff]
        %v2266 = vld [vmem:[#allocation4 + $0x98] sm:$0xff]
        %v2267 = vld [vmem:[#allocation4 + $0xa0] sm:$0xff]
        %v2268 = vld [vmem:[#allocation4 + $0xa8] sm:$0xff]
        %v2269 = vld [vmem:[#allocation4 + $0xb0] sm:$0xff]
        %v2270 = vld [vmem:[#allocation4 + $0xb8] sm:$0xff]
        %v2271 = vld [vmem:[#allocation4 + $0xc0] sm:$0xff]
        %v2272 = vld [vmem:[#allocation4 + $0xc8] sm:$0xff]
        %v2273 = vld [vmem:[#allocation4 + $0xd0] sm:$0xff]
        %v2274 = vld [vmem:[#allocation4 + $0xd8] sm:$0xff]
        %v2275 = vld [vmem:[#allocation4 + $0xe0] sm:$0xff]
        %v2276 = vld [vmem:[#allocation4 + $0xe8] sm:$0xff]
        %v2277 = vld [vmem:[#allocation4 + $0xf0] sm:$0xff]
        %v2278 = vld [vmem:[#allocation4 + $0xf8] sm:$0xff]
        %v2279 = vmul.f32 %v2247, %v2088
        %v2280 = vmul.f32 %v2248, %v2090
        %v2281 = vmul.f32 %v2249, %v2201
        %v2282 = vmul.f32 %v2250, %v2203
        %v2283 = vmul.f32 %v2251, %v2094
        %v2284 = vmul.f32 %v2252, %v2096
        %v2285 = vmul.f32 %v2253, %v2207
        %v2286 = vmul.f32 %v2254, %v2209
        %v2287 = vmul.f32 %v2255, %v2100
        %v2288 = vmul.f32 %v2256, %v2102
        %v2289 = vmul.f32 %v2257, %v2213
        %v2290 = vmul.f32 %v2258, %v2215
        %v2291 = vmul.f32 %v2259, %v2106
        %v2292 = vmul.f32 %v2260, %v2108
        %v2293 = vmul.f32 %v2261, %v2219
        %v2294 = vmul.f32 %v2262, %v2221
        %v2295 = vmul.f32 %v2263, %v2112
        %v2296 = vmul.f32 %v2264, %v2114
        %v2297 = vmul.f32 %v2265, %v2225
        %v2298 = vmul.f32 %v2266, %v2227
        %v2299 = vmul.f32 %v2267, %v2118
        %v2300 = vmul.f32 %v2268, %v2120
        %v2301 = vmul.f32 %v2269, %v2231
        %v2302 = vmul.f32 %v2270, %v2233
        %v2303 = vmul.f32 %v2271, %v2124
        %v2304 = vmul.f32 %v2272, %v2126
        %v2305 = vmul.f32 %v2273, %v2237
        %v2306 = vmul.f32 %v2274, %v2239
        %v2307 = vmul.f32 %v2275, %v2130
        %v2308 = vmul.f32 %v2276, %v2132
        %v2309 = vmul.f32 %v2277, %v2243
        %v2310 = vmul.f32 %v2278, %v2245
        %v2311 = vld [vmem:[%s7] sm:$0xff]
        %v2312 = vld [vmem:[%s7 + $0x8] sm:$0xff]
        %v2313 = vld [vmem:[%s7 + $0x10] sm:$0xff]
        %v2314 = vld [vmem:[%s7 + $0x18] sm:$0xff]
        %v2315 = vld [vmem:[%s7 + $0x20] sm:$0xff]
        %v2316 = vld [vmem:[%s7 + $0x28] sm:$0xff]
        %v2317 = vld [vmem:[%s7 + $0x30] sm:$0xff]
        %v2318 = vld [vmem:[%s7 + $0x38] sm:$0xff]
        %v2319 = vld [vmem:[%s7 + $0x40] sm:$0xff]
        %v2320 = vld [vmem:[%s7 + $0x48] sm:$0xff]
        %v2321 = vld [vmem:[%s7 + $0x50] sm:$0xff]
        %v2322 = vld [vmem:[%s7 + $0x58] sm:$0xff]
        %v2323 = vld [vmem:[%s7 + $0x60] sm:$0xff]
        %v2324 = vld [vmem:[%s7 + $0x68] sm:$0xff]
        %v2325 = vld [vmem:[%s7 + $0x70] sm:$0xff]
        %v2326 = vld [vmem:[%s7 + $0x78] sm:$0xff]
        %v2327 = vld [vmem:[%s7 + $0x80] sm:$0xff]
        %v2328 = vld [vmem:[%s7 + $0x88] sm:$0xff]
        %v2329 = vld [vmem:[%s7 + $0x90] sm:$0xff]
        %v2330 = vld [vmem:[%s7 + $0x98] sm:$0xff]
        %v2331 = vld [vmem:[%s7 + $0xa0] sm:$0xff]
        %v2332 = vld [vmem:[%s7 + $0xa8] sm:$0xff]
        %v2333 = vld [vmem:[%s7 + $0xb0] sm:$0xff]
        %v2334 = vld [vmem:[%s7 + $0xb8] sm:$0xff]
        %v2335 = vld [vmem:[%s7 + $0xc0] sm:$0xff]
        %v2336 = vld [vmem:[%s7 + $0xc8] sm:$0xff]
        %v2337 = vld [vmem:[%s7 + $0xd0] sm:$0xff]
        %v2338 = vld [vmem:[%s7 + $0xd8] sm:$0xff]
        %v2339 = vld [vmem:[%s7 + $0xe0] sm:$0xff]
        %v2340 = vld [vmem:[%s7 + $0xe8] sm:$0xff]
        %v2341 = vld [vmem:[%s7 + $0xf0] sm:$0xff]
        %v2342 = vld [vmem:[%s7 + $0xf8] sm:$0xff]
        %v2343 = vld [vmem:[%s7 + $0x100] sm:$0xff]
        %v2344 = vld [vmem:[%s7 + $0x108] sm:$0xff]
        %v2345 = vld [vmem:[%s7 + $0x110] sm:$0xff]
        %v2346 = vld [vmem:[%s7 + $0x118] sm:$0xff]
        %v2347 = vld [vmem:[%s7 + $0x120] sm:$0xff]
        %v2348 = vld [vmem:[%s7 + $0x128] sm:$0xff]
        %v2349 = vld [vmem:[%s7 + $0x130] sm:$0xff]
        %v2350 = vld [vmem:[%s7 + $0x138] sm:$0xff]
        %v2351 = vld [vmem:[%s7 + $0x140] sm:$0xff]
        %v2352 = vld [vmem:[%s7 + $0x148] sm:$0xff]
        %v2353 = vld [vmem:[%s7 + $0x150] sm:$0xff]
        %v2354 = vld [vmem:[%s7 + $0x158] sm:$0xff]
        %v2355 = vld [vmem:[%s7 + $0x160] sm:$0xff]
        %v2356 = vld [vmem:[%s7 + $0x168] sm:$0xff]
        %v2357 = vld [vmem:[%s7 + $0x170] sm:$0xff]
        %v2358 = vld [vmem:[%s7 + $0x178] sm:$0xff]
        %v2359 = vld [vmem:[%s7 + $0x180] sm:$0xff]
        %v2360 = vld [vmem:[%s7 + $0x188] sm:$0xff]
        %v2361 = vld [vmem:[%s7 + $0x190] sm:$0xff]
        %v2362 = vld [vmem:[%s7 + $0x198] sm:$0xff]
        %v2363 = vld [vmem:[%s7 + $0x1a0] sm:$0xff]
        %v2364 = vld [vmem:[%s7 + $0x1a8] sm:$0xff]
        %v2365 = vld [vmem:[%s7 + $0x1b0] sm:$0xff]
        %v2366 = vld [vmem:[%s7 + $0x1b8] sm:$0xff]
        %v2367 = vld [vmem:[%s7 + $0x1c0] sm:$0xff]
        %v2368 = vld [vmem:[%s7 + $0x1c8] sm:$0xff]
        %v2369 = vld [vmem:[%s7 + $0x1d0] sm:$0xff]
        %v2370 = vld [vmem:[%s7 + $0x1d8] sm:$0xff]
        %v2371 = vld [vmem:[%s7 + $0x1e0] sm:$0xff]
        %v2372 = vld [vmem:[%s7 + $0x1e8] sm:$0xff]
        %v2373 = vld [vmem:[%s7 + $0x1f0] sm:$0xff]
        %v2374 = vld [vmem:[%s7 + $0x1f8] sm:$0xff]
        %v2375 = vld [vmem:[%s8] sm:$0x1]
        %v2377 = vlaneseq
        %v2378 = vshrl.u32 %v2377, 7
        %v2379 = vsub.s32 0, %v2378
        %v2380 = vrot.slane %v2375, %v2379
        %v2382 = vmul.f32 %v2380, %v531
        %v2383 = vmul.f32 %v2380, %v532
        %v2384 = vmul.f32 %v2380, %v533
        %v2385 = vmul.f32 %v2380, %v534
        %v2386 = vmul.f32 %v2380, %v535
        %v2387 = vmul.f32 %v2380, %v536
        %v2388 = vmul.f32 %v2380, %v537
        %v2389 = vmul.f32 %v2380, %v538
        %2390 = vmatprep.subr.mxu0 0.0
        %2391 = vmatpush1.msra.mxu0 %v2326
        %2392 = vmatprep.subr.mxu0 0.0
        %2393 = vmatpush1.msra.mxu0 %v2325
        %2394 = vmatprep.subr.mxu0 0.0
        %2395 = vmatpush1.msra.mxu0 %v2324
        %2396 = vmatprep.subr.mxu0 0.0
        %2397 = vmatpush1.msra.mxu0 %v2323
        %2398 = vmatprep.subr.mxu0 0.0
        %2399 = vmatpush1.msra.mxu0 %v2322
        %2400 = vmatprep.subr.mxu0 0.0
        %2401 = vmatpush1.msra.mxu0 %v2321
        %2402 = vmatprep.subr.mxu0 0.0
        %2403 = vmatpush1.msra.mxu0 %v2320
        %2404 = vmatprep.subr.mxu0 0.0
        %2405 = vmatpush1.msra.mxu0 %v2319
        %2406 = vmatprep.subr.mxu0 0.0
        %2407 = vmatpush1.msra.mxu0 %v2318
        %2408 = vmatprep.subr.mxu0 0.0
        %2409 = vmatpush1.msra.mxu0 %v2317
        %2410 = vmatprep.subr.mxu0 0.0
        %2411 = vmatpush1.msra.mxu0 %v2316
        %2412 = vmatprep.subr.mxu0 0.0
        %2413 = vmatpush1.msra.mxu0 %v2315
        %2414 = vmatprep.subr.mxu0 0.0
        %2415 = vmatpush1.msra.mxu0 %v2314
        %2416 = vmatprep.subr.mxu0 0.0
        %2417 = vmatpush1.msra.mxu0 %v2313
        %2418 = vmatprep.subr.mxu0 0.0
        %2419 = vmatpush1.msra.mxu0 %v2312
        %2420 = vmatprep.subr.mxu0 0.0
        %2421 = vmatpush1.msra.mxu0 %v2311
        %2422 = vmatprep.subr.mxu0 0.0
        %2423 = vmatpush2.msra.mxu0 %v2342
        %2424 = vmatprep.subr.mxu0 0.0
        %2425 = vmatpush2.msra.mxu0 %v2341
        %2426 = vmatprep.subr.mxu0 0.0
        %2427 = vmatpush2.msra.mxu0 %v2340
        %2428 = vmatprep.subr.mxu0 0.0
        %2429 = vmatpush2.msra.mxu0 %v2339
        %2430 = vmatprep.subr.mxu0 0.0
        %2431 = vmatpush2.msra.mxu0 %v2338
        %2432 = vmatprep.subr.mxu0 0.0
        %2433 = vmatpush2.msra.mxu0 %v2337
        %2434 = vmatprep.subr.mxu0 0.0
        %2435 = vmatpush2.msra.mxu0 %v2336
        %2436 = vmatprep.subr.mxu0 0.0
        %2437 = vmatpush2.msra.mxu0 %v2335
        %2438 = vmatprep.subr.mxu0 0.0
        %2439 = vmatpush2.msra.mxu0 %v2334
        %2440 = vmatprep.subr.mxu0 0.0
        %2441 = vmatpush2.msra.mxu0 %v2333
        %2442 = vmatprep.subr.mxu0 0.0
        %2443 = vmatpush2.msra.mxu0 %v2332
        %2444 = vmatprep.subr.mxu0 0.0
        %2445 = vmatpush2.msra.mxu0 %v2331
        %2446 = vmatprep.subr.mxu0 0.0
        %2447 = vmatpush2.msra.mxu0 %v2330
        %2448 = vmatprep.subr.mxu0 0.0
        %2449 = vmatpush2.msra.mxu0 %v2329
        %2450 = vmatprep.subr.mxu0 0.0
        %2451 = vmatpush2.msra.mxu0 %v2328
        %2452 = vmatprep.subr.mxu0 0.0
        %2453 = vmatpush2.msra.mxu0 %v2327
        %2454 = vmatprep.mubr.f32.mxu0 %v2280
        %2455 = vmatmul.mubr.f32.gmra.mxu0 %v2279
        %v2456 = vpop.f32.mrf.mxu0
        %v2457 = vadd.f32 %v2382, %v2456
        %v2458 = vpop.f32.mrf.mxu0
        %2459 = vmatprep.mubr.f32.mxu0 %v2284
        %2460 = vmatmul.mubr.f32.gmra.mxu0 %v2283
        %v2461 = vpop.f32.mrf.mxu0
        %v2462 = vadd.f32 %v2383, %v2461
        %v2463 = vpop.f32.mrf.mxu0
        %2464 = vmatprep.mubr.f32.mxu0 %v2288
        %2465 = vmatmul.mubr.f32.gmra.mxu0 %v2287
        %v2466 = vpop.f32.mrf.mxu0
        %v2467 = vadd.f32 %v2384, %v2466
        %v2468 = vpop.f32.mrf.mxu0
        %2469 = vmatprep.mubr.f32.mxu0 %v2292
        %2470 = vmatmul.mubr.f32.gmra.mxu0 %v2291
        %v2471 = vpop.f32.mrf.mxu0
        %v2472 = vadd.f32 %v2385, %v2471
        %v2473 = vpop.f32.mrf.mxu0
        %2474 = vmatprep.mubr.f32.mxu0 %v2296
        %2475 = vmatmul.mubr.f32.gmra.mxu0 %v2295
        %v2476 = vpop.f32.mrf.mxu0
        %v2477 = vadd.f32 %v2386, %v2476
        %v2478 = vpop.f32.mrf.mxu0
        %2479 = vmatprep.mubr.f32.mxu0 %v2300
        %2480 = vmatmul.mubr.f32.gmra.mxu0 %v2299
        %v2481 = vpop.f32.mrf.mxu0
        %v2482 = vadd.f32 %v2387, %v2481
        %v2483 = vpop.f32.mrf.mxu0
        %2484 = vmatprep.mubr.f32.mxu0 %v2304
        %2485 = vmatmul.mubr.f32.gmra.mxu0 %v2303
        %v2486 = vpop.f32.mrf.mxu0
        %v2487 = vadd.f32 %v2388, %v2486
        %v2488 = vpop.f32.mrf.mxu0
        %2489 = vmatprep.mubr.f32.mxu0 %v2308
        %2490 = vmatmul.mubr.f32.gmra.mxu0 %v2307
        %v2491 = vpop.f32.mrf.mxu0
        %v2492 = vadd.f32 %v2389, %v2491
        %v2493 = vpop.f32.mrf.mxu0
        %2494 = vdwg.mxu0
        %2495 = vmatprep.subr.mxu0 0.0
        %2496 = vmatpush1.msra.mxu0 %v2358
        %2497 = vmatprep.subr.mxu0 0.0
        %2498 = vmatpush1.msra.mxu0 %v2357
        %2499 = vmatprep.subr.mxu0 0.0
        %2500 = vmatpush1.msra.mxu0 %v2356
        %2501 = vmatprep.subr.mxu0 0.0
        %2502 = vmatpush1.msra.mxu0 %v2355
        %2503 = vmatprep.subr.mxu0 0.0
        %2504 = vmatpush1.msra.mxu0 %v2354
        %2505 = vmatprep.subr.mxu0 0.0
        %2506 = vmatpush1.msra.mxu0 %v2353
        %2507 = vmatprep.subr.mxu0 0.0
        %2508 = vmatpush1.msra.mxu0 %v2352
        %2509 = vmatprep.subr.mxu0 0.0
        %2510 = vmatpush1.msra.mxu0 %v2351
        %2511 = vmatprep.subr.mxu0 0.0
        %2512 = vmatpush1.msra.mxu0 %v2350
        %2513 = vmatprep.subr.mxu0 0.0
        %2514 = vmatpush1.msra.mxu0 %v2349
        %2515 = vmatprep.subr.mxu0 0.0
        %2516 = vmatpush1.msra.mxu0 %v2348
        %2517 = vmatprep.subr.mxu0 0.0
        %2518 = vmatpush1.msra.mxu0 %v2347
        %2519 = vmatprep.subr.mxu0 0.0
        %2520 = vmatpush1.msra.mxu0 %v2346
        %2521 = vmatprep.subr.mxu0 0.0
        %2522 = vmatpush1.msra.mxu0 %v2345
        %2523 = vmatprep.subr.mxu0 0.0
        %2524 = vmatpush1.msra.mxu0 %v2344
        %2525 = vmatprep.subr.mxu0 0.0
        %2526 = vmatpush1.msra.mxu0 %v2343
        %2527 = vmatprep.subr.mxu0 0.0
        %2528 = vmatpush2.msra.mxu0 %v2374
        %2529 = vmatprep.subr.mxu0 0.0
        %2530 = vmatpush2.msra.mxu0 %v2373
        %2531 = vmatprep.subr.mxu0 0.0
        %2532 = vmatpush2.msra.mxu0 %v2372
        %2533 = vmatprep.subr.mxu0 0.0
        %2534 = vmatpush2.msra.mxu0 %v2371
        %2535 = vmatprep.subr.mxu0 0.0
        %2536 = vmatpush2.msra.mxu0 %v2370
        %2537 = vmatprep.subr.mxu0 0.0
        %2538 = vmatpush2.msra.mxu0 %v2369
        %2539 = vmatprep.subr.mxu0 0.0
        %2540 = vmatpush2.msra.mxu0 %v2368
        %2541 = vmatprep.subr.mxu0 0.0
        %2542 = vmatpush2.msra.mxu0 %v2367
        %2543 = vmatprep.subr.mxu0 0.0
        %2544 = vmatpush2.msra.mxu0 %v2366
        %2545 = vmatprep.subr.mxu0 0.0
        %2546 = vmatpush2.msra.mxu0 %v2365
        %2547 = vmatprep.subr.mxu0 0.0
        %2548 = vmatpush2.msra.mxu0 %v2364
        %2549 = vmatprep.subr.mxu0 0.0
        %2550 = vmatpush2.msra.mxu0 %v2363
        %2551 = vmatprep.subr.mxu0 0.0
        %2552 = vmatpush2.msra.mxu0 %v2362
        %2553 = vmatprep.subr.mxu0 0.0
        %2554 = vmatpush2.msra.mxu0 %v2361
        %2555 = vmatprep.subr.mxu0 0.0
        %2556 = vmatpush2.msra.mxu0 %v2360
        %2557 = vmatprep.subr.mxu0 0.0
        %2558 = vmatpush2.msra.mxu0 %v2359
        %2559 = vmatprep.mubr.f32.mxu0 %v2282
        %2560 = vmatmul.mubr.f32.gmra.mxu0 %v2281
        %v2561 = vpop.f32.mrf.mxu0
        %v2562 = vadd.f32 %v2457, %v2561
        %v2563 = vpop.f32.mrf.mxu0
        %2564 = vmatprep.mubr.f32.mxu0 %v2286
        %2565 = vmatmul.mubr.f32.gmra.mxu0 %v2285
        %v2566 = vpop.f32.mrf.mxu0
        %v2567 = vadd.f32 %v2462, %v2566
        %v2568 = vpop.f32.mrf.mxu0
        %2569 = vmatprep.mubr.f32.mxu0 %v2290
        %2570 = vmatmul.mubr.f32.gmra.mxu0 %v2289
        %v2571 = vpop.f32.mrf.mxu0
        %v2572 = vadd.f32 %v2467, %v2571
        %v2573 = vpop.f32.mrf.mxu0
        %2574 = vmatprep.mubr.f32.mxu0 %v2294
        %2575 = vmatmul.mubr.f32.gmra.mxu0 %v2293
        %v2576 = vpop.f32.mrf.mxu0
        %v2577 = vadd.f32 %v2472, %v2576
        %v2578 = vpop.f32.mrf.mxu0
        %2579 = vmatprep.mubr.f32.mxu0 %v2298
        %2580 = vmatmul.mubr.f32.gmra.mxu0 %v2297
        %v2581 = vpop.f32.mrf.mxu0
        %v2582 = vadd.f32 %v2477, %v2581
        %v2583 = vpop.f32.mrf.mxu0
        %2584 = vmatprep.mubr.f32.mxu0 %v2302
        %2585 = vmatmul.mubr.f32.gmra.mxu0 %v2301
        %v2586 = vpop.f32.mrf.mxu0
        %v2587 = vadd.f32 %v2482, %v2586
        %v2588 = vpop.f32.mrf.mxu0
        %2589 = vmatprep.mubr.f32.mxu0 %v2306
        %2590 = vmatmul.mubr.f32.gmra.mxu0 %v2305
        %v2591 = vpop.f32.mrf.mxu0
        %v2592 = vadd.f32 %v2487, %v2591
        %v2593 = vpop.f32.mrf.mxu0
        %2594 = vmatprep.mubr.f32.mxu0 %v2310
        %2595 = vmatmul.mubr.f32.gmra.mxu0 %v2309
        %v2596 = vpop.f32.mrf.mxu0
        %v2597 = vadd.f32 %v2492, %v2596
        %v2598 = vpop.f32.mrf.mxu0
        %2599 = vdwg.mxu0
        %2600 = vst.msk [vmem:[%s517] sm:$0xff] %vm690, %v2562
        %2601 = vst.msk [vmem:[%s517 + $0x8] sm:$0xff] %vm690, %v2567
        %2602 = vst.msk [vmem:[%s517 + $0x10] sm:$0xff] %vm690, %v2572
        %2603 = vst.msk [vmem:[%s517 + $0x18] sm:$0xff] %vm690, %v2577
        %2604 = vst.msk [vmem:[%s517 + $0x20] sm:$0xff] %vm690, %v2582
        %2605 = vst.msk [vmem:[%s517 + $0x28] sm:$0xff] %vm690, %v2587
        %2606 = vst.msk [vmem:[%s517 + $0x30] sm:$0xff] %vm690, %v2592
        %2607 = vst.msk [vmem:[%s517 + $0x38] sm:$0xff] %vm690, %v2597
      $region75: #{_lambda_.8} parent=59 // pred_fallthru
        _
      %s2608 = ssub.s32 %s26, 7
      %p2609 = scmp.gt.s32.totalorder %s2608, 0
      %s2610 = scalar_select %p2609, %s2608, 0
      %s2611 = smul.u32 8, %s2610
      %p2612 = scmp.lt.s32.totalorder %s25, 1
      %s2613 = scalar_select %p2612, %s25, 1
      %p2614 = scmp.lt.s32.totalorder %s2611, 7
      %s2615 = scalar_select %p2614, %s2611, 7
      %s2616 = smul.addr %s2613, 8
      %s2617 = sadd.s32 %s2615, %s2616
      %s2618 = smul.addr %s2617, 8
      %s2619 = scalar_lea.vmem %s10, %s2618
      // Predicated region
      $region76: #{_lambda_.8} parent=59 // pred_check
        %p2620 = pneg %p297
      $region77: #{_lambda_.8} parent=59 // pred_check_branch
        %2622 = sbr.rel (%p2620) target = $region79
      $region78: #{_lambda_.8} parent=59 // pred_region
        %s2623 = ssub.s32 %s26, 7
        %p2624 = scmp.gt.s32.totalorder %s2623, 0
        %s2625 = scalar_select %p2624, %s2623, 0
        %s2626 = smul.u32 8, %s2625
      $region79: #{_lambda_.8} parent=59 // pred_fallthru
        _
    $region60: #{_lambda_.8} parent=5 // pred_fallthru
      _
    %p2627 = scmp.le.s32.totalorder 2, %s16
    // Predicated region
    $region80: #{_lambda_.8} parent=5 // pred_check
      %p2628 = pneg %p2627
    $region81: #{_lambda_.8} parent=5 // pred_check_branch
      %2630 = sbr.rel (%p2628) target = $region83
    $region82: #{_lambda_.8} parent=5 // pred_region
      %s2631 = ssub.s32 %s16, 2
      // Predicated region
      $region84: #{_lambda_.8} parent=82 // pred_check
        %p2632 = pneg %p303
      $region85: #{_lambda_.8} parent=82 // pred_check_branch
        %2634 = sbr.rel (%p2632) target = $region87
      $region86: #{_lambda_.8} parent=82 // pred_region
        %s2635 = ssub.s32 %s28, 7
        %p2636 = scmp.gt.s32.totalorder %s2635, 0
        %s2637 = scalar_select %p2636, %s2635, 0
        %s2638 = smul.u32 8, %s2637
        %p2639 = scmp.lt.s32.totalorder %s27, 1
        %s2640 = scalar_select %p2639, %s27, 1
        %p2641 = scmp.lt.s32.totalorder %s2638, 7
        %s2642 = scalar_select %p2641, %s2638, 7
        %s2643 = smul.addr %s2640, 8
        %s2644 = sadd.s32 %s2642, %s2643
        %s2645 = smul.addr %s2644, 8
        %s2646 = scalar_lea.vmem %s10, %s2645
      $region87: #{_lambda_.8} parent=82 // pred_fallthru
        _
    $region83: #{_lambda_.8} parent=5 // pred_fallthru
      _
  $region6: #{_lambda_.8} parent=0 // loop_footer
    %s20 = sadd.s32 1, %s16
  $region7: #{_lambda_.8} parent=0 // loop_footer_branch
    %15 = sbr.rel target = $region3
  $region8: #{_lambda_.8} parent=0 // loop_exit
    _

</llo_original>
